<compile_context>
chip_gen: v7x
topology: tpu7x:2x2x1
jax: 0.10.0
libtpu: 0.0.40
codegen_flags: <defaults>
</compile_context>

<pallas_src>
import functools

import jax
import jax.numpy as jnp
import numpy as np
from jax.experimental import pallas as pl
from jax.experimental.pallas import tpu as pltpu


def _round_up(x, m):
    return (x + m - 1) // m * m


def _nbytes(shape, dtype):
    return int(np.prod(shape)) * jnp.dtype(dtype).itemsize


def resnet_block_kernel(
    x_ref,       # (1, L, Cin)          bf16 NLC activations (channels unpadded)
    scale_ref,   # (1, 1, Cout_p)       f32 FiLM scale (the +1 is already folded in)
    shift_ref,   # (1, 1, Cout_p)       f32 FiLM shift
    w1cat_ref,   # (Cin, 4*Cout_p)      bf16 [tap0 | tap1 | tap2 | res 1x1]
    b1_ref,      # (1, Cout_p)          f32
    g1_ref,      # (1, Cout_p)          f32 GroupNorm1 gamma
    be1_ref,     # (1, Cout_p)          f32 GroupNorm1 beta
    w2cat_ref,   # (Cout_p, 3*Cout_p)   bf16 [tap0 | tap1 | tap2]
    b2_ref,      # (1, Cout_p)          f32
    g2_ref,      # (1, Cout_p)          f32
    be2_ref,     # (1, Cout_p)          f32
    bres_ref,    # (1, Cout_p)          f32
    pgrp_ref,    # (Cout_p, Cout_p)     f32 group-average projection (GroupNorm)
    out_ref,     # (1, L, Cout_p)       bf16
    *, L, C,
):
    f32 = jnp.float32
    eps_gn = 1e-5                                   # nn.GroupNorm default eps

    x = x_ref[0]                                    # (L, Cin) bf16
    # (L, 1) boundary masks for the 3-tap conv; broadcast inside jnp.where.
    row = jax.lax.broadcasted_iota(jnp.int32, (L, 1), 0)
    is_first = row == 0
    is_last = row == L - 1

    def conv3_from_taps(y, bias):
        # y[:, k*C:(k+1)*C] = act @ W[..., k].  padding=1 conv combines taps with
        # XLU sublane rolls + boundary masks -- no padded scratch round trip.
        a0 = y[:, 0:C]
        a1 = y[:, C:2 * C]
        a2 = y[:, 2 * C:3 * C]
        b0 = jnp.where(is_first, 0.0, pltpu.roll(a0, shift=1, axis=0))
        b2 = jnp.where(is_last, 0.0, pltpu.roll(a2, shift=L - 1, axis=0))
        return b0 + a1 + b2 + bias

    def group_norm(h, gamma, beta):
        # One-pass group stats: a single (2, C) x (C, C) matmul gives the
        # per-channel-broadcast E[h] and E[h^2]; var = E[h^2] - mean^2 in f32.
        # Padded channels have all-zero pgrp rows/cols so they stay exactly zero.
        sums = jnp.concatenate(
            [jnp.sum(h, axis=0, keepdims=True),
             jnp.sum(h * h, axis=0, keepdims=True)], axis=0)          # (2, C)
        stats = jnp.dot(sums, pgrp_ref[...], preferred_element_type=f32)
        mean = stats[0:1]
        var = stats[1:2] - mean * mean
        return (h - mean) * jax.lax.rsqrt(var + eps_gn) * gamma + beta

    # --- block1 conv taps + residual 1x1 as ONE wide MXU matmul ------------------
    y1 = jnp.dot(x, w1cat_ref[...], preferred_element_type=f32)        # (L, 4C)
    res = y1[:, 3 * C:4 * C] + bres_ref[...]

    h = conv3_from_taps(y1, b1_ref[...])
    h = group_norm(h, g1_ref[...], be1_ref[...])
    h = h * scale_ref[0] + shift_ref[0]                                # FiLM
    h = h * jax.nn.sigmoid(h)                                          # SiLU

    # --- block2: all three taps in one matmul (bf16 only for the MXU operand) ----
    y2 = jnp.dot(h.astype(jnp.bfloat16), w2cat_ref[...],
                 preferred_element_type=f32)                           # (L, 3C)
    h2 = conv3_from_taps(y2, b2_ref[...])
    h2 = group_norm(h2, g2_ref[...], be2_ref[...])
    h2 = h2 * jax.nn.sigmoid(h2)

    out_ref[0] = (h2 + res).astype(out_ref.dtype)


def resnet_block_forward(x_ncl, time_emb, params, *, groups):
    """x_ncl: (B, Cin, L) in the PyTorch nn.Conv1d convention. Returns (B, Cout, L) f32."""
    B, Cin, L = x_ncl.shape
    Cout = params["w1"].shape[0]
    G = groups
    assert Cout % G == 0
    cg = Cout // G

    f32, bf16 = jnp.float32, jnp.bfloat16
    Cout_p = _round_up(Cout, 128)
    hi = jax.lax.Precision.HIGHEST

    # ---------------- batch-invariant preprocessing (hoisted out of the kernel) ----
    def wstd(w):  # (O, I, 3); per-output-channel stats, eps=1e-5, f32
        mean = jnp.mean(w, axis=(1, 2), keepdims=True)
        var = jnp.mean((w - mean) ** 2, axis=(1, 2), keepdims=True)
        return (w - mean) * jax.lax.rsqrt(var + 1e-5)

    def tap(w, k):  # (O, I, 3) -> (I, Cout_p), output channels lane-padded
        return jnp.pad(w[:, :, k].T, ((0, 0), (0, Cout_p - Cout)))

    w1s = wstd(params["w1"].astype(f32))                       # (Cout, Cin, 3)
    w2s = wstd(params["w2"].astype(f32))                       # (Cout, Cout, 3)
    wres = jnp.pad(params["wres"][:, :, 0].astype(f32).T,      # (Cin, Cout_p)
                   ((0, 0), (0, Cout_p - Cout)))
    w1cat = jnp.concatenate([tap(w1s, 0), tap(w1s, 1), tap(w1s, 2), wres],
                            axis=1).astype(bf16)               # (Cin, 4*Cout_p)
    w2cat = jnp.concatenate(
        [jnp.pad(tap(w2s, k), ((0, Cout_p - Cout), (0, 0))) for k in range(3)],
        axis=1).astype(bf16)                                   # (Cout_p, 3*Cout_p)

    pad_vec = lambda v: jnp.pad(v.astype(f32), (0, Cout_p - Cout)).reshape(1, Cout_p)
    b1, g1, be1 = pad_vec(params["b1"]), pad_vec(params["g1"]), pad_vec(params["be1"])
    b2, g2, be2 = pad_vec(params["b2"]), pad_vec(params["g2"]), pad_vec(params["be2"])
    bres = pad_vec(params["bres"])

    # GroupNorm group-average projection: P[c, c'] = 1/(cg*L) iff real channels c, c'
    # share a group; padded channels get all-zero rows/cols.
    m = (jnp.arange(Cout_p)[:, None] // cg == jnp.arange(G)[None, :]).astype(f32)
    pgrp = jnp.dot(m, m.T, precision=hi) / float(cg * L)       # (Cout_p, Cout_p)

    # Time MLP hoisted: one batched XLA matmul; FiLM "+1" folded into scale here.
    t = time_emb.astype(f32)
    t = t * jax.nn.sigmoid(t)                                  # SiLU
    temb = jnp.dot(t, params["wmlp"].astype(f32), precision=hi) + params["bmlp"].astype(f32)
    scale = jnp.pad(temb[:, :Cout] + 1.0,
                    ((0, 0), (0, Cout_p - Cout))).reshape(B, 1, Cout_p)
    shift = jnp.pad(temb[:, Cout:],
                    ((0, 0), (0, Cout_p - Cout))).reshape(B, 1, Cout_p)

    # Activations: cast to bf16 BEFORE the layout transpose; channels stay unpadded.
    x_nlc = jnp.transpose(x_ncl.astype(bf16), (0, 2, 1))       # (B, L, Cin)

    # ---------------- hardware-aware VMEM budget ------------------------------------
    weight_bytes = (
        _nbytes((Cin, 4 * Cout_p), bf16)
        + _nbytes((Cout_p, 3 * Cout_p), bf16)
        + _nbytes((Cout_p, Cout_p), f32)
        + 8 * _nbytes((1, Cout_p), f32)
    )
    block_bytes = (_nbytes((1, L, Cin), bf16)
                   + 2 * _nbytes((1, 1, Cout_p), f32)
                   + _nbytes((1, L, Cout_p), bf16))
    needed = weight_bytes + 2 * block_bytes + 8 * _nbytes((L, Cout_p), f32) + (4 << 20)
    try:
        hw_vmem = int(pltpu.get_tpu_info().vmem_capacity_bytes)
    except Exception:
        hw_vmem = 64 << 20                                     # conservative (v7x)
    vmem_limit = int(min(hw_vmem - (2 << 20), max(needed, 32 << 20)))

    # ---------------- pallas_call ----------------------------------------------------
    kernel = functools.partial(resnet_block_kernel, L=L, C=Cout_p)
    batched = lambda shape: pl.BlockSpec(shape, lambda b: (b, 0, 0))

    def build(single_buffer_weights):
        if single_buffer_weights:
            # Whole array resident in VMEM once: no double-buffer, no per-step DMA.
            wspec = lambda shape: pl.BlockSpec(memory_space=pltpu.MemorySpace.VMEM)
        else:
            # Fallback: full-size blocked operands with constant index maps.
            wspec = lambda shape: pl.BlockSpec(shape, lambda b, z=(0,) * len(shape): z)
        in_specs = [
            batched((1, L, Cin)),           # x
            batched((1, 1, Cout_p)),        # scale (+1 folded)
            batched((1, 1, Cout_p)),        # shift
            wspec((Cin, 4 * Cout_p)),       # w1cat (+ residual 1x1)
            wspec((1, Cout_p)), wspec((1, Cout_p)), wspec((1, Cout_p)),
            wspec((Cout_p, 3 * Cout_p)),    # w2cat
            wspec((1, Cout_p)), wspec((1, Cout_p)), wspec((1, Cout_p)),
            wspec((1, Cout_p)),             # bres
            wspec((Cout_p, Cout_p)),        # pgrp
        ]
        return pl.pallas_call(
            kernel,
            out_shape=jax.ShapeDtypeStruct((B, L, Cout_p), bf16),
            grid=(B,),
            in_specs=in_specs,
            out_specs=batched((1, L, Cout_p)),
            compiler_params=pltpu.CompilerParams(
                dimension_semantics=("parallel",),
                vmem_limit_bytes=vmem_limit),
        )

    args = (x_nlc, scale, shift, w1cat, b1, g1, be1, w2cat, b2, g2, be2, bres, pgrp)
    try:
        out_nlc = build(True)(*args)
    except Exception:
        # Robust fallback: default double-buffered weight blocks (previous layout).
        out_nlc = build(False)(*args)

    out = jnp.transpose(out_nlc[:, :, :Cout], (0, 2, 1))       # bf16, (B, Cout, L)
    return out.astype(f32)


# ---------------------- pure-JAX reference (for checking) ----------------------
def reference_forward(x_ncl, time_emb, params, *, groups):
    hi = jax.lax.Precision.HIGHEST
    Cout = params["w1"].shape[0]
    silu = lambda v: v * jax.nn.sigmoid(v)

    def wstd(w):
        mean = jnp.mean(w, axis=(1, 2), keepdims=True)
        var = jnp.mean((w - mean) ** 2, axis=(1, 2), keepdims=True)
        return (w - mean) * jax.lax.rsqrt(var + 1e-5)

    def conv1d(x, w, b, pad):
        y = jax.lax.conv_general_dilated(
            x, w, window_strides=(1,), padding=((pad, pad),),
            dimension_numbers=("NCW", "OIW", "NCW"), precision=hi)
        return y + b[None, :, None]

    def group_norm(h, gamma, beta):
        B, C, L = h.shape
        hg = h.reshape(B, groups, C // groups, L)
        mean = jnp.mean(hg, axis=(2, 3), keepdims=True)
        var = jnp.mean((hg - mean) ** 2, axis=(2, 3), keepdims=True)
        hn = ((hg - mean) * jax.lax.rsqrt(var + 1e-5)).reshape(B, C, L)
        return hn * gamma[None, :, None] + beta[None, :, None]

    t = jnp.dot(silu(time_emb), params["wmlp"], precision=hi) + params["bmlp"]
    scale = t[:, :Cout, None]
    shift = t[:, Cout:, None]

    h = conv1d(x_ncl, wstd(params["w1"]), params["b1"], pad=1)
    h = group_norm(h, params["g1"], params["be1"])
    h = h * (scale + 1.0) + shift
    h = silu(h)

    h = conv1d(h, wstd(params["w2"]), params["b2"], pad=1)
    h = group_norm(h, params["g2"], params["be2"])
    h = silu(h)

    res = conv1d(x_ncl, params["wres"], params["bres"], pad=0)
    return h + res


def init_params(key, Cin, Cout, Temb):
    ks = jax.random.split(key, 12)
    p = {}
    p["w1"] = 0.2 * jax.random.normal(ks[0], (Cout, Cin, 3), jnp.float32)
    p["b1"] = 0.1 * jax.random.normal(ks[1], (Cout,), jnp.float32)
    p["g1"] = 1.0 + 0.1 * jax.random.normal(ks[2], (Cout,), jnp.float32)
    p["be1"] = 0.1 * jax.random.normal(ks[3], (Cout,), jnp.float32)
    p["w2"] = 0.2 * jax.random.normal(ks[4], (Cout, Cout, 3), jnp.float32)
    p["b2"] = 0.1 * jax.random.normal(ks[5], (Cout,), jnp.float32)
    p["g2"] = 1.0 + 0.1 * jax.random.normal(ks[6], (Cout,), jnp.float32)
    p["be2"] = 0.1 * jax.random.normal(ks[7], (Cout,), jnp.float32)
    p["wmlp"] = 0.1 * jax.random.normal(ks[8], (Temb, 2 * Cout), jnp.float32)
    p["bmlp"] = 0.1 * jax.random.normal(ks[9], (2 * Cout,), jnp.float32)
    p["wres"] = 0.2 * jax.random.normal(ks[10], (Cout, Cin, 1), jnp.float32)
    p["bres"] = 0.1 * jax.random.normal(ks[11], (Cout,), jnp.float32)
    return p


if __name__ == "__main__":
    B, Cin, Cout, L, Temb, G = 2, 8, 16, 16, 32, 8   # dim=8, dim_out=16, groups=8
    key = jax.random.PRNGKey(0)
    kx, kt, kp = jax.random.split(key, 3)
    x = jax.random.normal(kx, (B, Cin, L), jnp.float32)        # NCL (torch layout)
    time_emb = jax.random.normal(kt, (B, Temb), jnp.float32)
    params = init_params(kp, Cin, Cout, Temb)

    out = resnet_block_forward(x, time_emb, params, groups=G)
    out = jax.block_until_ready(out)
    assert out.shape == (B, Cout, L)

    ref = reference_forward(x, time_emb, params, groups=G)
    # Tolerance accounts for bf16 MXU operands + bf16 output (stats/norm/SiLU in f32).
    np.testing.assert_allclose(np.asarray(out), np.asarray(ref), rtol=5e-2, atol=5e-2)
    print("KERNEL_OK")
</pallas_src>

<mosaic_0001>
module attributes {stable_mosaic.version = 11 : i64} {
  func.func @resnet_block_kernel(%arg0: i32, %arg1: memref<1x16x8xbf16, #tpu.memory_space<vmem>>, %arg2: memref<1x1x128xf32, #tpu.memory_space<vmem>>, %arg3: memref<1x1x128xf32, #tpu.memory_space<vmem>>, %arg4: memref<8x512xbf16, #tpu.memory_space<vmem>>, %arg5: memref<1x128xf32, #tpu.memory_space<vmem>>, %arg6: memref<1x128xf32, #tpu.memory_space<vmem>>, %arg7: memref<1x128xf32, #tpu.memory_space<vmem>>, %arg8: memref<128x384xbf16, #tpu.memory_space<vmem>>, %arg9: memref<1x128xf32, #tpu.memory_space<vmem>>, %arg10: memref<1x128xf32, #tpu.memory_space<vmem>>, %arg11: memref<1x128xf32, #tpu.memory_space<vmem>>, %arg12: memref<1x128xf32, #tpu.memory_space<vmem>>, %arg13: memref<128x128xf32, #tpu.memory_space<vmem>>, %arg14: memref<1x16x128xbf16, #tpu.memory_space<vmem>>) attributes {dimension_semantics = [#tpu.dimension_semantics<parallel>], iteration_bounds = array<i64: 2>, scalar_prefetch = 0 : i64, scratch_operands = 0 : i64, tpu.core_type = #tpu.core_type<tc>, window_params = [{transform_indices = @transform_0, window_bounds = array<i64: 1, 16, 8>}, {transform_indices = @transform_1, window_bounds = array<i64: 1, 1, 128>}, {transform_indices = @transform_2, window_bounds = array<i64: 1, 1, 128>}, {pipeline_mode = #tpu.pipeline_mode<synchronous>, transform_indices = @transform_3, window_bounds = array<i64: 8, 512>}, {pipeline_mode = #tpu.pipeline_mode<synchronous>, transform_indices = @transform_4, window_bounds = array<i64: 1, 128>}, {pipeline_mode = #tpu.pipeline_mode<synchronous>, transform_indices = @transform_5, window_bounds = array<i64: 1, 128>}, {pipeline_mode = #tpu.pipeline_mode<synchronous>, transform_indices = @transform_6, window_bounds = array<i64: 1, 128>}, {pipeline_mode = #tpu.pipeline_mode<synchronous>, transform_indices = @transform_7, window_bounds = array<i64: 128, 384>}, {pipeline_mode = #tpu.pipeline_mode<synchronous>, transform_indices = @transform_8, window_bounds = array<i64: 1, 128>}, {pipeline_mode = #tpu.pipeline_mode<synchronous>, transform_indices = @transform_9, window_bounds = array<i64: 1, 128>}, {pipeline_mode = #tpu.pipeline_mode<synchronous>, transform_indices = @transform_10, window_bounds = array<i64: 1, 128>}, {pipeline_mode = #tpu.pipeline_mode<synchronous>, transform_indices = @transform_11, window_bounds = array<i64: 1, 128>}, {pipeline_mode = #tpu.pipeline_mode<synchronous>, transform_indices = @transform_12, window_bounds = array<i64: 128, 128>}, {transform_indices = @transform_13, window_bounds = array<i64: 1, 16, 128>}]} {
    %c0 = arith.constant 0 : index
    %c0_0 = arith.constant 0 : index
    %c0_1 = arith.constant 0 : index
    %0 = vector.load %arg1[%c0, %c0_0, %c0_1] : memref<1x16x8xbf16, #tpu.memory_space<vmem>>, vector<1x16x8xbf16>
    %1 = vector.shape_cast %0 : vector<1x16x8xbf16> to vector<16x8xbf16>
    %2 = tpu.iota {dimensions = array<i32: 0>} : vector<16x1xi32>
    %c0_i32 = arith.constant 0 : i32
    %3 = vector.broadcast %c0_i32 : i32 to vector<16x1xi32>
    %4 = arith.cmpi eq, %2, %3 : vector<16x1xi32>
    %c15_i32 = arith.constant 15 : i32
    %5 = vector.broadcast %c15_i32 : i32 to vector<16x1xi32>
    %6 = arith.cmpi eq, %2, %5 : vector<16x1xi32>
    %c0_2 = arith.constant 0 : index
    %c0_3 = arith.constant 0 : index
    %7 = vector.load %arg4[%c0_2, %c0_3] : memref<8x512xbf16, #tpu.memory_space<vmem>>, vector<8x512xbf16>
    %cst = arith.constant dense<0.000000e+00> : vector<16x512xf32>
    %8 = tpu.matmul %1, %7, %cst {dimension_numbers = #tpu.dot_dimension_numbers<[1], [0], [0], [1], [0, 0, 1, 1], [], []>} : vector<16x8xbf16>, vector<8x512xbf16>, vector<16x512xf32> -> vector<16x512xf32>
    %9 = vector.extract_strided_slice %8 {offsets = [0, 384], sizes = [16, 128], strides = [1, 1]} : vector<16x512xf32> to vector<16x128xf32>
    %c0_4 = arith.constant 0 : index
    %c0_5 = arith.constant 0 : index
    %10 = vector.load %arg12[%c0_4, %c0_5] : memref<1x128xf32, #tpu.memory_space<vmem>>, vector<1x128xf32>
    %11 = vector.broadcast %10 : vector<1x128xf32> to vector<16x128xf32>
    %12 = arith.addf %9, %11 : vector<16x128xf32>
    %c0_6 = arith.constant 0 : index
    %c0_7 = arith.constant 0 : index
    %13 = vector.load %arg5[%c0_6, %c0_7] : memref<1x128xf32, #tpu.memory_space<vmem>>, vector<1x128xf32>
    %14 = vector.extract_strided_slice %8 {offsets = [0, 0], sizes = [16, 128], strides = [1, 1]} : vector<16x512xf32> to vector<16x128xf32>
    %15 = vector.extract_strided_slice %8 {offsets = [0, 128], sizes = [16, 128], strides = [1, 1]} : vector<16x512xf32> to vector<16x128xf32>
    %16 = vector.extract_strided_slice %8 {offsets = [0, 256], sizes = [16, 128], strides = [1, 1]} : vector<16x512xf32> to vector<16x128xf32>
    %c1_i32 = arith.constant 1 : i32
    %17 = tpu.dynamic_rotate %14 by %c1_i32 dim 0 : vector<16x128xf32>, i32 -> vector<16x128xf32>
    %cst_8 = arith.constant 0.000000e+00 : f32
    %18 = vector.shape_cast %4 : vector<16x1xi1> to vector<16x1xi1>
    %19 = vector.broadcast %18 : vector<16x1xi1> to vector<16x128xi1>
    %20 = vector.broadcast %cst_8 : f32 to vector<16x128xf32>
    %21 = arith.select %19, %20, %17 : vector<16x128xi1>, vector<16x128xf32>
    %c15_i32_9 = arith.constant 15 : i32
    %22 = tpu.dynamic_rotate %16 by %c15_i32_9 dim 0 : vector<16x128xf32>, i32 -> vector<16x128xf32>
    %cst_10 = arith.constant 0.000000e+00 : f32
    %23 = vector.shape_cast %6 : vector<16x1xi1> to vector<16x1xi1>
    %24 = vector.broadcast %23 : vector<16x1xi1> to vector<16x128xi1>
    %25 = vector.broadcast %cst_10 : f32 to vector<16x128xf32>
    %26 = arith.select %24, %25, %22 : vector<16x128xi1>, vector<16x128xf32>
    %27 = arith.addf %21, %15 : vector<16x128xf32>
    %28 = arith.addf %27, %26 : vector<16x128xf32>
    %29 = vector.broadcast %13 : vector<1x128xf32> to vector<16x128xf32>
    %30 = arith.addf %28, %29 : vector<16x128xf32>
    %c0_11 = arith.constant 0 : index
    %c0_12 = arith.constant 0 : index
    %31 = vector.load %arg6[%c0_11, %c0_12] : memref<1x128xf32, #tpu.memory_space<vmem>>, vector<1x128xf32>
    %c0_13 = arith.constant 0 : index
    %c0_14 = arith.constant 0 : index
    %32 = vector.load %arg7[%c0_13, %c0_14] : memref<1x128xf32, #tpu.memory_space<vmem>>, vector<1x128xf32>
    %cst_15 = arith.constant dense<0.000000e+00> : vector<128xf32>
    %33 = vector.multi_reduction <add>, %30, %cst_15 [0] : vector<16x128xf32> to vector<128xf32>
    %34 = vector.shape_cast %33 : vector<128xf32> to vector<1x128xf32>
    %35 = arith.mulf %30, %30 : vector<16x128xf32>
    %cst_16 = arith.constant dense<0.000000e+00> : vector<128xf32>
    %36 = vector.multi_reduction <add>, %35, %cst_16 [0] : vector<16x128xf32> to vector<128xf32>
    %37 = vector.shape_cast %36 : vector<128xf32> to vector<1x128xf32>
    %38 = tpu.concatenate %34, %37 in 0 : vector<1x128xf32>, vector<1x128xf32> -> vector<2x128xf32>
    %c0_17 = arith.constant 0 : index
    %c0_18 = arith.constant 0 : index
    %39 = vector.load %arg13[%c0_17, %c0_18] : memref<128x128xf32, #tpu.memory_space<vmem>>, vector<128x128xf32>
    %cst_19 = arith.constant dense<0.000000e+00> : vector<2x128xf32>
    %40 = tpu.matmul %38, %39, %cst_19 {dimension_numbers = #tpu.dot_dimension_numbers<[1], [0], [0], [1], [0, 0, 1, 1], [], []>} : vector<2x128xf32>, vector<128x128xf32>, vector<2x128xf32> -> vector<2x128xf32>
    %41 = vector.extract_strided_slice %40 {offsets = [0, 0], sizes = [1, 128], strides = [1, 1]} : vector<2x128xf32> to vector<1x128xf32>
    %42 = vector.extract_strided_slice %40 {offsets = [1, 0], sizes = [1, 128], strides = [1, 1]} : vector<2x128xf32> to vector<1x128xf32>
    %43 = arith.mulf %41, %41 : vector<1x128xf32>
    %44 = arith.subf %42, %43 : vector<1x128xf32>
    %45 = vector.broadcast %41 : vector<1x128xf32> to vector<16x128xf32>
    %46 = arith.subf %30, %45 : vector<16x128xf32>
    %cst_20 = arith.constant 9.99999974E-6 : f32
    %47 = vector.broadcast %cst_20 : f32 to vector<1x128xf32>
    %48 = arith.addf %44, %47 : vector<1x128xf32>
    %49 = math.rsqrt %48 : vector<1x128xf32>
    %50 = vector.broadcast %49 : vector<1x128xf32> to vector<16x128xf32>
    %51 = arith.mulf %46, %50 : vector<16x128xf32>
    %52 = vector.broadcast %31 : vector<1x128xf32> to vector<16x128xf32>
    %53 = arith.mulf %51, %52 : vector<16x128xf32>
    %54 = vector.broadcast %32 : vector<1x128xf32> to vector<16x128xf32>
    %55 = arith.addf %53, %54 : vector<16x128xf32>
    %c0_21 = arith.constant 0 : index
    %c0_22 = arith.constant 0 : index
    %c0_23 = arith.constant 0 : index
    %56 = vector.load %arg2[%c0_21, %c0_22, %c0_23] : memref<1x1x128xf32, #tpu.memory_space<vmem>>, vector<1x1x128xf32>
    %57 = vector.shape_cast %56 : vector<1x1x128xf32> to vector<1x128xf32>
    %58 = vector.broadcast %57 : vector<1x128xf32> to vector<16x128xf32>
    %59 = arith.mulf %55, %58 : vector<16x128xf32>
    %c0_24 = arith.constant 0 : index
    %c0_25 = arith.constant 0 : index
    %c0_26 = arith.constant 0 : index
    %60 = vector.load %arg3[%c0_24, %c0_25, %c0_26] : memref<1x1x128xf32, #tpu.memory_space<vmem>>, vector<1x1x128xf32>
    %61 = vector.shape_cast %60 : vector<1x1x128xf32> to vector<1x128xf32>
    %62 = vector.broadcast %61 : vector<1x128xf32> to vector<16x128xf32>
    %63 = arith.addf %59, %62 : vector<16x128xf32>
    %64 = arith.negf %63 : vector<16x128xf32>
    %65 = math.exp %64 : vector<16x128xf32>
    %cst_27 = arith.constant 1.000000e+00 : f32
    %66 = vector.broadcast %cst_27 : f32 to vector<16x128xf32>
    %67 = arith.addf %66, %65 : vector<16x128xf32>
    %68 = arith.divf %66, %67 : vector<16x128xf32>
    %69 = arith.mulf %63, %68 : vector<16x128xf32>
    %70 = arith.truncf %69 : vector<16x128xf32> to vector<16x128xbf16>
    %c0_28 = arith.constant 0 : index
    %c0_29 = arith.constant 0 : index
    %71 = vector.load %arg8[%c0_28, %c0_29] : memref<128x384xbf16, #tpu.memory_space<vmem>>, vector<128x384xbf16>
    %cst_30 = arith.constant dense<0.000000e+00> : vector<16x384xf32>
    %72 = tpu.matmul %70, %71, %cst_30 {dimension_numbers = #tpu.dot_dimension_numbers<[1], [0], [0], [1], [0, 0, 1, 1], [], []>} : vector<16x128xbf16>, vector<128x384xbf16>, vector<16x384xf32> -> vector<16x384xf32>
    %c0_31 = arith.constant 0 : index
    %c0_32 = arith.constant 0 : index
    %73 = vector.load %arg9[%c0_31, %c0_32] : memref<1x128xf32, #tpu.memory_space<vmem>>, vector<1x128xf32>
    %74 = vector.extract_strided_slice %72 {offsets = [0, 0], sizes = [16, 128], strides = [1, 1]} : vector<16x384xf32> to vector<16x128xf32>
    %75 = vector.extract_strided_slice %72 {offsets = [0, 128], sizes = [16, 128], strides = [1, 1]} : vector<16x384xf32> to vector<16x128xf32>
    %76 = vector.extract_strided_slice %72 {offsets = [0, 256], sizes = [16, 128], strides = [1, 1]} : vector<16x384xf32> to vector<16x128xf32>
    %c1_i32_33 = arith.constant 1 : i32
    %77 = tpu.dynamic_rotate %74 by %c1_i32_33 dim 0 : vector<16x128xf32>, i32 -> vector<16x128xf32>
    %cst_34 = arith.constant 0.000000e+00 : f32
    %78 = vector.shape_cast %4 : vector<16x1xi1> to vector<16x1xi1>
    %79 = vector.broadcast %78 : vector<16x1xi1> to vector<16x128xi1>
    %80 = vector.broadcast %cst_34 : f32 to vector<16x128xf32>
    %81 = arith.select %79, %80, %77 : vector<16x128xi1>, vector<16x128xf32>
    %c15_i32_35 = arith.constant 15 : i32
    %82 = tpu.dynamic_rotate %76 by %c15_i32_35 dim 0 : vector<16x128xf32>, i32 -> vector<16x128xf32>
    %cst_36 = arith.constant 0.000000e+00 : f32
    %83 = vector.shape_cast %6 : vector<16x1xi1> to vector<16x1xi1>
    %84 = vector.broadcast %83 : vector<16x1xi1> to vector<16x128xi1>
    %85 = vector.broadcast %cst_36 : f32 to vector<16x128xf32>
    %86 = arith.select %84, %85, %82 : vector<16x128xi1>, vector<16x128xf32>
    %87 = arith.addf %81, %75 : vector<16x128xf32>
    %88 = arith.addf %87, %86 : vector<16x128xf32>
    %89 = vector.broadcast %73 : vector<1x128xf32> to vector<16x128xf32>
    %90 = arith.addf %88, %89 : vector<16x128xf32>
    %c0_37 = arith.constant 0 : index
    %c0_38 = arith.constant 0 : index
    %91 = vector.load %arg10[%c0_37, %c0_38] : memref<1x128xf32, #tpu.memory_space<vmem>>, vector<1x128xf32>
    %c0_39 = arith.constant 0 : index
    %c0_40 = arith.constant 0 : index
    %92 = vector.load %arg11[%c0_39, %c0_40] : memref<1x128xf32, #tpu.memory_space<vmem>>, vector<1x128xf32>
    %cst_41 = arith.constant dense<0.000000e+00> : vector<128xf32>
    %93 = vector.multi_reduction <add>, %90, %cst_41 [0] : vector<16x128xf32> to vector<128xf32>
    %94 = vector.shape_cast %93 : vector<128xf32> to vector<1x128xf32>
    %95 = arith.mulf %90, %90 : vector<16x128xf32>
    %cst_42 = arith.constant dense<0.000000e+00> : vector<128xf32>
    %96 = vector.multi_reduction <add>, %95, %cst_42 [0] : vector<16x128xf32> to vector<128xf32>
    %97 = vector.shape_cast %96 : vector<128xf32> to vector<1x128xf32>
    %98 = tpu.concatenate %94, %97 in 0 : vector<1x128xf32>, vector<1x128xf32> -> vector<2x128xf32>
    %c0_43 = arith.constant 0 : index
    %c0_44 = arith.constant 0 : index
    %99 = vector.load %arg13[%c0_43, %c0_44] : memref<128x128xf32, #tpu.memory_space<vmem>>, vector<128x128xf32>
    %cst_45 = arith.constant dense<0.000000e+00> : vector<2x128xf32>
    %100 = tpu.matmul %98, %99, %cst_45 {dimension_numbers = #tpu.dot_dimension_numbers<[1], [0], [0], [1], [0, 0, 1, 1], [], []>} : vector<2x128xf32>, vector<128x128xf32>, vector<2x128xf32> -> vector<2x128xf32>
    %101 = vector.extract_strided_slice %100 {offsets = [0, 0], sizes = [1, 128], strides = [1, 1]} : vector<2x128xf32> to vector<1x128xf32>
    %102 = vector.extract_strided_slice %100 {offsets = [1, 0], sizes = [1, 128], strides = [1, 1]} : vector<2x128xf32> to vector<1x128xf32>
    %103 = arith.mulf %101, %101 : vector<1x128xf32>
    %104 = arith.subf %102, %103 : vector<1x128xf32>
    %105 = vector.broadcast %101 : vector<1x128xf32> to vector<16x128xf32>
    %106 = arith.subf %90, %105 : vector<16x128xf32>
    %cst_46 = arith.constant 9.99999974E-6 : f32
    %107 = vector.broadcast %cst_46 : f32 to vector<1x128xf32>
    %108 = arith.addf %104, %107 : vector<1x128xf32>
    %109 = math.rsqrt %108 : vector<1x128xf32>
    %110 = vector.broadcast %109 : vector<1x128xf32> to vector<16x128xf32>
    %111 = arith.mulf %106, %110 : vector<16x128xf32>
    %112 = vector.broadcast %91 : vector<1x128xf32> to vector<16x128xf32>
    %113 = arith.mulf %111, %112 : vector<16x128xf32>
    %114 = vector.broadcast %92 : vector<1x128xf32> to vector<16x128xf32>
    %115 = arith.addf %113, %114 : vector<16x128xf32>
    %116 = arith.negf %115 : vector<16x128xf32>
    %117 = math.exp %116 : vector<16x128xf32>
    %cst_47 = arith.constant 1.000000e+00 : f32
    %118 = vector.broadcast %cst_47 : f32 to vector<16x128xf32>
    %119 = arith.addf %118, %117 : vector<16x128xf32>
    %120 = arith.divf %118, %119 : vector<16x128xf32>
    %121 = arith.mulf %115, %120 : vector<16x128xf32>
    %122 = arith.addf %121, %12 : vector<16x128xf32>
    %123 = arith.truncf %122 : vector<16x128xf32> to vector<16x128xbf16>
    %c0_48 = arith.constant 0 : index
    %c0_49 = arith.constant 0 : index
    %c0_50 = arith.constant 0 : index
    %124 = vector.load %arg14[%c0_48, %c0_49, %c0_50] : memref<1x16x128xbf16, #tpu.memory_space<vmem>>, vector<1x16x128xbf16>
    %125 = vector.shape_cast %124 : vector<1x16x128xbf16> to vector<16x128xbf16>
    %126 = vector.shape_cast %123 : vector<16x128xbf16> to vector<1x16x128xbf16>
    tpu.vector_store %arg14[%c0_48, %c0_49, %c0_50], %126 {strides = array<i32>} : memref<1x16x128xbf16, #tpu.memory_space<vmem>>, vector<1x16x128xbf16>,
    return
  }
  func.func @transform_0(%arg0: i32) -> (i32, i32, i32) {
    %c0_i32 = arith.constant 0 : i32
    %c0_i32_0 = arith.constant 0 : i32
    %c0_i32_1 = arith.constant 0 : i32
    return %arg0, %c0_i32, %c0_i32_0 : i32, i32, i32
  }
  func.func @transform_1(%arg0: i32) -> (i32, i32, i32) {
    %c0_i32 = arith.constant 0 : i32
    %c0_i32_0 = arith.constant 0 : i32
    %c0_i32_1 = arith.constant 0 : i32
    return %arg0, %c0_i32, %c0_i32_0 : i32, i32, i32
  }
  func.func @transform_2(%arg0: i32) -> (i32, i32, i32) {
    %c0_i32 = arith.constant 0 : i32
    %c0_i32_0 = arith.constant 0 : i32
    %c0_i32_1 = arith.constant 0 : i32
    return %arg0, %c0_i32, %c0_i32_0 : i32, i32, i32
  }
  func.func @transform_3(%arg0: i32) -> (i32, i32) {
    %c0_i32 = arith.constant 0 : i32
    %c0_i32_0 = arith.constant 0 : i32
    %c0_i32_1 = arith.constant 0 : i32
    return %c0_i32, %c0_i32_0 : i32, i32
  }
  func.func @transform_4(%arg0: i32) -> (i32, i32) {
    %c0_i32 = arith.constant 0 : i32
    %c0_i32_0 = arith.constant 0 : i32
    %c0_i32_1 = arith.constant 0 : i32
    return %c0_i32, %c0_i32_0 : i32, i32
  }
  func.func @transform_5(%arg0: i32) -> (i32, i32) {
    %c0_i32 = arith.constant 0 : i32
    %c0_i32_0 = arith.constant 0 : i32
    %c0_i32_1 = arith.constant 0 : i32
    return %c0_i32, %c0_i32_0 : i32, i32
  }
  func.func @transform_6(%arg0: i32) -> (i32, i32) {
    %c0_i32 = arith.constant 0 : i32
    %c0_i32_0 = arith.constant 0 : i32
    %c0_i32_1 = arith.constant 0 : i32
    return %c0_i32, %c0_i32_0 : i32, i32
  }
  func.func @transform_7(%arg0: i32) -> (i32, i32) {
    %c0_i32 = arith.constant 0 : i32
    %c0_i32_0 = arith.constant 0 : i32
    %c0_i32_1 = arith.constant 0 : i32
    return %c0_i32, %c0_i32_0 : i32, i32
  }
  func.func @transform_8(%arg0: i32) -> (i32, i32) {
    %c0_i32 = arith.constant 0 : i32
    %c0_i32_0 = arith.constant 0 : i32
    %c0_i32_1 = arith.constant 0 : i32
    return %c0_i32, %c0_i32_0 : i32, i32
  }
  func.func @transform_9(%arg0: i32) -> (i32, i32) {
    %c0_i32 = arith.constant 0 : i32
    %c0_i32_0 = arith.constant 0 : i32
    %c0_i32_1 = arith.constant 0 : i32
    return %c0_i32, %c0_i32_0 : i32, i32
  }
  func.func @transform_10(%arg0: i32) -> (i32, i32) {
    %c0_i32 = arith.constant 0 : i32
    %c0_i32_0 = arith.constant 0 : i32
    %c0_i32_1 = arith.constant 0 : i32
    return %c0_i32, %c0_i32_0 : i32, i32
  }
  func.func @transform_11(%arg0: i32) -> (i32, i32) {
    %c0_i32 = arith.constant 0 : i32
    %c0_i32_0 = arith.constant 0 : i32
    %c0_i32_1 = arith.constant 0 : i32
    return %c0_i32, %c0_i32_0 : i32, i32
  }
  func.func @transform_12(%arg0: i32) -> (i32, i32) {
    %c0_i32 = arith.constant 0 : i32
    %c0_i32_0 = arith.constant 0 : i32
    %c0_i32_1 = arith.constant 0 : i32
    return %c0_i32, %c0_i32_0 : i32, i32
  }
  func.func @transform_13(%arg0: i32) -> (i32, i32, i32) {
    %c0_i32 = arith.constant 0 : i32
    %c0_i32_0 = arith.constant 0 : i32
    %c0_i32_1 = arith.constant 0 : i32
    return %arg0, %c0_i32, %c0_i32_0 : i32, i32, i32
  }
}

module attributes {stable_mosaic.version = 11 : i64} {
  func.func @resnet_block_kernel(%arg0: i32, %arg1: memref<1x16x8xbf16, #tpu.memory_space<vmem>>, %arg2: memref<1x1x128xf32, #tpu.memory_space<vmem>>, %arg3: memref<1x1x128xf32, #tpu.memory_space<vmem>>, %arg4: memref<8x512xbf16, #tpu.memory_space<vmem>>, %arg5: memref<1x128xf32, #tpu.memory_space<vmem>>, %arg6: memref<1x128xf32, #tpu.memory_space<vmem>>, %arg7: memref<1x128xf32, #tpu.memory_space<vmem>>, %arg8: memref<128x384xbf16, #tpu.memory_space<vmem>>, %arg9: memref<1x128xf32, #tpu.memory_space<vmem>>, %arg10: memref<1x128xf32, #tpu.memory_space<vmem>>, %arg11: memref<1x128xf32, #tpu.memory_space<vmem>>, %arg12: memref<1x128xf32, #tpu.memory_space<vmem>>, %arg13: memref<128x128xf32, #tpu.memory_space<vmem>>, %arg14: memref<1x16x128xbf16, #tpu.memory_space<vmem>>) attributes {dimension_semantics = [#tpu.dimension_semantics<parallel>], iteration_bounds = array<i64: 2>, scalar_prefetch = 0 : i64, scratch_operands = 0 : i64, tpu.core_type = #tpu.core_type<tc>, window_params = [{transform_indices = @transform_0, window_bounds = array<i64: 1, 16, 8>}, {transform_indices = @transform_1, window_bounds = array<i64: 1, 1, 128>}, {transform_indices = @transform_2, window_bounds = array<i64: 1, 1, 128>}, {pipeline_mode = #tpu.pipeline_mode<synchronous>, transform_indices = @transform_3, window_bounds = array<i64: 8, 512>}, {pipeline_mode = #tpu.pipeline_mode<synchronous>, transform_indices = @transform_4, window_bounds = array<i64: 1, 128>}, {pipeline_mode = #tpu.pipeline_mode<synchronous>, transform_indices = @transform_5, window_bounds = array<i64: 1, 128>}, {pipeline_mode = #tpu.pipeline_mode<synchronous>, transform_indices = @transform_6, window_bounds = array<i64: 1, 128>}, {pipeline_mode = #tpu.pipeline_mode<synchronous>, transform_indices = @transform_7, window_bounds = array<i64: 128, 384>}, {pipeline_mode = #tpu.pipeline_mode<synchronous>, transform_indices = @transform_8, window_bounds = array<i64: 1, 128>}, {pipeline_mode = #tpu.pipeline_mode<synchronous>, transform_indices = @transform_9, window_bounds = array<i64: 1, 128>}, {pipeline_mode = #tpu.pipeline_mode<synchronous>, transform_indices = @transform_10, window_bounds = array<i64: 1, 128>}, {pipeline_mode = #tpu.pipeline_mode<synchronous>, transform_indices = @transform_11, window_bounds = array<i64: 1, 128>}, {pipeline_mode = #tpu.pipeline_mode<synchronous>, transform_indices = @transform_12, window_bounds = array<i64: 128, 128>}, {transform_indices = @transform_13, window_bounds = array<i64: 1, 16, 128>}]} {
    %c0 = arith.constant 0 : index
    %c0_0 = arith.constant 0 : index
    %c0_1 = arith.constant 0 : index
    %0 = vector.load %arg1[%c0, %c0_0, %c0_1] : memref<1x16x8xbf16, #tpu.memory_space<vmem>>, vector<1x16x8xbf16>
    %1 = vector.shape_cast %0 : vector<1x16x8xbf16> to vector<16x8xbf16>
    %2 = tpu.iota {dimensions = array<i32: 0>} : vector<16x1xi32>
    %c0_i32 = arith.constant 0 : i32
    %3 = vector.broadcast %c0_i32 : i32 to vector<16x1xi32>
    %4 = arith.cmpi eq, %2, %3 : vector<16x1xi32>
    %c15_i32 = arith.constant 15 : i32
    %5 = vector.broadcast %c15_i32 : i32 to vector<16x1xi32>
    %6 = arith.cmpi eq, %2, %5 : vector<16x1xi32>
    %c0_2 = arith.constant 0 : index
    %c0_3 = arith.constant 0 : index
    %7 = vector.load %arg4[%c0_2, %c0_3] : memref<8x512xbf16, #tpu.memory_space<vmem>>, vector<8x512xbf16>
    %cst = arith.constant dense<0.000000e+00> : vector<16x512xf32>
    %8 = tpu.matmul %1, %7, %cst {dimension_numbers = #tpu.dot_dimension_numbers<[1], [0], [0], [1], [0, 0, 1, 1], [], []>} : vector<16x8xbf16>, vector<8x512xbf16>, vector<16x512xf32> -> vector<16x512xf32>
    %9 = vector.extract_strided_slice %8 {offsets = [0, 384], sizes = [16, 128], strides = [1, 1]} : vector<16x512xf32> to vector<16x128xf32>
    %c0_4 = arith.constant 0 : index
    %c0_5 = arith.constant 0 : index
    %10 = vector.load %arg12[%c0_4, %c0_5] : memref<1x128xf32, #tpu.memory_space<vmem>>, vector<1x128xf32>
    %11 = vector.broadcast %10 : vector<1x128xf32> to vector<16x128xf32>
    %12 = arith.addf %9, %11 : vector<16x128xf32>
    %c0_6 = arith.constant 0 : index
    %c0_7 = arith.constant 0 : index
    %13 = vector.load %arg5[%c0_6, %c0_7] : memref<1x128xf32, #tpu.memory_space<vmem>>, vector<1x128xf32>
    %14 = vector.extract_strided_slice %8 {offsets = [0, 0], sizes = [16, 128], strides = [1, 1]} : vector<16x512xf32> to vector<16x128xf32>
    %15 = vector.extract_strided_slice %8 {offsets = [0, 128], sizes = [16, 128], strides = [1, 1]} : vector<16x512xf32> to vector<16x128xf32>
    %16 = vector.extract_strided_slice %8 {offsets = [0, 256], sizes = [16, 128], strides = [1, 1]} : vector<16x512xf32> to vector<16x128xf32>
    %c1_i32 = arith.constant 1 : i32
    %17 = tpu.dynamic_rotate %14 by %c1_i32 dim 0 : vector<16x128xf32>, i32 -> vector<16x128xf32>
    %cst_8 = arith.constant 0.000000e+00 : f32
    %18 = vector.shape_cast %4 : vector<16x1xi1> to vector<16x1xi1>
    %19 = vector.broadcast %18 : vector<16x1xi1> to vector<16x128xi1>
    %20 = vector.broadcast %cst_8 : f32 to vector<16x128xf32>
    %21 = arith.select %19, %20, %17 : vector<16x128xi1>, vector<16x128xf32>
    %c15_i32_9 = arith.constant 15 : i32
    %22 = tpu.dynamic_rotate %16 by %c15_i32_9 dim 0 : vector<16x128xf32>, i32 -> vector<16x128xf32>
    %cst_10 = arith.constant 0.000000e+00 : f32
    %23 = vector.shape_cast %6 : vector<16x1xi1> to vector<16x1xi1>
    %24 = vector.broadcast %23 : vector<16x1xi1> to vector<16x128xi1>
    %25 = vector.broadcast %cst_10 : f32 to vector<16x128xf32>
    %26 = arith.select %24, %25, %22 : vector<16x128xi1>, vector<16x128xf32>
    %27 = arith.addf %21, %15 : vector<16x128xf32>
    %28 = arith.addf %27, %26 : vector<16x128xf32>
    %29 = vector.broadcast %13 : vector<1x128xf32> to vector<16x128xf32>
    %30 = arith.addf %28, %29 : vector<16x128xf32>
    %c0_11 = arith.constant 0 : index
    %c0_12 = arith.constant 0 : index
    %31 = vector.load %arg6[%c0_11, %c0_12] : memref<1x128xf32, #tpu.memory_space<vmem>>, vector<1x128xf32>
    %c0_13 = arith.constant 0 : index
    %c0_14 = arith.constant 0 : index
    %32 = vector.load %arg7[%c0_13, %c0_14] : memref<1x128xf32, #tpu.memory_space<vmem>>, vector<1x128xf32>
    %cst_15 = arith.constant dense<0.000000e+00> : vector<128xf32>
    %33 = vector.multi_reduction <add>, %30, %cst_15 [0] : vector<16x128xf32> to vector<128xf32>
    %34 = vector.shape_cast %33 : vector<128xf32> to vector<1x128xf32>
    %35 = arith.mulf %30, %30 : vector<16x128xf32>
    %cst_16 = arith.constant dense<0.000000e+00> : vector<128xf32>
    %36 = vector.multi_reduction <add>, %35, %cst_16 [0] : vector<16x128xf32> to vector<128xf32>
    %37 = vector.shape_cast %36 : vector<128xf32> to vector<1x128xf32>
    %38 = tpu.concatenate %34, %37 in 0 : vector<1x128xf32>, vector<1x128xf32> -> vector<2x128xf32>
    %c0_17 = arith.constant 0 : index
    %c0_18 = arith.constant 0 : index
    %39 = vector.load %arg13[%c0_17, %c0_18] : memref<128x128xf32, #tpu.memory_space<vmem>>, vector<128x128xf32>
    %cst_19 = arith.constant dense<0.000000e+00> : vector<2x128xf32>
    %40 = tpu.matmul %38, %39, %cst_19 {dimension_numbers = #tpu.dot_dimension_numbers<[1], [0], [0], [1], [0, 0, 1, 1], [], []>} : vector<2x128xf32>, vector<128x128xf32>, vector<2x128xf32> -> vector<2x128xf32>
    %41 = vector.extract_strided_slice %40 {offsets = [0, 0], sizes = [1, 128], strides = [1, 1]} : vector<2x128xf32> to vector<1x128xf32>
    %42 = vector.extract_strided_slice %40 {offsets = [1, 0], sizes = [1, 128], strides = [1, 1]} : vector<2x128xf32> to vector<1x128xf32>
    %43 = arith.mulf %41, %41 : vector<1x128xf32>
    %44 = arith.subf %42, %43 : vector<1x128xf32>
    %45 = vector.broadcast %41 : vector<1x128xf32> to vector<16x128xf32>
    %46 = arith.subf %30, %45 : vector<16x128xf32>
    %cst_20 = arith.constant 9.99999974E-6 : f32
    %47 = vector.broadcast %cst_20 : f32 to vector<1x128xf32>
    %48 = arith.addf %44, %47 : vector<1x128xf32>
    %49 = math.rsqrt %48 : vector<1x128xf32>
    %50 = vector.broadcast %49 : vector<1x128xf32> to vector<16x128xf32>
    %51 = arith.mulf %46, %50 : vector<16x128xf32>
    %52 = vector.broadcast %31 : vector<1x128xf32> to vector<16x128xf32>
    %53 = arith.mulf %51, %52 : vector<16x128xf32>
    %54 = vector.broadcast %32 : vector<1x128xf32> to vector<16x128xf32>
    %55 = arith.addf %53, %54 : vector<16x128xf32>
    %c0_21 = arith.constant 0 : index
    %c0_22 = arith.constant 0 : index
    %c0_23 = arith.constant 0 : index
    %56 = vector.load %arg2[%c0_21, %c0_22, %c0_23] : memref<1x1x128xf32, #tpu.memory_space<vmem>>, vector<1x1x128xf32>
    %57 = vector.shape_cast %56 : vector<1x1x128xf32> to vector<1x128xf32>
    %58 = vector.broadcast %57 : vector<1x128xf32> to vector<16x128xf32>
    %59 = arith.mulf %55, %58 : vector<16x128xf32>
    %c0_24 = arith.constant 0 : index
    %c0_25 = arith.constant 0 : index
    %c0_26 = arith.constant 0 : index
    %60 = vector.load %arg3[%c0_24, %c0_25, %c0_26] : memref<1x1x128xf32, #tpu.memory_space<vmem>>, vector<1x1x128xf32>
    %61 = vector.shape_cast %60 : vector<1x1x128xf32> to vector<1x128xf32>
    %62 = vector.broadcast %61 : vector<1x128xf32> to vector<16x128xf32>
    %63 = arith.addf %59, %62 : vector<16x128xf32>
    %64 = arith.negf %63 : vector<16x128xf32>
    %65 = math.exp %64 : vector<16x128xf32>
    %cst_27 = arith.constant 1.000000e+00 : f32
    %66 = vector.broadcast %cst_27 : f32 to vector<16x128xf32>
    %67 = arith.addf %66, %65 : vector<16x128xf32>
    %68 = arith.divf %66, %67 : vector<16x128xf32>
    %69 = arith.mulf %63, %68 : vector<16x128xf32>
    %70 = arith.truncf %69 : vector<16x128xf32> to vector<16x128xbf16>
    %c0_28 = arith.constant 0 : index
    %c0_29 = arith.constant 0 : index
    %71 = vector.load %arg8[%c0_28, %c0_29] : memref<128x384xbf16, #tpu.memory_space<vmem>>, vector<128x384xbf16>
    %cst_30 = arith.constant dense<0.000000e+00> : vector<16x384xf32>
    %72 = tpu.matmul %70, %71, %cst_30 {dimension_numbers = #tpu.dot_dimension_numbers<[1], [0], [0], [1], [0, 0, 1, 1], [], []>} : vector<16x128xbf16>, vector<128x384xbf16>, vector<16x384xf32> -> vector<16x384xf32>
    %c0_31 = arith.constant 0 : index
    %c0_32 = arith.constant 0 : index
    %73 = vector.load %arg9[%c0_31, %c0_32] : memref<1x128xf32, #tpu.memory_space<vmem>>, vector<1x128xf32>
    %74 = vector.extract_strided_slice %72 {offsets = [0, 0], sizes = [16, 128], strides = [1, 1]} : vector<16x384xf32> to vector<16x128xf32>
    %75 = vector.extract_strided_slice %72 {offsets = [0, 128], sizes = [16, 128], strides = [1, 1]} : vector<16x384xf32> to vector<16x128xf32>
    %76 = vector.extract_strided_slice %72 {offsets = [0, 256], sizes = [16, 128], strides = [1, 1]} : vector<16x384xf32> to vector<16x128xf32>
    %c1_i32_33 = arith.constant 1 : i32
    %77 = tpu.dynamic_rotate %74 by %c1_i32_33 dim 0 : vector<16x128xf32>, i32 -> vector<16x128xf32>
    %cst_34 = arith.constant 0.000000e+00 : f32
    %78 = vector.shape_cast %4 : vector<16x1xi1> to vector<16x1xi1>
    %79 = vector.broadcast %78 : vector<16x1xi1> to vector<16x128xi1>
    %80 = vector.broadcast %cst_34 : f32 to vector<16x128xf32>
    %81 = arith.select %79, %80, %77 : vector<16x128xi1>, vector<16x128xf32>
    %c15_i32_35 = arith.constant 15 : i32
    %82 = tpu.dynamic_rotate %76 by %c15_i32_35 dim 0 : vector<16x128xf32>, i32 -> vector<16x128xf32>
    %cst_36 = arith.constant 0.000000e+00 : f32
    %83 = vector.shape_cast %6 : vector<16x1xi1> to vector<16x1xi1>
    %84 = vector.broadcast %83 : vector<16x1xi1> to vector<16x128xi1>
    %85 = vector.broadcast %cst_36 : f32 to vector<16x128xf32>
    %86 = arith.select %84, %85, %82 : vector<16x128xi1>, vector<16x128xf32>
    %87 = arith.addf %81, %75 : vector<16x128xf32>
    %88 = arith.addf %87, %86 : vector<16x128xf32>
    %89 = vector.broadcast %73 : vector<1x128xf32> to vector<16x128xf32>
    %90 = arith.addf %88, %89 : vector<16x128xf32>
    %c0_37 = arith.constant 0 : index
    %c0_38 = arith.constant 0 : index
    %91 = vector.load %arg10[%c0_37, %c0_38] : memref<1x128xf32, #tpu.memory_space<vmem>>, vector<1x128xf32>
    %c0_39 = arith.constant 0 : index
    %c0_40 = arith.constant 0 : index
    %92 = vector.load %arg11[%c0_39, %c0_40] : memref<1x128xf32, #tpu.memory_space<vmem>>, vector<1x128xf32>
    %cst_41 = arith.constant dense<0.000000e+00> : vector<128xf32>
    %93 = vector.multi_reduction <add>, %90, %cst_41 [0] : vector<16x128xf32> to vector<128xf32>
    %94 = vector.shape_cast %93 : vector<128xf32> to vector<1x128xf32>
    %95 = arith.mulf %90, %90 : vector<16x128xf32>
    %cst_42 = arith.constant dense<0.000000e+00> : vector<128xf32>
    %96 = vector.multi_reduction <add>, %95, %cst_42 [0] : vector<16x128xf32> to vector<128xf32>
    %97 = vector.shape_cast %96 : vector<128xf32> to vector<1x128xf32>
    %98 = tpu.concatenate %94, %97 in 0 : vector<1x128xf32>, vector<1x128xf32> -> vector<2x128xf32>
    %c0_43 = arith.constant 0 : index
    %c0_44 = arith.constant 0 : index
    %99 = vector.load %arg13[%c0_43, %c0_44] : memref<128x128xf32, #tpu.memory_space<vmem>>, vector<128x128xf32>
    %cst_45 = arith.constant dense<0.000000e+00> : vector<2x128xf32>
    %100 = tpu.matmul %98, %99, %cst_45 {dimension_numbers = #tpu.dot_dimension_numbers<[1], [0], [0], [1], [0, 0, 1, 1], [], []>} : vector<2x128xf32>, vector<128x128xf32>, vector<2x128xf32> -> vector<2x128xf32>
    %101 = vector.extract_strided_slice %100 {offsets = [0, 0], sizes = [1, 128], strides = [1, 1]} : vector<2x128xf32> to vector<1x128xf32>
    %102 = vector.extract_strided_slice %100 {offsets = [1, 0], sizes = [1, 128], strides = [1, 1]} : vector<2x128xf32> to vector<1x128xf32>
    %103 = arith.mulf %101, %101 : vector<1x128xf32>
    %104 = arith.subf %102, %103 : vector<1x128xf32>
    %105 = vector.broadcast %101 : vector<1x128xf32> to vector<16x128xf32>
    %106 = arith.subf %90, %105 : vector<16x128xf32>
    %cst_46 = arith.constant 9.99999974E-6 : f32
    %107 = vector.broadcast %cst_46 : f32 to vector<1x128xf32>
    %108 = arith.addf %104, %107 : vector<1x128xf32>
    %109 = math.rsqrt %108 : vector<1x128xf32>
    %110 = vector.broadcast %109 : vector<1x128xf32> to vector<16x128xf32>
    %111 = arith.mulf %106, %110 : vector<16x128xf32>
    %112 = vector.broadcast %91 : vector<1x128xf32> to vector<16x128xf32>
    %113 = arith.mulf %111, %112 : vector<16x128xf32>
    %114 = vector.broadcast %92 : vector<1x128xf32> to vector<16x128xf32>
    %115 = arith.addf %113, %114 : vector<16x128xf32>
    %116 = arith.negf %115 : vector<16x128xf32>
    %117 = math.exp %116 : vector<16x128xf32>
    %cst_47 = arith.constant 1.000000e+00 : f32
    %118 = vector.broadcast %cst_47 : f32 to vector<16x128xf32>
    %119 = arith.addf %118, %117 : vector<16x128xf32>
    %120 = arith.divf %118, %119 : vector<16x128xf32>
    %121 = arith.mulf %115, %120 : vector<16x128xf32>
    %122 = arith.addf %121, %12 : vector<16x128xf32>
    %123 = arith.truncf %122 : vector<16x128xf32> to vector<16x128xbf16>
    %c0_48 = arith.constant 0 : index
    %c0_49 = arith.constant 0 : index
    %c0_50 = arith.constant 0 : index
    %124 = vector.load %arg14[%c0_48, %c0_49, %c0_50] : memref<1x16x128xbf16, #tpu.memory_space<vmem>>, vector<1x16x128xbf16>
    %125 = vector.shape_cast %124 : vector<1x16x128xbf16> to vector<16x128xbf16>
    %126 = vector.shape_cast %123 : vector<16x128xbf16> to vector<1x16x128xbf16>
    tpu.vector_store %arg14[%c0_48, %c0_49, %c0_50], %126 {strides = array<i32>} : memref<1x16x128xbf16, #tpu.memory_space<vmem>>, vector<1x16x128xbf16>,
    return
  }
  func.func @transform_0(%arg0: i32) -> (i32, i32, i32) {
    %c0_i32 = arith.constant 0 : i32
    %c0_i32_0 = arith.constant 0 : i32
    %c0_i32_1 = arith.constant 0 : i32
    return %arg0, %c0_i32, %c0_i32_0 : i32, i32, i32
  }
  func.func @transform_1(%arg0: i32) -> (i32, i32, i32) {
    %c0_i32 = arith.constant 0 : i32
    %c0_i32_0 = arith.constant 0 : i32
    %c0_i32_1 = arith.constant 0 : i32
    return %arg0, %c0_i32, %c0_i32_0 : i32, i32, i32
  }
  func.func @transform_2(%arg0: i32) -> (i32, i32, i32) {
    %c0_i32 = arith.constant 0 : i32
    %c0_i32_0 = arith.constant 0 : i32
    %c0_i32_1 = arith.constant 0 : i32
    return %arg0, %c0_i32, %c0_i32_0 : i32, i32, i32
  }
  func.func @transform_3(%arg0: i32) -> (i32, i32) {
    %c0_i32 = arith.constant 0 : i32
    %c0_i32_0 = arith.constant 0 : i32
    %c0_i32_1 = arith.constant 0 : i32
    return %c0_i32, %c0_i32_0 : i32, i32
  }
  func.func @transform_4(%arg0: i32) -> (i32, i32) {
    %c0_i32 = arith.constant 0 : i32
    %c0_i32_0 = arith.constant 0 : i32
    %c0_i32_1 = arith.constant 0 : i32
    return %c0_i32, %c0_i32_0 : i32, i32
  }
  func.func @transform_5(%arg0: i32) -> (i32, i32) {
    %c0_i32 = arith.constant 0 : i32
    %c0_i32_0 = arith.constant 0 : i32
    %c0_i32_1 = arith.constant 0 : i32
    return %c0_i32, %c0_i32_0 : i32, i32
  }
  func.func @transform_6(%arg0: i32) -> (i32, i32) {
    %c0_i32 = arith.constant 0 : i32
    %c0_i32_0 = arith.constant 0 : i32
    %c0_i32_1 = arith.constant 0 : i32
    return %c0_i32, %c0_i32_0 : i32, i32
  }
  func.func @transform_7(%arg0: i32) -> (i32, i32) {
    %c0_i32 = arith.constant 0 : i32
    %c0_i32_0 = arith.constant 0 : i32
    %c0_i32_1 = arith.constant 0 : i32
    return %c0_i32, %c0_i32_0 : i32, i32
  }
  func.func @transform_8(%arg0: i32) -> (i32, i32) {
    %c0_i32 = arith.constant 0 : i32
    %c0_i32_0 = arith.constant 0 : i32
    %c0_i32_1 = arith.constant 0 : i32
    return %c0_i32, %c0_i32_0 : i32, i32
  }
  func.func @transform_9(%arg0: i32) -> (i32, i32) {
    %c0_i32 = arith.constant 0 : i32
    %c0_i32_0 = arith.constant 0 : i32
    %c0_i32_1 = arith.constant 0 : i32
    return %c0_i32, %c0_i32_0 : i32, i32
  }
  func.func @transform_10(%arg0: i32) -> (i32, i32) {
    %c0_i32 = arith.constant 0 : i32
    %c0_i32_0 = arith.constant 0 : i32
    %c0_i32_1 = arith.constant 0 : i32
    return %c0_i32, %c0_i32_0 : i32, i32
  }
  func.func @transform_11(%arg0: i32) -> (i32, i32) {
    %c0_i32 = arith.constant 0 : i32
    %c0_i32_0 = arith.constant 0 : i32
    %c0_i32_1 = arith.constant 0 : i32
    return %c0_i32, %c0_i32_0 : i32, i32
  }
  func.func @transform_12(%arg0: i32) -> (i32, i32) {
    %c0_i32 = arith.constant 0 : i32
    %c0_i32_0 = arith.constant 0 : i32
    %c0_i32_1 = arith.constant 0 : i32
    return %c0_i32, %c0_i32_0 : i32, i32
  }
  func.func @transform_13(%arg0: i32) -> (i32, i32, i32) {
    %c0_i32 = arith.constant 0 : i32
    %c0_i32_0 = arith.constant 0 : i32
    %c0_i32_1 = arith.constant 0 : i32
    return %arg0, %c0_i32, %c0_i32_0 : i32, i32, i32
  }
}

</mosaic_0001>

<llo_original>
// kernel: tpu_custom_call.1
$region0: #{tpu_custom_call.1}
  #allocation0 [shape = 'u32[]', space=smem, size = 0x4, offset = 0x4, fixed_abs, tag = 'smem constant byte address 0x4 - core index']
  #allocation1 [shape = 'u32[144,128]{1,0:T(1,128)}', space=vmem, size = 0x12000, scoped, tag = 'internal scratch']
  %s0 = inlined_call_operand.vmem [shape: bf16[2,16,8], index: 0, kind: input, shape index: {}]
  %s1 = inlined_call_operand.vmem [shape: f32[2,1,128], index: 1, kind: input, shape index: {}]
  %s2 = inlined_call_operand.vmem [shape: f32[2,1,128], index: 2, kind: input, shape index: {}]
  %s3 = inlined_call_operand.vmem [shape: bf16[8,512], index: 3, kind: input, shape index: {}]
  %s4 = inlined_call_operand.vmem [shape: f32[1,128], index: 4, kind: input, shape index: {}]
  %s5 = inlined_call_operand.vmem [shape: f32[1,128], index: 5, kind: input, shape index: {}]
  %s6 = inlined_call_operand.vmem [shape: f32[1,128], index: 6, kind: input, shape index: {}]
  %s7 = inlined_call_operand.hbm [shape: bf16[128,384], index: 7, kind: input, shape index: {}]
  %s8 = inlined_call_operand.vmem [shape: f32[1,128], index: 8, kind: input, shape index: {}]
  %s9 = inlined_call_operand.vmem [shape: f32[1,128], index: 9, kind: input, shape index: {}]
  %s10 = inlined_call_operand.vmem [shape: f32[1,128], index: 10, kind: input, shape index: {}]
  %s11 = inlined_call_operand.vmem [shape: f32[1,128], index: 11, kind: input, shape index: {}]
  %s12 = inlined_call_operand.hbm [shape: f32[128,128], index: 12, kind: input, shape index: {}]
  %s13 = inlined_call_operand.hbm [shape: bf16[2,16,128], index: 13, kind: output, shape index: {}]
  %s14 = sld [smem:[#allocation0]]
  $region93: #{tpu_custom_call.1} parent=0
    _
  %s16 = ssub.s32 1, %s14
  %s17 = scalar_select 0, %s16, %s14
  $region1: #{tpu_custom_call.1} parent=0
    #allocation2 [shape = 'u8[98304]{0}', space=vmem, size = 0x18000, scoped, tag = 'input window, operand 7, single buffered']
    #allocation3 [shape = 's32[2]{0}', space=sflag, size = 0x8, scoped, tag = 'scoped memory for tpu_custom_call.1']
    #allocation4 [shape = 's32[2]{0}', space=sflag, size = 0x8, scoped, tag = 'scoped memory for tpu_custom_call.1']
    #allocation5 [shape = 'u8[65536]{0}', space=vmem, size = 0x10000, scoped, tag = 'input window, operand 12, single buffered']
    #allocation6 [shape = 's32[1]{0}', space=sflag, size = 0x4, scoped, tag = 'scoped memory for tpu_custom_call.1']
    #allocation7 [shape = 'u8[8192]{0}', space=vmem, size = 0x2000, scoped, tag = 'output window, operand 0']
    %18 = vsyncpa [#allocation3], 0
    %19 = vsyncpa [#allocation6], 0
    %20 = vsyncpa [#allocation4], 0
    %s21 = scalar_lea.sflag [#allocation4], 1
    %22 = vsyncpa %s21, 0
    loop: start=0, step=1, limit=4
    $region2: #{tpu_custom_call.1} parent=1 // loop_pre_header
      _
    $region3: #{tpu_custom_call.1} parent=1 // loop_header
      %s24 = sphi 0, %s28
      %p25 = scmp.ge.s32.totalorder %s24, 4
      %s34 = sphi 0, %s36
      %s37 = sphi 0, %s34
      %s38 = sphi 0, %s37
      %s54 = sphi 0, %s38
      %s60 = sphi 0, %s62
      %s63 = sphi 0, %s60
      %s64 = sphi 0, %s63
      %s80 = sphi 0, %s64
      %s86 = sphi 0, %s88
      %s89 = sphi 0, %s86
      %s90 = sphi 0, %s89
      %s106 = sphi 0, %s90
      %s110 = sphi 0, %s110
      %s112 = sphi 0, %s110
      %s113 = sphi 0, %s112
      %s127 = sphi 0, %s113
      %s131 = sphi 0, %s131
      %s133 = sphi 0, %s131
      %s134 = sphi 0, %s133
      %s148 = sphi 0, %s134
      %s152 = sphi 0, %s152
      %s154 = sphi 0, %s152
      %s155 = sphi 0, %s154
      %s169 = sphi 0, %s155
      %s173 = sphi 0, %s173
      %s175 = sphi 0, %s173
      %s176 = sphi 0, %s175
      %s190 = sphi 0, %s176
      %s194 = sphi 0, %s194
      %s196 = sphi 0, %s194
      %s197 = sphi 0, %s196
      %s211 = sphi 0, %s197
      %s215 = sphi 0, %s215
      %s217 = sphi 0, %s215
      %s218 = sphi 0, %s217
      %s232 = sphi 0, %s218
      %s236 = sphi 0, %s236
      %s238 = sphi 0, %s236
      %s239 = sphi 0, %s238
      %s253 = sphi 0, %s239
      %s257 = sphi 0, %s257
      %s259 = sphi 0, %s257
      %s260 = sphi 0, %s259
      %s274 = sphi 0, %s260
      %s278 = sphi 0, %s278
      %s280 = sphi 0, %s278
      %s281 = sphi 0, %s280
      %s295 = sphi 0, %s281
      %s299 = sphi 0, %s299
      %s301 = sphi 0, %s299
      %s302 = sphi 0, %s301
      %s316 = sphi 0, %s302
      %s322 = sphi 0, %s324
      %s325 = sphi 0, %s322
      %s326 = sphi 0, %s325
      %s342 = sphi 0, %s326
    $region4: #{tpu_custom_call.1} parent=1 // loop_header_branch
      %27 = sbr.rel (%p25) target = $region8
    $region5: #{tpu_custom_call.1} parent=1 // loop_body
      %s29 = ssub.s32 %s24, 1
      %s30 = ssub.s32 %s24, 2
      %s31 = sadd.s32 %s24, 1
      %s32 = ssub.s32 %s24, %s31
      %p33 = scmp.eq.s32.totalorder %s32, 0
      %s35 = sadd.s32 %s34, 1
      %s36 = scalar_select %p33, %s34, %s35
      %p39 = pneg %p33
      %p40 = scmp.eq.s32.totalorder %s24, 1
      %p41 = por %p39, %p40
      %p42 = scmp.ne.s32.totalorder %s34, %s37
      %p43 = scmp.eq.s32.totalorder %s24, 0
      %p44 = por %p42, %p43
      %p45 = scmp.ne.s32.totalorder %s34, %s37
      %p46 = scmp.eq.s32.totalorder %s29, 1
      %p47 = por %p45, %p46
      %p48 = scmp.ne.s32.totalorder %s37, %s38
      %p49 = scmp.eq.s32.totalorder %s29, 0
      %p50 = por %p48, %p49
      %p51 = scmp.ne.s32.totalorder %s37, %s38
      %p52 = scmp.eq.s32.totalorder %s30, 1
      %p53 = por %p51, %p52
      %p55 = scmp.ne.s32.totalorder %s38, %s54
      %p56 = scmp.eq.s32.totalorder %s30, 0
      %p57 = por %p55, %p56
      %s58 = ssub.s32 %s24, %s31
      %p59 = scmp.eq.s32.totalorder %s58, 0
      %s61 = sadd.s32 %s60, 1
      %s62 = scalar_select %p59, %s60, %s61
      %p65 = pneg %p59
      %p66 = scmp.eq.s32.totalorder %s24, 1
      %p67 = por %p65, %p66
      %p68 = scmp.ne.s32.totalorder %s60, %s63
      %p69 = scmp.eq.s32.totalorder %s24, 0
      %p70 = por %p68, %p69
      %p71 = scmp.ne.s32.totalorder %s60, %s63
      %p72 = scmp.eq.s32.totalorder %s29, 1
      %p73 = por %p71, %p72
      %p74 = scmp.ne.s32.totalorder %s63, %s64
      %p75 = scmp.eq.s32.totalorder %s29, 0
      %p76 = por %p74, %p75
      %p77 = scmp.ne.s32.totalorder %s63, %s64
      %p78 = scmp.eq.s32.totalorder %s30, 1
      %p79 = por %p77, %p78
      %p81 = scmp.ne.s32.totalorder %s64, %s80
      %p82 = scmp.eq.s32.totalorder %s30, 0
      %p83 = por %p81, %p82
      %s84 = ssub.s32 %s24, %s31
      %p85 = scmp.eq.s32.totalorder %s84, 0
      %s87 = sadd.s32 %s86, 1
      %s88 = scalar_select %p85, %s86, %s87
      %p91 = pneg %p85
      %p92 = scmp.eq.s32.totalorder %s24, 1
      %p93 = por %p91, %p92
      %p94 = scmp.ne.s32.totalorder %s86, %s89
      %p95 = scmp.eq.s32.totalorder %s24, 0
      %p96 = por %p94, %p95
      %p97 = scmp.ne.s32.totalorder %s86, %s89
      %p98 = scmp.eq.s32.totalorder %s29, 1
      %p99 = por %p97, %p98
      %p100 = scmp.ne.s32.totalorder %s89, %s90
      %p101 = scmp.eq.s32.totalorder %s29, 0
      %p102 = por %p100, %p101
      %p103 = scmp.ne.s32.totalorder %s89, %s90
      %p104 = scmp.eq.s32.totalorder %s30, 1
      %p105 = por %p103, %p104
      %p107 = scmp.ne.s32.totalorder %s90, %s106
      %p108 = scmp.eq.s32.totalorder %s30, 0
      %p109 = por %p107, %p108
      %s111 = sadd.s32 %s110, 1
      %p114 = scmp.eq.s32.totalorder %s24, 1
      %p115 = scmp.ne.s32.totalorder %s110, %s112
      %p116 = scmp.eq.s32.totalorder %s24, 0
      %p117 = por %p115, %p116
      %p118 = scmp.ne.s32.totalorder %s110, %s112
      %p119 = scmp.eq.s32.totalorder %s29, 1
      %p120 = por %p118, %p119
      %p121 = scmp.ne.s32.totalorder %s112, %s113
      %p122 = scmp.eq.s32.totalorder %s29, 0
      %p123 = por %p121, %p122
      %p124 = scmp.ne.s32.totalorder %s112, %s113
      %p125 = scmp.eq.s32.totalorder %s30, 1
      %p126 = por %p124, %p125
      %p128 = scmp.ne.s32.totalorder %s113, %s127
      %p129 = scmp.eq.s32.totalorder %s30, 0
      %p130 = por %p128, %p129
      %s132 = sadd.s32 %s131, 1
      %p135 = scmp.eq.s32.totalorder %s24, 1
      %p136 = scmp.ne.s32.totalorder %s131, %s133
      %p137 = scmp.eq.s32.totalorder %s24, 0
      %p138 = por %p136, %p137
      %p139 = scmp.ne.s32.totalorder %s131, %s133
      %p140 = scmp.eq.s32.totalorder %s29, 1
      %p141 = por %p139, %p140
      %p142 = scmp.ne.s32.totalorder %s133, %s134
      %p143 = scmp.eq.s32.totalorder %s29, 0
      %p144 = por %p142, %p143
      %p145 = scmp.ne.s32.totalorder %s133, %s134
      %p146 = scmp.eq.s32.totalorder %s30, 1
      %p147 = por %p145, %p146
      %p149 = scmp.ne.s32.totalorder %s134, %s148
      %p150 = scmp.eq.s32.totalorder %s30, 0
      %p151 = por %p149, %p150
      %s153 = sadd.s32 %s152, 1
      %p156 = scmp.eq.s32.totalorder %s24, 1
      %p157 = scmp.ne.s32.totalorder %s152, %s154
      %p158 = scmp.eq.s32.totalorder %s24, 0
      %p159 = por %p157, %p158
      %p160 = scmp.ne.s32.totalorder %s152, %s154
      %p161 = scmp.eq.s32.totalorder %s29, 1
      %p162 = por %p160, %p161
      %p163 = scmp.ne.s32.totalorder %s154, %s155
      %p164 = scmp.eq.s32.totalorder %s29, 0
      %p165 = por %p163, %p164
      %p166 = scmp.ne.s32.totalorder %s154, %s155
      %p167 = scmp.eq.s32.totalorder %s30, 1
      %p168 = por %p166, %p167
      %p170 = scmp.ne.s32.totalorder %s155, %s169
      %p171 = scmp.eq.s32.totalorder %s30, 0
      %p172 = por %p170, %p171
      %s174 = sadd.s32 %s173, 1
      %p177 = scmp.eq.s32.totalorder %s24, 1
      %p178 = scmp.ne.s32.totalorder %s173, %s175
      %p179 = scmp.eq.s32.totalorder %s24, 0
      %p180 = por %p178, %p179
      %p181 = scmp.ne.s32.totalorder %s173, %s175
      %p182 = scmp.eq.s32.totalorder %s29, 1
      %p183 = por %p181, %p182
      %p184 = scmp.ne.s32.totalorder %s175, %s176
      %p185 = scmp.eq.s32.totalorder %s29, 0
      %p186 = por %p184, %p185
      %p187 = scmp.ne.s32.totalorder %s175, %s176
      %p188 = scmp.eq.s32.totalorder %s30, 1
      %p189 = por %p187, %p188
      %p191 = scmp.ne.s32.totalorder %s176, %s190
      %p192 = scmp.eq.s32.totalorder %s30, 0
      %p193 = por %p191, %p192
      %s195 = sadd.s32 %s194, 1
      %p198 = scmp.eq.s32.totalorder %s24, 1
      %p199 = scmp.ne.s32.totalorder %s194, %s196
      %p200 = scmp.eq.s32.totalorder %s24, 0
      %p201 = por %p199, %p200
      %p202 = scmp.ne.s32.totalorder %s194, %s196
      %p203 = scmp.eq.s32.totalorder %s29, 1
      %p204 = por %p202, %p203
      %p205 = scmp.ne.s32.totalorder %s196, %s197
      %p206 = scmp.eq.s32.totalorder %s29, 0
      %p207 = por %p205, %p206
      %p208 = scmp.ne.s32.totalorder %s196, %s197
      %p209 = scmp.eq.s32.totalorder %s30, 1
      %p210 = por %p208, %p209
      %p212 = scmp.ne.s32.totalorder %s197, %s211
      %p213 = scmp.eq.s32.totalorder %s30, 0
      %p214 = por %p212, %p213
      %s216 = sadd.s32 %s215, 1
      %p219 = scmp.eq.s32.totalorder %s24, 1
      %p220 = scmp.ne.s32.totalorder %s215, %s217
      %p221 = scmp.eq.s32.totalorder %s24, 0
      %p222 = por %p220, %p221
      %p223 = scmp.ne.s32.totalorder %s215, %s217
      %p224 = scmp.eq.s32.totalorder %s29, 1
      %p225 = por %p223, %p224
      %p226 = scmp.ne.s32.totalorder %s217, %s218
      %p227 = scmp.eq.s32.totalorder %s29, 0
      %p228 = por %p226, %p227
      %p229 = scmp.ne.s32.totalorder %s217, %s218
      %p230 = scmp.eq.s32.totalorder %s30, 1
      %p231 = por %p229, %p230
      %p233 = scmp.ne.s32.totalorder %s218, %s232
      %p234 = scmp.eq.s32.totalorder %s30, 0
      %p235 = por %p233, %p234
      %s237 = sadd.s32 %s236, 1
      %p240 = scmp.eq.s32.totalorder %s24, 1
      %p241 = scmp.ne.s32.totalorder %s236, %s238
      %p242 = scmp.eq.s32.totalorder %s24, 0
      %p243 = por %p241, %p242
      %p244 = scmp.ne.s32.totalorder %s236, %s238
      %p245 = scmp.eq.s32.totalorder %s29, 1
      %p246 = por %p244, %p245
      %p247 = scmp.ne.s32.totalorder %s238, %s239
      %p248 = scmp.eq.s32.totalorder %s29, 0
      %p249 = por %p247, %p248
      %p250 = scmp.ne.s32.totalorder %s238, %s239
      %p251 = scmp.eq.s32.totalorder %s30, 1
      %p252 = por %p250, %p251
      %p254 = scmp.ne.s32.totalorder %s239, %s253
      %p255 = scmp.eq.s32.totalorder %s30, 0
      %p256 = por %p254, %p255
      %s258 = sadd.s32 %s257, 1
      %p261 = scmp.eq.s32.totalorder %s24, 1
      %p262 = scmp.ne.s32.totalorder %s257, %s259
      %p263 = scmp.eq.s32.totalorder %s24, 0
      %p264 = por %p262, %p263
      %p265 = scmp.ne.s32.totalorder %s257, %s259
      %p266 = scmp.eq.s32.totalorder %s29, 1
      %p267 = por %p265, %p266
      %p268 = scmp.ne.s32.totalorder %s259, %s260
      %p269 = scmp.eq.s32.totalorder %s29, 0
      %p270 = por %p268, %p269
      %p271 = scmp.ne.s32.totalorder %s259, %s260
      %p272 = scmp.eq.s32.totalorder %s30, 1
      %p273 = por %p271, %p272
      %p275 = scmp.ne.s32.totalorder %s260, %s274
      %p276 = scmp.eq.s32.totalorder %s30, 0
      %p277 = por %p275, %p276
      %s279 = sadd.s32 %s278, 1
      %p282 = scmp.eq.s32.totalorder %s24, 1
      %p283 = scmp.ne.s32.totalorder %s278, %s280
      %p284 = scmp.eq.s32.totalorder %s24, 0
      %p285 = por %p283, %p284
      %p286 = scmp.ne.s32.totalorder %s278, %s280
      %p287 = scmp.eq.s32.totalorder %s29, 1
      %p288 = por %p286, %p287
      %p289 = scmp.ne.s32.totalorder %s280, %s281
      %p290 = scmp.eq.s32.totalorder %s29, 0
      %p291 = por %p289, %p290
      %p292 = scmp.ne.s32.totalorder %s280, %s281
      %p293 = scmp.eq.s32.totalorder %s30, 1
      %p294 = por %p292, %p293
      %p296 = scmp.ne.s32.totalorder %s281, %s295
      %p297 = scmp.eq.s32.totalorder %s30, 0
      %p298 = por %p296, %p297
      %s300 = sadd.s32 %s299, 1
      %p303 = scmp.eq.s32.totalorder %s24, 1
      %p304 = scmp.ne.s32.totalorder %s299, %s301
      %p305 = scmp.eq.s32.totalorder %s24, 0
      %p306 = por %p304, %p305
      %p307 = scmp.ne.s32.totalorder %s299, %s301
      %p308 = scmp.eq.s32.totalorder %s29, 1
      %p309 = por %p307, %p308
      %p310 = scmp.ne.s32.totalorder %s301, %s302
      %p311 = scmp.eq.s32.totalorder %s29, 0
      %p312 = por %p310, %p311
      %p313 = scmp.ne.s32.totalorder %s301, %s302
      %p314 = scmp.eq.s32.totalorder %s30, 1
      %p315 = por %p313, %p314
      %p317 = scmp.ne.s32.totalorder %s302, %s316
      %p318 = scmp.eq.s32.totalorder %s30, 0
      %p319 = por %p317, %p318
      %s320 = ssub.s32 %s24, %s31
      %p321 = scmp.eq.s32.totalorder %s320, 0
      %s323 = sadd.s32 %s322, 1
      %s324 = scalar_select %p321, %s322, %s323
      %p327 = pneg %p321
      %p328 = scmp.eq.s32.totalorder %s24, 1
      %p329 = por %p327, %p328
      %p330 = scmp.ne.s32.totalorder %s322, %s325
      %p331 = scmp.eq.s32.totalorder %s24, 0
      %p332 = por %p330, %p331
      %p333 = scmp.ne.s32.totalorder %s322, %s325
      %p334 = scmp.eq.s32.totalorder %s29, 1
      %p335 = por %p333, %p334
      %p336 = scmp.ne.s32.totalorder %s325, %s326
      %p337 = scmp.eq.s32.totalorder %s29, 0
      %p338 = por %p336, %p337
      %p339 = scmp.ne.s32.totalorder %s325, %s326
      %p340 = scmp.eq.s32.totalorder %s30, 1
      %p341 = por %p339, %p340
      %p343 = scmp.ne.s32.totalorder %s326, %s342
      %p344 = scmp.eq.s32.totalorder %s30, 0
      %p345 = por %p343, %p344
      %p346 = scmp.le.s32.totalorder 1, %s24
      %p347 = scmp.lt.s32.totalorder %s24, 3
      %p348 = pnand %p346, %p347
      %p349 = pneg %p348
      // Predicated region
      $region9: #{tpu_custom_call.1} parent=5 // pred_check
        _
      $region10: #{tpu_custom_call.1} parent=5 // pred_check_branch
        %351 = sbr.rel (%p348) target = $region12
      $region11: #{tpu_custom_call.1} parent=5 // pred_region
        %s352 = ssub.s32 %s24, 1
        // Predicated region
        $region13: #{tpu_custom_call.1} parent=11 // pred_check
          %p353 = pneg %p123
        $region14: #{tpu_custom_call.1} parent=11 // pred_check_branch
          %355 = sbr.rel (%p353) target = $region16
        $region15: #{tpu_custom_call.1} parent=11 // pred_region
          _
        $region16: #{tpu_custom_call.1} parent=11 // pred_fallthru
          _
        // Predicated region
        $region17: #{tpu_custom_call.1} parent=11 // pred_check
          %p356 = pneg %p144
        $region18: #{tpu_custom_call.1} parent=11 // pred_check_branch
          %358 = sbr.rel (%p356) target = $region20
        $region19: #{tpu_custom_call.1} parent=11 // pred_region
          _
        $region20: #{tpu_custom_call.1} parent=11 // pred_fallthru
          _
        // Predicated region
        $region21: #{tpu_custom_call.1} parent=11 // pred_check
          %p359 = pneg %p165
        $region22: #{tpu_custom_call.1} parent=11 // pred_check_branch
          %361 = sbr.rel (%p359) target = $region24
        $region23: #{tpu_custom_call.1} parent=11 // pred_region
          _
        $region24: #{tpu_custom_call.1} parent=11 // pred_fallthru
          _
        // Predicated region
        $region25: #{tpu_custom_call.1} parent=11 // pred_check
          %p362 = pneg %p186
        $region26: #{tpu_custom_call.1} parent=11 // pred_check_branch
          %364 = sbr.rel (%p362) target = $region28
        $region27: #{tpu_custom_call.1} parent=11 // pred_region
          _
        $region28: #{tpu_custom_call.1} parent=11 // pred_fallthru
          _
        // Predicated region
        $region29: #{tpu_custom_call.1} parent=11 // pred_check
          %p365 = pneg %p207
        $region30: #{tpu_custom_call.1} parent=11 // pred_check_branch
          %367 = sbr.rel (%p365) target = $region32
        $region31: #{tpu_custom_call.1} parent=11 // pred_region
          %s369 = ssub.s32 3072, 3072
          %370 = vsyncadd [#allocation3], %s369
          %s371 = sshll.u32 [#allocation2], 4
          %s372 = int_to_ptr.vmem [resolvable:$true] %s371
          %377 = dma.hbm_to_vmem [thread:$0]  %s7, 3072, %s372, [#allocation3], 192, 192, 12
        $region32: #{tpu_custom_call.1} parent=11 // pred_fallthru
          _
        // Predicated region
        $region33: #{tpu_custom_call.1} parent=11 // pred_check
          %p378 = pneg %p228
        $region34: #{tpu_custom_call.1} parent=11 // pred_check_branch
          %380 = sbr.rel (%p378) target = $region36
        $region35: #{tpu_custom_call.1} parent=11 // pred_region
          _
        $region36: #{tpu_custom_call.1} parent=11 // pred_fallthru
          _
        // Predicated region
        $region37: #{tpu_custom_call.1} parent=11 // pred_check
          %p381 = pneg %p249
        $region38: #{tpu_custom_call.1} parent=11 // pred_check_branch
          %383 = sbr.rel (%p381) target = $region40
        $region39: #{tpu_custom_call.1} parent=11 // pred_region
          _
        $region40: #{tpu_custom_call.1} parent=11 // pred_fallthru
          _
        // Predicated region
        $region41: #{tpu_custom_call.1} parent=11 // pred_check
          %p384 = pneg %p270
        $region42: #{tpu_custom_call.1} parent=11 // pred_check_branch
          %386 = sbr.rel (%p384) target = $region44
        $region43: #{tpu_custom_call.1} parent=11 // pred_region
          _
        $region44: #{tpu_custom_call.1} parent=11 // pred_fallthru
          _
        // Predicated region
        $region45: #{tpu_custom_call.1} parent=11 // pred_check
          %p387 = pneg %p291
        $region46: #{tpu_custom_call.1} parent=11 // pred_check_branch
          %389 = sbr.rel (%p387) target = $region48
        $region47: #{tpu_custom_call.1} parent=11 // pred_region
          _
        $region48: #{tpu_custom_call.1} parent=11 // pred_fallthru
          _
        // Predicated region
        $region49: #{tpu_custom_call.1} parent=11 // pred_check
          %p390 = pneg %p312
        $region50: #{tpu_custom_call.1} parent=11 // pred_check_branch
          %392 = sbr.rel (%p390) target = $region52
        $region51: #{tpu_custom_call.1} parent=11 // pred_region
          %s394 = ssub.s32 2048, 2048
          %395 = vsyncadd [#allocation6], %s394
          %s396 = sshll.u32 [#allocation5], 4
          %s397 = int_to_ptr.vmem [resolvable:$true] %s396
          %402 = dma.hbm_to_vmem [thread:$0]  %s12, 2048, %s397, [#allocation6], 128, 128, 8
        $region52: #{tpu_custom_call.1} parent=11 // pred_fallthru
          _
      $region12: #{tpu_custom_call.1} parent=5 // pred_fallthru
        _
      %p403 = scmp.lt.s32.totalorder %s24, 2
      // Predicated region
      $region53: #{tpu_custom_call.1} parent=5 // pred_check
        %p404 = pneg %p403
      $region54: #{tpu_custom_call.1} parent=5 // pred_check_branch
        %406 = sbr.rel (%p404) target = $region56
      $region55: #{tpu_custom_call.1} parent=5 // pred_region
        // Predicated region
        $region57: #{tpu_custom_call.1} parent=55 // pred_check
          %p407 = pneg %p44
        $region58: #{tpu_custom_call.1} parent=55 // pred_check_branch
          %409 = sbr.rel (%p407) target = $region60
        $region59: #{tpu_custom_call.1} parent=55 // pred_region
          %p410 = scmp.lt.s32.totalorder %s24, 1
          %s411 = scalar_select %p410, %s24, 1
          %s412 = smul.addr %s411, 2
          %s413 = smul.addr %s412, 4
          %s414 = scalar_lea.vmem %s0, %s413
        $region60: #{tpu_custom_call.1} parent=55 // pred_fallthru
          _
        // Predicated region
        $region61: #{tpu_custom_call.1} parent=55 // pred_check
          %p415 = pneg %p70
        $region62: #{tpu_custom_call.1} parent=55 // pred_check_branch
          %417 = sbr.rel (%p415) target = $region64
        $region63: #{tpu_custom_call.1} parent=55 // pred_region
          %p418 = scmp.lt.s32.totalorder %s24, 1
          %s419 = scalar_select %p418, %s24, 1
          %s420 = scalar_lea.vmem %s1, %s419
        $region64: #{tpu_custom_call.1} parent=55 // pred_fallthru
          _
        // Predicated region
        $region65: #{tpu_custom_call.1} parent=55 // pred_check
          %p421 = pneg %p96
        $region66: #{tpu_custom_call.1} parent=55 // pred_check_branch
          %423 = sbr.rel (%p421) target = $region68
        $region67: #{tpu_custom_call.1} parent=55 // pred_region
          %p424 = scmp.lt.s32.totalorder %s24, 1
          %s425 = scalar_select %p424, %s24, 1
          %s426 = scalar_lea.vmem %s2, %s425
        $region68: #{tpu_custom_call.1} parent=55 // pred_fallthru
          _
      $region56: #{tpu_custom_call.1} parent=5 // pred_fallthru
        _
      %p427 = scmp.le.s32.totalorder 1, %s24
      %p428 = scmp.lt.s32.totalorder %s24, 3
      %p429 = pnand %p427, %p428
      %p430 = pneg %p429
      // Predicated region
      $region69: #{tpu_custom_call.1} parent=5 // pred_check
        _
      $region70: #{tpu_custom_call.1} parent=5 // pred_check_branch
        %432 = sbr.rel (%p429) target = $region72
      $region71: #{tpu_custom_call.1} parent=5 // pred_region
        %s433 = ssub.s32 %s24, 1
        // Predicated region
        $region73: #{tpu_custom_call.1} parent=71 // pred_check
          %p434 = pneg %p207
        $region74: #{tpu_custom_call.1} parent=71 // pred_check_branch
          %436 = sbr.rel (%p434) target = $region76
        $region75: #{tpu_custom_call.1} parent=71 // pred_region
          %437 = dma.done [#allocation3], 3072
        $region76: #{tpu_custom_call.1} parent=71 // pred_fallthru
          _
        // Predicated region
        $region77: #{tpu_custom_call.1} parent=71 // pred_check
          %p438 = pneg %p312
        $region78: #{tpu_custom_call.1} parent=71 // pred_check_branch
          %440 = sbr.rel (%p438) target = $region80
        $region79: #{tpu_custom_call.1} parent=71 // pred_region
          %441 = dma.done [#allocation6], 2048
        $region80: #{tpu_custom_call.1} parent=71 // pred_fallthru
          _
        %p442 = scmp.lt.s32.totalorder %s29, 1
        %s443 = scalar_select %p442, %s29, 1
        %s444 = smul.addr %s443, 2
        %s445 = smul.addr %s444, 4
        %s446 = scalar_lea.vmem %s0, %s445
        %p447 = pneg %p50
        %p448 = pneg %p47
        %p449 = scmp.lt.s32.totalorder %s29, 1
        %s450 = scalar_select %p449, %s29, 1
        %s451 = scalar_lea.vmem %s1, %s450
        %p452 = pneg %p76
        %p453 = pneg %p73
        %p454 = scmp.lt.s32.totalorder %s29, 1
        %s455 = scalar_select %p454, %s29, 1
        %s456 = scalar_lea.vmem %s2, %s455
        %p457 = pneg %p102
        %p458 = pneg %p99
        %p459 = pneg %p123
        %p460 = pneg %p120
        %p461 = pneg %p144
        %p462 = pneg %p141
        %p463 = pneg %p165
        %p464 = pneg %p162
        %p465 = pneg %p186
        %p466 = pneg %p183
        %p467 = pneg %p207
        %p468 = pneg %p204
        %p469 = pneg %p228
        %p470 = pneg %p225
        %p471 = pneg %p249
        %p472 = pneg %p246
        %p473 = pneg %p270
        %p474 = pneg %p267
        %p475 = pneg %p291
        %p476 = pneg %p288
        %p477 = pneg %p312
        %p478 = pneg %p309
        %p479 = pneg %p338
        %p480 = pneg %p335
        %s481 = sand.u32 %s325, 1
        %s482 = scalar_lea.sflag [#allocation4], %s481
        %s483 = sand.u32 %s325, 1
        %s484 = smul.addr %s483, 8
        %s485 = scalar_lea.vmem [#allocation7], %s484
        %p486 = scmp.lt.s32.totalorder %s29, 1
        %s487 = scalar_select %p486, %s29, 1
        %s488 = smul.addr %s487, 2
        %s489 = smul.addr %s488, 4
        %s490 = scalar_lea.vmem %s0, %s489
        %p491 = scmp.lt.s32.totalorder %s29, 1
        %s492 = scalar_select %p491, %s29, 1
        %s493 = scalar_lea.vmem %s1, %s492
        %p494 = scmp.lt.s32.totalorder %s29, 1
        %s495 = scalar_select %p494, %s29, 1
        %s496 = scalar_lea.vmem %s2, %s495
        %v498 = vld [vmem:[%s490] sm:$0xf]
        %v499 = vld [vmem:[%s490 + $0x4] sm:$0xf]
        %v500 = vlaneseq
        %v501 = vshrl.u32 %v500, 7
        %v502 = vadd.s32 %v501, 8
        %vm503 = vcmp.eq.s32.totalorder %v501, 0
        %vm504 = vcmp.eq.s32.totalorder %v502, 0
        %vm505 = vcmp.eq.s32.totalorder %v501, 15
        %vm506 = vcmp.eq.s32.totalorder %v502, 15
        %v507 = vld [vmem:[%s3] sm:$0xff]
        %v508 = vld [vmem:[%s3 + $0x8] sm:$0xff]
        %v511 = vunpack.c.l.b16 %v498
        %v512 = vunpack.c.l.b16 %v499
        %v513 = vpack.c.b16 %v512, %v511
        %v516 = vunpack.c.l.b16 %v507
        %v517 = vunpack.c.h.b16 %v507
        %v518 = vunpack.c.l.b16 %v508
        %v519 = vunpack.c.h.b16 %v508
        %v520 = vpack.c.b16 %v516, %v516
        %v521 = vpack.c.b16 %v517, %v517
        %v522 = vpack.c.b16 %v518, %v518
        %v523 = vpack.c.b16 %v519, %v519
        %vm524 = vcmask 64512
        %v526 = vsel %vm524, %v513, 0
        %vm528 = vcmask 1043456
        %v530 = vsel %vm528, %v520, 0
        %v533 = vsel %vm528, %v521, 0
        %v536 = vsel %vm528, %v522, 0
        %v539 = vsel %vm528, %v523, 0
        %541 = vmatprep.subr.bf16.mxu0 %v533
        %542 = vmatpush1.bf16.msra.mxu0 %v530
        %543 = vmatprep.subr.bf16.mxu0 0
        %544 = vmatpush1.bf16.msra.mxu0 0
        %545 = vmatprep.subr.bf16.mxu0 0
        %546 = vmatpush1.bf16.msra.mxu0 0
        %547 = vmatprep.subr.bf16.mxu0 0
        %548 = vmatpush1.bf16.msra.mxu0 0
        %549 = vmatprep.subr.bf16.mxu0 0
        %550 = vmatpush1.bf16.msra.mxu0 0
        %551 = vmatprep.subr.bf16.mxu0 0
        %552 = vmatpush1.bf16.msra.mxu0 0
        %553 = vmatprep.subr.bf16.mxu0 0
        %554 = vmatpush1.bf16.msra.mxu0 0
        %555 = vmatprep.subr.bf16.mxu0 0
        %556 = vmatpush1.bf16.msra.mxu0 0
        %557 = vmatprep.subr.bf16.mxu0 0
        %558 = vmatpush1.bf16.msra.mxu0 0
        %559 = vmatprep.subr.bf16.mxu0 0
        %560 = vmatpush1.bf16.msra.mxu0 0
        %561 = vmatprep.subr.bf16.mxu0 0
        %562 = vmatpush1.bf16.msra.mxu0 0
        %563 = vmatprep.subr.bf16.mxu0 0
        %564 = vmatpush1.bf16.msra.mxu0 0
        %565 = vmatprep.subr.bf16.mxu0 0
        %566 = vmatpush1.bf16.msra.mxu0 0
        %567 = vmatprep.subr.bf16.mxu0 0
        %568 = vmatpush1.bf16.msra.mxu0 0
        %569 = vmatprep.subr.bf16.mxu0 0
        %570 = vmatpush1.bf16.msra.mxu0 0
        %571 = vmatprep.subr.bf16.mxu0 0
        %572 = vmatpush1.bf16.msra.mxu0 0
        %573 = vmatprep.mubr.bf16.mxu0 0
        %574 = vmatmul.mubr.bf16.gmra.mrb[0].mxu0 %v526
        %v575 = vpop.f32.mrb[0].mxu0
        %v576 = vadd.f32 0.0, %v575
        %v577 = vpop.f32.mrb[0].mxu0
        %v578 = vadd.f32 0.0, %v577
        %v579 = vpop.f32.mrb[0].mxu0
        %v580 = vadd.f32 0.0, %v579
        %v581 = vpop.f32.mrb[0].mxu0
        %v582 = vadd.f32 0.0, %v581
        %583 = vdwg.mxu0
        %584 = vmatprep.subr.bf16.mxu0 %v539
        %585 = vmatpush1.bf16.msra.mxu0 %v536
        %586 = vmatprep.subr.bf16.mxu0 0
        %587 = vmatpush1.bf16.msra.mxu0 0
        %588 = vmatprep.subr.bf16.mxu0 0
        %589 = vmatpush1.bf16.msra.mxu0 0
        %590 = vmatprep.subr.bf16.mxu0 0
        %591 = vmatpush1.bf16.msra.mxu0 0
        %592 = vmatprep.subr.bf16.mxu0 0
        %593 = vmatpush1.bf16.msra.mxu0 0
        %594 = vmatprep.subr.bf16.mxu0 0
        %595 = vmatpush1.bf16.msra.mxu0 0
        %596 = vmatprep.subr.bf16.mxu0 0
        %597 = vmatpush1.bf16.msra.mxu0 0
        %598 = vmatprep.subr.bf16.mxu0 0
        %599 = vmatpush1.bf16.msra.mxu0 0
        %600 = vmatprep.subr.bf16.mxu0 0
        %601 = vmatpush1.bf16.msra.mxu0 0
        %602 = vmatprep.subr.bf16.mxu0 0
        %603 = vmatpush1.bf16.msra.mxu0 0
        %604 = vmatprep.subr.bf16.mxu0 0
        %605 = vmatpush1.bf16.msra.mxu0 0
        %606 = vmatprep.subr.bf16.mxu0 0
        %607 = vmatpush1.bf16.msra.mxu0 0
        %608 = vmatprep.subr.bf16.mxu0 0
        %609 = vmatpush1.bf16.msra.mxu0 0
        %610 = vmatprep.subr.bf16.mxu0 0
        %611 = vmatpush1.bf16.msra.mxu0 0
        %612 = vmatprep.subr.bf16.mxu0 0
        %613 = vmatpush1.bf16.msra.mxu0 0
        %614 = vmatprep.subr.bf16.mxu0 0
        %615 = vmatpush1.bf16.msra.mxu0 0
        %616 = vmatprep.mubr.bf16.mxu0 0
        %617 = vmatmul.mubr.bf16.gmra.mrb[0].mxu0 %v526
        %v618 = vpop.f32.mrb[0].mxu0
        %v619 = vadd.f32 0.0, %v618
        %v620 = vpop.f32.mrb[0].mxu0
        %v621 = vadd.f32 0.0, %v620
        %v622 = vpop.f32.mrb[0].mxu0
        %v623 = vadd.f32 0.0, %v622
        %v624 = vpop.f32.mrb[0].mxu0
        %v625 = vadd.f32 0.0, %v624
        %626 = vdwg.mxu0
        %v627 = vld [vmem:[%s11] sm:$0x1]
        %v629 = vlaneseq
        %v630 = vshrl.u32 %v629, 7
        %v631 = vsub.s32 0, %v630
        %v632 = vrot.slane %v627, %v631
        %v634 = vadd.f32 %v621, %v632
        %v635 = vadd.f32 %v625, %v632
        %v636 = vld [vmem:[%s4] sm:$0x1]
        %v637 = vrot.slane %v576, 7
        %v638 = vrot.slane %v580, 7
        %vm639 = vcmp.lt.s32.totalorder %v501, 1
        %v640 = vsel %vm639, %v637, %v638
        %v641 = vsel %vm639, %v638, %v637
        %v642 = vsel %vm503, 1, 0
        %v643 = vsel %vm504, 1, 0
        %vm644 = vcmp.eq.s32.totalorder %v642, 1
        %vm645 = vcmp.eq.s32.totalorder %v643, 1
        %v646 = vsel %vm644, 0.0, %v641
        %v647 = vsel %vm645, 0.0, %v640
        %v648 = vrot.slane %v619, 1
        %v649 = vrot.slane %v623, 1
        %vm650 = vcmp.lt.s32.totalorder %v501, 7
        %v651 = vsel %vm650, %v648, %v649
        %v652 = vsel %vm650, %v649, %v648
        %v653 = vsel %vm505, 1, 0
        %v654 = vsel %vm506, 1, 0
        %vm655 = vcmp.eq.s32.totalorder %v653, 1
        %vm656 = vcmp.eq.s32.totalorder %v654, 1
        %v657 = vsel %vm655, 0.0, %v651
        %v658 = vsel %vm656, 0.0, %v652
        %v659 = vadd.f32 %v646, %v578
        %v660 = vadd.f32 %v647, %v582
        %v661 = vadd.f32 %v659, %v657
        %v662 = vadd.f32 %v660, %v658
        %v664 = vlaneseq
        %v665 = vshrl.u32 %v664, 7
        %v666 = vsub.s32 0, %v665
        %v667 = vrot.slane %v636, %v666
        %v669 = vadd.f32 %v661, %v667
        %v670 = vadd.f32 %v662, %v667
        %v671 = vld [vmem:[%s5] sm:$0x1]
        %v672 = vld [vmem:[%s6] sm:$0x1]
        %v673 = vadd.f32 %v669, %v670
        %v674 = vrot.slane %v673, 4
        %v675 = vadd.f32 %v673, %v674
        %v676 = vrot.slane %v675, 2
        %v677 = vadd.f32 %v675, %v676
        %v678 = vrot.slane %v677, 1
        %v679 = vadd.f32 %v677, %v678
        %v680 = vmul.f32 %v669, %v669
        %v681 = vmul.f32 %v670, %v670
        %v682 = vadd.f32 %v680, %v681
        %v683 = vrot.slane %v682, 4
        %v684 = vadd.f32 %v682, %v683
        %v685 = vrot.slane %v684, 2
        %v686 = vadd.f32 %v684, %v685
        %v687 = vrot.slane %v686, 1
        %v688 = vadd.f32 %v686, %v687
        %vm689 = vcmask 1040384
        %v690 = vsel %vm689, %v679, %v688
        %v691 = vld [vmem:[#allocation5] sm:$0xff]
        %v692 = vld [vmem:[#allocation5 + $0x8] sm:$0xff]
        %v693 = vld [vmem:[#allocation5 + $0x10] sm:$0xff]
        %v694 = vld [vmem:[#allocation5 + $0x18] sm:$0xff]
        %v695 = vld [vmem:[#allocation5 + $0x20] sm:$0xff]
        %v696 = vld [vmem:[#allocation5 + $0x28] sm:$0xff]
        %v697 = vld [vmem:[#allocation5 + $0x30] sm:$0xff]
        %v698 = vld [vmem:[#allocation5 + $0x38] sm:$0xff]
        %v699 = vld [vmem:[#allocation5 + $0x40] sm:$0xff]
        %v700 = vld [vmem:[#allocation5 + $0x48] sm:$0xff]
        %v701 = vld [vmem:[#allocation5 + $0x50] sm:$0xff]
        %v702 = vld [vmem:[#allocation5 + $0x58] sm:$0xff]
        %v703 = vld [vmem:[#allocation5 + $0x60] sm:$0xff]
        %v704 = vld [vmem:[#allocation5 + $0x68] sm:$0xff]
        %v705 = vld [vmem:[#allocation5 + $0x70] sm:$0xff]
        %v706 = vld [vmem:[#allocation5 + $0x78] sm:$0xff]
        %707 = vmatprep.subr.mxu0 0.0
        %708 = vmatpush1.msra.mxu0 %v691
        %709 = vmatprep.subr.mxu0 0.0
        %710 = vmatpush1.msra.mxu0 %v692
        %711 = vmatprep.subr.mxu0 0.0
        %712 = vmatpush1.msra.mxu0 %v693
        %713 = vmatprep.subr.mxu0 0.0
        %714 = vmatpush1.msra.mxu0 %v694
        %715 = vmatprep.subr.mxu0 0.0
        %716 = vmatpush1.msra.mxu0 %v695
        %717 = vmatprep.subr.mxu0 0.0
        %718 = vmatpush1.msra.mxu0 %v696
        %719 = vmatprep.subr.mxu0 0.0
        %720 = vmatpush1.msra.mxu0 %v697
        %721 = vmatprep.subr.mxu0 0.0
        %722 = vmatpush1.msra.mxu0 %v698
        %723 = vmatprep.subr.mxu0 0.0
        %724 = vmatpush1.msra.mxu0 %v699
        %725 = vmatprep.subr.mxu0 0.0
        %726 = vmatpush1.msra.mxu0 %v700
        %727 = vmatprep.subr.mxu0 0.0
        %728 = vmatpush1.msra.mxu0 %v701
        %729 = vmatprep.subr.mxu0 0.0
        %730 = vmatpush1.msra.mxu0 %v702
        %731 = vmatprep.subr.mxu0 0.0
        %732 = vmatpush1.msra.mxu0 %v703
        %733 = vmatprep.subr.mxu0 0.0
        %734 = vmatpush1.msra.mxu0 %v704
        %735 = vmatprep.subr.mxu0 0.0
        %736 = vmatpush1.msra.mxu0 %v705
        %737 = vmatprep.subr.mxu0 0.0
        %738 = vmatpush1.msra.mxu0 %v706
        %739 = vmatprep.subr.mxu0 0.0
        %740 = vmatpush1.msra.mxu0 0.0
        %741 = vmatprep.subr.mxu0 0.0
        %742 = vmatpush1.msra.mxu0 0.0
        %743 = vmatprep.subr.mxu0 0.0
        %744 = vmatpush1.msra.mxu0 0.0
        %745 = vmatprep.subr.mxu0 0.0
        %746 = vmatpush1.msra.mxu0 0.0
        %747 = vmatprep.subr.mxu0 0.0
        %748 = vmatpush1.msra.mxu0 0.0
        %749 = vmatprep.subr.mxu0 0.0
        %750 = vmatpush1.msra.mxu0 0.0
        %751 = vmatprep.subr.mxu0 0.0
        %752 = vmatpush1.msra.mxu0 0.0
        %753 = vmatprep.subr.mxu0 0.0
        %754 = vmatpush1.msra.mxu0 0.0
        %755 = vmatprep.subr.mxu0 0.0
        %756 = vmatpush1.msra.mxu0 0.0
        %757 = vmatprep.subr.mxu0 0.0
        %758 = vmatpush1.msra.mxu0 0.0
        %759 = vmatprep.subr.mxu0 0.0
        %760 = vmatpush1.msra.mxu0 0.0
        %761 = vmatprep.subr.mxu0 0.0
        %762 = vmatpush1.msra.mxu0 0.0
        %763 = vmatprep.subr.mxu0 0.0
        %764 = vmatpush1.msra.mxu0 0.0
        %765 = vmatprep.subr.mxu0 0.0
        %766 = vmatpush1.msra.mxu0 0.0
        %767 = vmatprep.subr.mxu0 0.0
        %768 = vmatpush1.msra.mxu0 0.0
        %769 = vmatprep.subr.mxu0 0.0
        %770 = vmatpush1.msra.mxu0 0.0
        %771 = vmatprep.mubr.f32.mxu0 0.0
        %772 = vmatmul.mubr.f32.gmra.mrb[0].mxu0 %v690
        %v773 = vpop.f32.mrb[0].mxu0
        %v774 = vadd.f32 0.0, %v773
        %v775 = vpop.f32.mrb[0].mxu0
        %776 = vdwg.mxu0
        %v777 = vmul.f32 %v774, %v774
        %v779 = vrot.slane %v777, 7
        %v781 = vsub.f32 %v774, %v779
        %v782 = vlaneseq
        %v783 = vshrl.u32 %v782, 7
        %v784 = vsub.s32 0, %v783
        %v785 = vrot.slane %v774, %v784
        %v786 = vsub.f32 %v669, %v785
        %v787 = vsub.f32 %v670, %v785
        %v788 = vadd.f32 %v781, 1e-05
        %v789 = vrsqrt.pop %v788
        %v790 = vlaneseq
        %v791 = vshrl.u32 %v790, 7
        %v792 = vsub.s32 1, %v791
        %v793 = vrot.slane %v789, %v792
        %v794 = vmul.f32 %v786, %v793
        %v795 = vmul.f32 %v787, %v793
        %v797 = vlaneseq
        %v798 = vshrl.u32 %v797, 7
        %v799 = vsub.s32 0, %v798
        %v800 = vrot.slane %v671, %v799
        %v802 = vmul.f32 %v794, %v800
        %v803 = vmul.f32 %v795, %v800
        %v805 = vlaneseq
        %v806 = vshrl.u32 %v805, 7
        %v807 = vsub.s32 0, %v806
        %v808 = vrot.slane %v672, %v807
        %v810 = vadd.f32 %v802, %v808
        %v811 = vadd.f32 %v803, %v808
        %v812 = vld [vmem:[%s493] sm:$0x1]
        %v814 = vlaneseq
        %v815 = vshrl.u32 %v814, 7
        %v816 = vsub.s32 0, %v815
        %v817 = vrot.slane %v812, %v816
        %v819 = vmul.f32 %v810, %v817
        %v820 = vmul.f32 %v811, %v817
        %v821 = vld [vmem:[%s496] sm:$0x1]
        %v823 = vlaneseq
        %v824 = vshrl.u32 %v823, 7
        %v825 = vsub.s32 0, %v824
        %v826 = vrot.slane %v821, %v825
        %v828 = vadd.f32 %v819, %v826
        %v829 = vadd.f32 %v820, %v826
        %v830 = vxor.u32 %v828, 2147483648
        %v831 = vxor.u32 %v829, 2147483648
        %v832 = vmul.f32 %v830, 1.442695
        %v833 = vpow.pop %v832
        %v834 = vmul.f32 %v831, 1.442695
        %v835 = vpow.pop %v834
        %v836 = vadd.f32 %v833, 1.0
        %v837 = vadd.f32 %v835, 1.0
        %v838 = vrcp.pop %v836
        %v839 = vmul.f32 1.0, %v838
        %v840 = vrcp.pop %v837
        %v841 = vmul.f32 1.0, %v840
        %v842 = vmul.f32 %v828, %v839
        %v843 = vmul.f32 %v829, %v841
        %v844 = vpack.c.bf16 %v843, %v842
        %v845 = vld [vmem:[#allocation2] sm:$0xff]
        %v846 = vld [vmem:[#allocation2 + $0x8] sm:$0xf]
        %v847 = vld [vmem:[#allocation2 + $0xc] sm:$0xff]
        %v848 = vld [vmem:[#allocation2 + $0x14] sm:$0xf]
        %v849 = vld [vmem:[#allocation2 + $0x18] sm:$0xff]
        %v850 = vld [vmem:[#allocation2 + $0x20] sm:$0xf]
        %v851 = vld [vmem:[#allocation2 + $0x24] sm:$0xff]
        %v852 = vld [vmem:[#allocation2 + $0x2c] sm:$0xf]
        %v853 = vld [vmem:[#allocation2 + $0x30] sm:$0xff]
        %v854 = vld [vmem:[#allocation2 + $0x38] sm:$0xf]
        %v855 = vld [vmem:[#allocation2 + $0x3c] sm:$0xff]
        %v856 = vld [vmem:[#allocation2 + $0x44] sm:$0xf]
        %v857 = vld [vmem:[#allocation2 + $0x48] sm:$0xff]
        %v858 = vld [vmem:[#allocation2 + $0x50] sm:$0xf]
        %v859 = vld [vmem:[#allocation2 + $0x54] sm:$0xff]
        %v860 = vld [vmem:[#allocation2 + $0x5c] sm:$0xf]
        %v861 = vld [vmem:[#allocation2 + $0x60] sm:$0xff]
        %v862 = vld [vmem:[#allocation2 + $0x68] sm:$0xf]
        %v863 = vld [vmem:[#allocation2 + $0x6c] sm:$0xff]
        %v864 = vld [vmem:[#allocation2 + $0x74] sm:$0xf]
        %v865 = vld [vmem:[#allocation2 + $0x78] sm:$0xff]
        %v866 = vld [vmem:[#allocation2 + $0x80] sm:$0xf]
        %v867 = vld [vmem:[#allocation2 + $0x84] sm:$0xff]
        %v868 = vld [vmem:[#allocation2 + $0x8c] sm:$0xf]
        %v869 = vld [vmem:[#allocation2 + $0x90] sm:$0xff]
        %v870 = vld [vmem:[#allocation2 + $0x98] sm:$0xf]
        %v871 = vld [vmem:[#allocation2 + $0x9c] sm:$0xff]
        %v872 = vld [vmem:[#allocation2 + $0xa4] sm:$0xf]
        %v873 = vld [vmem:[#allocation2 + $0xa8] sm:$0xff]
        %v874 = vld [vmem:[#allocation2 + $0xb0] sm:$0xf]
        %v875 = vld [vmem:[#allocation2 + $0xb4] sm:$0xff]
        %v876 = vld [vmem:[#allocation2 + $0xbc] sm:$0xf]
        %v909 = vunpack.c.l.b16 %v845
        %v910 = vunpack.c.h.b16 %v845
        %v911 = vunpack.c.l.b16 %v846
        %v912 = vunpack.c.l.b16 %v847
        %v913 = vunpack.c.h.b16 %v847
        %v914 = vunpack.c.l.b16 %v848
        %v915 = vunpack.c.l.b16 %v849
        %v916 = vunpack.c.h.b16 %v849
        %v917 = vunpack.c.l.b16 %v850
        %v918 = vunpack.c.l.b16 %v851
        %v919 = vunpack.c.h.b16 %v851
        %v920 = vunpack.c.l.b16 %v852
        %v921 = vunpack.c.l.b16 %v853
        %v922 = vunpack.c.h.b16 %v853
        %v923 = vunpack.c.l.b16 %v854
        %v924 = vunpack.c.l.b16 %v855
        %v925 = vunpack.c.h.b16 %v855
        %v926 = vunpack.c.l.b16 %v856
        %v927 = vunpack.c.l.b16 %v857
        %v928 = vunpack.c.h.b16 %v857
        %v929 = vunpack.c.l.b16 %v858
        %v930 = vunpack.c.l.b16 %v859
        %v931 = vunpack.c.h.b16 %v859
        %v932 = vunpack.c.l.b16 %v860
        %v933 = vunpack.c.l.b16 %v861
        %v934 = vunpack.c.h.b16 %v861
        %v935 = vunpack.c.l.b16 %v862
        %v936 = vunpack.c.l.b16 %v863
        %v937 = vunpack.c.h.b16 %v863
        %v938 = vunpack.c.l.b16 %v864
        %v939 = vunpack.c.l.b16 %v865
        %v940 = vunpack.c.h.b16 %v865
        %v941 = vunpack.c.l.b16 %v866
        %v942 = vunpack.c.l.b16 %v867
        %v943 = vunpack.c.h.b16 %v867
        %v944 = vunpack.c.l.b16 %v868
        %v945 = vunpack.c.l.b16 %v869
        %v946 = vunpack.c.h.b16 %v869
        %v947 = vunpack.c.l.b16 %v870
        %v948 = vunpack.c.l.b16 %v871
        %v949 = vunpack.c.h.b16 %v871
        %v950 = vunpack.c.l.b16 %v872
        %v951 = vunpack.c.l.b16 %v873
        %v952 = vunpack.c.h.b16 %v873
        %v953 = vunpack.c.l.b16 %v874
        %v954 = vunpack.c.l.b16 %v875
        %v955 = vunpack.c.h.b16 %v875
        %v956 = vunpack.c.l.b16 %v876
        %v957 = vpack.c.b16 %v912, %v909
        %v958 = vpack.c.b16 %v913, %v910
        %v959 = vpack.c.b16 %v914, %v911
        %v960 = vpack.c.b16 %v918, %v915
        %v961 = vpack.c.b16 %v919, %v916
        %v962 = vpack.c.b16 %v920, %v917
        %v963 = vpack.c.b16 %v924, %v921
        %v964 = vpack.c.b16 %v925, %v922
        %v965 = vpack.c.b16 %v926, %v923
        %v966 = vpack.c.b16 %v930, %v927
        %v967 = vpack.c.b16 %v931, %v928
        %v968 = vpack.c.b16 %v932, %v929
        %v969 = vpack.c.b16 %v936, %v933
        %v970 = vpack.c.b16 %v937, %v934
        %v971 = vpack.c.b16 %v938, %v935
        %v972 = vpack.c.b16 %v942, %v939
        %v973 = vpack.c.b16 %v943, %v940
        %v974 = vpack.c.b16 %v944, %v941
        %v975 = vpack.c.b16 %v948, %v945
        %v976 = vpack.c.b16 %v949, %v946
        %v977 = vpack.c.b16 %v950, %v947
        %v978 = vpack.c.b16 %v954, %v951
        %v979 = vpack.c.b16 %v955, %v952
        %v980 = vpack.c.b16 %v956, %v953
        %1005 = vmatprep.subr.bf16.mxu0 %v958
        %1006 = vmatpush1.bf16.msra.mxu0 %v957
        %1007 = vmatprep.subr.bf16.mxu0 %v961
        %1008 = vmatpush1.bf16.msra.mxu0 %v960
        %1009 = vmatprep.subr.bf16.mxu0 %v964
        %1010 = vmatpush1.bf16.msra.mxu0 %v963
        %1011 = vmatprep.subr.bf16.mxu0 %v967
        %1012 = vmatpush1.bf16.msra.mxu0 %v966
        %1013 = vmatprep.subr.bf16.mxu0 %v970
        %1014 = vmatpush1.bf16.msra.mxu0 %v969
        %1015 = vmatprep.subr.bf16.mxu0 %v973
        %1016 = vmatpush1.bf16.msra.mxu0 %v972
        %1017 = vmatprep.subr.bf16.mxu0 %v976
        %1018 = vmatpush1.bf16.msra.mxu0 %v975
        %1019 = vmatprep.subr.bf16.mxu0 %v979
        %1020 = vmatpush1.bf16.msra.mxu0 %v978
        %1021 = vmatprep.subr.bf16.mxu0 0
        %1022 = vmatpush1.bf16.msra.mxu0 0
        %1023 = vmatprep.subr.bf16.mxu0 0
        %1024 = vmatpush1.bf16.msra.mxu0 0
        %1025 = vmatprep.subr.bf16.mxu0 0
        %1026 = vmatpush1.bf16.msra.mxu0 0
        %1027 = vmatprep.subr.bf16.mxu0 0
        %1028 = vmatpush1.bf16.msra.mxu0 0
        %1029 = vmatprep.subr.bf16.mxu0 0
        %1030 = vmatpush1.bf16.msra.mxu0 0
        %1031 = vmatprep.subr.bf16.mxu0 0
        %1032 = vmatpush1.bf16.msra.mxu0 0
        %1033 = vmatprep.subr.bf16.mxu0 0
        %1034 = vmatpush1.bf16.msra.mxu0 0
        %1035 = vmatprep.subr.bf16.mxu0 0
        %1036 = vmatpush1.bf16.msra.mxu0 0
        %1037 = vmatprep.mubr.bf16.mxu0 0
        %1038 = vmatmul.mubr.bf16.gmra.mrb[0].mxu0 %v844
        %v1039 = vpop.f32.mrb[0].mxu0
        %v1040 = vadd.f32 0.0, %v1039
        %v1041 = vpop.f32.mrb[0].mxu0
        %v1042 = vadd.f32 0.0, %v1041
        %v1043 = vpop.f32.mrb[0].mxu0
        %v1044 = vadd.f32 0.0, %v1043
        %v1045 = vpop.f32.mrb[0].mxu0
        %v1046 = vadd.f32 0.0, %v1045
        %1047 = vdwg.mxu0
        %1048 = vmatprep.subr.bf16.mxu0 0
        %1049 = vmatpush1.bf16.msra.mxu0 %v959
        %1050 = vmatprep.subr.bf16.mxu0 0
        %1051 = vmatpush1.bf16.msra.mxu0 %v962
        %1052 = vmatprep.subr.bf16.mxu0 0
        %1053 = vmatpush1.bf16.msra.mxu0 %v965
        %1054 = vmatprep.subr.bf16.mxu0 0
        %1055 = vmatpush1.bf16.msra.mxu0 %v968
        %1056 = vmatprep.subr.bf16.mxu0 0
        %1057 = vmatpush1.bf16.msra.mxu0 %v971
        %1058 = vmatprep.subr.bf16.mxu0 0
        %1059 = vmatpush1.bf16.msra.mxu0 %v974
        %1060 = vmatprep.subr.bf16.mxu0 0
        %1061 = vmatpush1.bf16.msra.mxu0 %v977
        %1062 = vmatprep.subr.bf16.mxu0 0
        %1063 = vmatpush1.bf16.msra.mxu0 %v980
        %1064 = vmatprep.subr.bf16.mxu0 0
        %1065 = vmatpush1.bf16.msra.mxu0 0
        %1066 = vmatprep.subr.bf16.mxu0 0
        %1067 = vmatpush1.bf16.msra.mxu0 0
        %1068 = vmatprep.subr.bf16.mxu0 0
        %1069 = vmatpush1.bf16.msra.mxu0 0
        %1070 = vmatprep.subr.bf16.mxu0 0
        %1071 = vmatpush1.bf16.msra.mxu0 0
        %1072 = vmatprep.subr.bf16.mxu0 0
        %1073 = vmatpush1.bf16.msra.mxu0 0
        %1074 = vmatprep.subr.bf16.mxu0 0
        %1075 = vmatpush1.bf16.msra.mxu0 0
        %1076 = vmatprep.subr.bf16.mxu0 0
        %1077 = vmatpush1.bf16.msra.mxu0 0
        %1078 = vmatprep.subr.bf16.mxu0 0
        %1079 = vmatpush1.bf16.msra.mxu0 0
        %1080 = vmatprep.mubr.bf16.mxu0 0
        %1081 = vmatmul.mubr.bf16.gmra.mrb[0].mxu0 %v844
        %v1082 = vpop.f32.mrb[0].mxu0
        %v1083 = vadd.f32 0.0, %v1082
        %v1084 = vpop.f32.mrb[0].mxu0
        %v1085 = vpop.f32.mrb[0].mxu0
        %v1086 = vadd.f32 0.0, %v1085
        %v1087 = vpop.f32.mrb[0].mxu0
        %1088 = vdwg.mxu0
        %v1089 = vld [vmem:[%s8] sm:$0x1]
        %v1090 = vrot.slane %v1040, 7
        %v1091 = vrot.slane %v1044, 7
        %v1092 = vsel %vm639, %v1090, %v1091
        %v1093 = vsel %vm639, %v1091, %v1090
        %v1094 = vsel %vm644, 0.0, %v1093
        %v1095 = vsel %vm645, 0.0, %v1092
        %v1096 = vrot.slane %v1083, 1
        %v1097 = vrot.slane %v1086, 1
        %v1098 = vsel %vm650, %v1096, %v1097
        %v1099 = vsel %vm650, %v1097, %v1096
        %v1100 = vsel %vm655, 0.0, %v1098
        %v1101 = vsel %vm656, 0.0, %v1099
        %v1102 = vadd.f32 %v1094, %v1042
        %v1103 = vadd.f32 %v1095, %v1046
        %v1104 = vadd.f32 %v1102, %v1100
        %v1105 = vadd.f32 %v1103, %v1101
        %v1107 = vlaneseq
        %v1108 = vshrl.u32 %v1107, 7
        %v1109 = vsub.s32 0, %v1108
        %v1110 = vrot.slane %v1089, %v1109
        %v1112 = vadd.f32 %v1104, %v1110
        %v1113 = vadd.f32 %v1105, %v1110
        %v1114 = vld [vmem:[%s9] sm:$0x1]
        %v1115 = vld [vmem:[%s10] sm:$0x1]
        %v1116 = vadd.f32 %v1112, %v1113
        %v1117 = vrot.slane %v1116, 4
        %v1118 = vadd.f32 %v1116, %v1117
        %v1119 = vrot.slane %v1118, 2
        %v1120 = vadd.f32 %v1118, %v1119
        %v1121 = vrot.slane %v1120, 1
        %v1122 = vadd.f32 %v1120, %v1121
        %v1123 = vmul.f32 %v1112, %v1112
        %v1124 = vmul.f32 %v1113, %v1113
        %v1125 = vadd.f32 %v1123, %v1124
        %v1126 = vrot.slane %v1125, 4
        %v1127 = vadd.f32 %v1125, %v1126
        %v1128 = vrot.slane %v1127, 2
        %v1129 = vadd.f32 %v1127, %v1128
        %v1130 = vrot.slane %v1129, 1
        %v1131 = vadd.f32 %v1129, %v1130
        %v1132 = vsel %vm689, %v1122, %v1131
        %1133 = vmatprep.subr.mxu0 0.0
        %1134 = vmatpush1.msra.mxu0 %v691
        %1135 = vmatprep.subr.mxu0 0.0
        %1136 = vmatpush1.msra.mxu0 %v692
        %1137 = vmatprep.subr.mxu0 0.0
        %1138 = vmatpush1.msra.mxu0 %v693
        %1139 = vmatprep.subr.mxu0 0.0
        %1140 = vmatpush1.msra.mxu0 %v694
        %1141 = vmatprep.subr.mxu0 0.0
        %1142 = vmatpush1.msra.mxu0 %v695
        %1143 = vmatprep.subr.mxu0 0.0
        %1144 = vmatpush1.msra.mxu0 %v696
        %1145 = vmatprep.subr.mxu0 0.0
        %1146 = vmatpush1.msra.mxu0 %v697
        %1147 = vmatprep.subr.mxu0 0.0
        %1148 = vmatpush1.msra.mxu0 %v698
        %1149 = vmatprep.subr.mxu0 0.0
        %1150 = vmatpush1.msra.mxu0 %v699
        %1151 = vmatprep.subr.mxu0 0.0
        %1152 = vmatpush1.msra.mxu0 %v700
        %1153 = vmatprep.subr.mxu0 0.0
        %1154 = vmatpush1.msra.mxu0 %v701
        %1155 = vmatprep.subr.mxu0 0.0
        %1156 = vmatpush1.msra.mxu0 %v702
        %1157 = vmatprep.subr.mxu0 0.0
        %1158 = vmatpush1.msra.mxu0 %v703
        %1159 = vmatprep.subr.mxu0 0.0
        %1160 = vmatpush1.msra.mxu0 %v704
        %1161 = vmatprep.subr.mxu0 0.0
        %1162 = vmatpush1.msra.mxu0 %v705
        %1163 = vmatprep.subr.mxu0 0.0
        %1164 = vmatpush1.msra.mxu0 %v706
        %1165 = vmatprep.subr.mxu0 0.0
        %1166 = vmatpush1.msra.mxu0 0.0
        %1167 = vmatprep.subr.mxu0 0.0
        %1168 = vmatpush1.msra.mxu0 0.0
        %1169 = vmatprep.subr.mxu0 0.0
        %1170 = vmatpush1.msra.mxu0 0.0
        %1171 = vmatprep.subr.mxu0 0.0
        %1172 = vmatpush1.msra.mxu0 0.0
        %1173 = vmatprep.subr.mxu0 0.0
        %1174 = vmatpush1.msra.mxu0 0.0
        %1175 = vmatprep.subr.mxu0 0.0
        %1176 = vmatpush1.msra.mxu0 0.0
        %1177 = vmatprep.subr.mxu0 0.0
        %1178 = vmatpush1.msra.mxu0 0.0
        %1179 = vmatprep.subr.mxu0 0.0
        %1180 = vmatpush1.msra.mxu0 0.0
        %1181 = vmatprep.subr.mxu0 0.0
        %1182 = vmatpush1.msra.mxu0 0.0
        %1183 = vmatprep.subr.mxu0 0.0
        %1184 = vmatpush1.msra.mxu0 0.0
        %1185 = vmatprep.subr.mxu0 0.0
        %1186 = vmatpush1.msra.mxu0 0.0
        %1187 = vmatprep.subr.mxu0 0.0
        %1188 = vmatpush1.msra.mxu0 0.0
        %1189 = vmatprep.subr.mxu0 0.0
        %1190 = vmatpush1.msra.mxu0 0.0
        %1191 = vmatprep.subr.mxu0 0.0
        %1192 = vmatpush1.msra.mxu0 0.0
        %1193 = vmatprep.subr.mxu0 0.0
        %1194 = vmatpush1.msra.mxu0 0.0
        %1195 = vmatprep.subr.mxu0 0.0
        %1196 = vmatpush1.msra.mxu0 0.0
        %1197 = vmatprep.mubr.f32.mxu0 0.0
        %1198 = vmatmul.mubr.f32.gmra.mrb[0].mxu0 %v1132
        %v1199 = vpop.f32.mrb[0].mxu0
        %v1200 = vadd.f32 0.0, %v1199
        %v1201 = vpop.f32.mrb[0].mxu0
        %1202 = vdwg.mxu0
        %v1203 = vmul.f32 %v1200, %v1200
        %v1205 = vrot.slane %v1203, 7
        %v1207 = vsub.f32 %v1200, %v1205
        %v1208 = vlaneseq
        %v1209 = vshrl.u32 %v1208, 7
        %v1210 = vsub.s32 0, %v1209
        %v1211 = vrot.slane %v1200, %v1210
        %v1212 = vsub.f32 %v1112, %v1211
        %v1213 = vsub.f32 %v1113, %v1211
        %v1214 = vadd.f32 %v1207, 1e-05
        %v1215 = vrsqrt.pop %v1214
        %v1216 = vlaneseq
        %v1217 = vshrl.u32 %v1216, 7
        %v1218 = vsub.s32 1, %v1217
        %v1219 = vrot.slane %v1215, %v1218
        %v1220 = vmul.f32 %v1212, %v1219
        %v1221 = vmul.f32 %v1213, %v1219
        %v1223 = vlaneseq
        %v1224 = vshrl.u32 %v1223, 7
        %v1225 = vsub.s32 0, %v1224
        %v1226 = vrot.slane %v1114, %v1225
        %v1228 = vmul.f32 %v1220, %v1226
        %v1229 = vmul.f32 %v1221, %v1226
        %v1231 = vlaneseq
        %v1232 = vshrl.u32 %v1231, 7
        %v1233 = vsub.s32 0, %v1232
        %v1234 = vrot.slane %v1115, %v1233
        %v1236 = vadd.f32 %v1228, %v1234
        %v1237 = vadd.f32 %v1229, %v1234
        %v1238 = vxor.u32 %v1236, 2147483648
        %v1239 = vxor.u32 %v1237, 2147483648
        %v1240 = vmul.f32 %v1238, 1.442695
        %v1241 = vpow.pop %v1240
        %v1242 = vmul.f32 %v1239, 1.442695
        %v1243 = vpow.pop %v1242
        %v1244 = vadd.f32 %v1241, 1.0
        %v1245 = vadd.f32 %v1243, 1.0
        %v1246 = vrcp.pop %v1244
        %v1247 = vmul.f32 1.0, %v1246
        %v1248 = vrcp.pop %v1245
        %v1249 = vmul.f32 1.0, %v1248
        %v1250 = vmul.f32 %v1236, %v1247
        %v1251 = vmul.f32 %v1237, %v1249
        %v1252 = vadd.f32 %v1250, %v634
        %v1253 = vadd.f32 %v1251, %v635
        %v1254 = vpack.c.bf16 %v1253, %v1252
        %v1256 = vunpack.c.l.b16 %v1254
        %v1257 = vunpack.c.h.b16 %v1254
        %v1258 = vpack.c.b16 %v1256, %v1256
        %v1259 = vpack.c.b16 %v1257, %v1257
        %1262 = vst [vmem:[%s485] sm:$0xf] %v1258
        %1263 = vst [vmem:[%s485 + $0x4] sm:$0xf] %v1259
        %s1264 = sand.u32 %s325, 1
        %s1265 = scalar_lea.sflag [#allocation4], %s1264
        %s1266 = sand.u32 %s325, 1
        %s1267 = smul.addr %s1266, 8
        %s1268 = scalar_lea.vmem [#allocation7], %s1267
        // Predicated region
        $region81: #{tpu_custom_call.1} parent=71 // pred_check
          %p1269 = pneg %p335
        $region82: #{tpu_custom_call.1} parent=71 // pred_check_branch
          %1271 = sbr.rel (%p1269) target = $region84
        $region83: #{tpu_custom_call.1} parent=71 // pred_region
          %s1273 = ssub.s32 128, 128
          %1274 = vsyncadd %s1265, %s1273
          %s1275 = smul.addr %s29, 2
          %s1276 = smul.addr %s1275, 64
          %s1277 = scalar_lea.hbm %s13, %s1276
          %s1278 = sshll.u32 %s1268, 4
          %s1279 = int_to_ptr.vmem [resolvable:$true] %s1278
          %1284 = dma.vmem_to_hbm [thread:$0]  %s1279, 128, %s1277, %s1265, 64, 64, 4
        $region84: #{tpu_custom_call.1} parent=71 // pred_fallthru
          _
      $region72: #{tpu_custom_call.1} parent=5 // pred_fallthru
        _
      %p1285 = scmp.le.s32.totalorder 2, %s24
      // Predicated region
      $region85: #{tpu_custom_call.1} parent=5 // pred_check
        %p1286 = pneg %p1285
      $region86: #{tpu_custom_call.1} parent=5 // pred_check_branch
        %1288 = sbr.rel (%p1286) target = $region88
      $region87: #{tpu_custom_call.1} parent=5 // pred_region
        %s1289 = ssub.s32 %s24, 2
        // Predicated region
        $region89: #{tpu_custom_call.1} parent=87 // pred_check
          %p1290 = pneg %p341
        $region90: #{tpu_custom_call.1} parent=87 // pred_check_branch
          %1292 = sbr.rel (%p1290) target = $region92
        $region91: #{tpu_custom_call.1} parent=87 // pred_region
          %s1293 = sand.u32 %s326, 1
          %s1294 = scalar_lea.sflag [#allocation4], %s1293
          %s1295 = sand.u32 %s326, 1
          %s1296 = smul.addr %s1295, 8
          %s1297 = scalar_lea.vmem [#allocation7], %s1296
          %1298 = dma.done %s1294, 128
        $region92: #{tpu_custom_call.1} parent=87 // pred_fallthru
          _
      $region88: #{tpu_custom_call.1} parent=5 // pred_fallthru
        _
    $region6: #{tpu_custom_call.1} parent=1 // loop_footer
      %s28 = sadd.s32 1, %s24
    $region7: #{tpu_custom_call.1} parent=1 // loop_footer_branch
      %23 = sbr.rel target = $region3
    $region8: #{tpu_custom_call.1} parent=1 // loop_exit
      _
    %1299 = vsyncpa [#allocation3], 1
    %s1300 = scalar_lea.sflag [#allocation3], 1
    %1301 = vsyncpa %s1300, 1
    %1302 = vsyncpa [#allocation6], 1
    %1303 = vsyncpa [#allocation4], 1
    %s1304 = scalar_lea.sflag [#allocation4], 1
    %1305 = vsyncpa %s1304, 1

// kernel: tpu_custom_call.1
$region0: #{tpu_custom_call.1}
  #allocation0 [shape = 'u32[]', space=smem, size = 0x4, offset = 0x4, fixed_abs, tag = 'smem constant byte address 0x4 - core index']
  #allocation1 [shape = 'u32[144,128]{1,0:T(1,128)}', space=vmem, size = 0x12000, scoped, tag = 'internal scratch']
  %s0 = inlined_call_operand.vmem [shape: bf16[2,16,8], index: 0, kind: input, shape index: {}]
  %s1 = inlined_call_operand.vmem [shape: f32[2,1,128], index: 1, kind: input, shape index: {}]
  %s2 = inlined_call_operand.vmem [shape: f32[2,1,128], index: 2, kind: input, shape index: {}]
  %s3 = inlined_call_operand.vmem [shape: bf16[8,512], index: 3, kind: input, shape index: {}]
  %s4 = inlined_call_operand.vmem [shape: f32[1,128], index: 4, kind: input, shape index: {}]
  %s5 = inlined_call_operand.vmem [shape: f32[1,128], index: 5, kind: input, shape index: {}]
  %s6 = inlined_call_operand.vmem [shape: f32[1,128], index: 6, kind: input, shape index: {}]
  %s7 = inlined_call_operand.hbm [shape: bf16[128,384], index: 7, kind: input, shape index: {}]
  %s8 = inlined_call_operand.vmem [shape: f32[1,128], index: 8, kind: input, shape index: {}]
  %s9 = inlined_call_operand.vmem [shape: f32[1,128], index: 9, kind: input, shape index: {}]
  %s10 = inlined_call_operand.vmem [shape: f32[1,128], index: 10, kind: input, shape index: {}]
  %s11 = inlined_call_operand.vmem [shape: f32[1,128], index: 11, kind: input, shape index: {}]
  %s12 = inlined_call_operand.hbm [shape: f32[128,128], index: 12, kind: input, shape index: {}]
  %s13 = inlined_call_operand.hbm [shape: bf16[2,16,128], index: 13, kind: output, shape index: {}]
  %s14 = sld [smem:[#allocation0]]
  $region93: #{tpu_custom_call.1} parent=0
    _
  %s16 = ssub.s32 1, %s14
  %s17 = scalar_select 0, %s16, %s14
  $region1: #{tpu_custom_call.1} parent=0
    #allocation2 [shape = 'u8[98304]{0}', space=vmem, size = 0x18000, scoped, tag = 'input window, operand 7, single buffered']
    #allocation3 [shape = 's32[2]{0}', space=sflag, size = 0x8, scoped, tag = 'scoped memory for tpu_custom_call.1']
    #allocation4 [shape = 's32[2]{0}', space=sflag, size = 0x8, scoped, tag = 'scoped memory for tpu_custom_call.1']
    #allocation5 [shape = 'u8[65536]{0}', space=vmem, size = 0x10000, scoped, tag = 'input window, operand 12, single buffered']
    #allocation6 [shape = 's32[1]{0}', space=sflag, size = 0x4, scoped, tag = 'scoped memory for tpu_custom_call.1']
    #allocation7 [shape = 'u8[8192]{0}', space=vmem, size = 0x2000, scoped, tag = 'output window, operand 0']
    %18 = vsyncpa [#allocation3], 0
    %19 = vsyncpa [#allocation6], 0
    %20 = vsyncpa [#allocation4], 0
    %s21 = scalar_lea.sflag [#allocation4], 1
    %22 = vsyncpa %s21, 0
    loop: start=0, step=1, limit=4
    $region2: #{tpu_custom_call.1} parent=1 // loop_pre_header
      _
    $region3: #{tpu_custom_call.1} parent=1 // loop_header
      %s24 = sphi 0, %s28
      %p25 = scmp.ge.s32.totalorder %s24, 4
      %s34 = sphi 0, %s36
      %s37 = sphi 0, %s34
      %s38 = sphi 0, %s37
      %s54 = sphi 0, %s38
      %s60 = sphi 0, %s62
      %s63 = sphi 0, %s60
      %s64 = sphi 0, %s63
      %s80 = sphi 0, %s64
      %s86 = sphi 0, %s88
      %s89 = sphi 0, %s86
      %s90 = sphi 0, %s89
      %s106 = sphi 0, %s90
      %s110 = sphi 0, %s110
      %s112 = sphi 0, %s110
      %s113 = sphi 0, %s112
      %s127 = sphi 0, %s113
      %s131 = sphi 0, %s131
      %s133 = sphi 0, %s131
      %s134 = sphi 0, %s133
      %s148 = sphi 0, %s134
      %s152 = sphi 0, %s152
      %s154 = sphi 0, %s152
      %s155 = sphi 0, %s154
      %s169 = sphi 0, %s155
      %s173 = sphi 0, %s173
      %s175 = sphi 0, %s173
      %s176 = sphi 0, %s175
      %s190 = sphi 0, %s176
      %s194 = sphi 0, %s194
      %s196 = sphi 0, %s194
      %s197 = sphi 0, %s196
      %s211 = sphi 0, %s197
      %s215 = sphi 0, %s215
      %s217 = sphi 0, %s215
      %s218 = sphi 0, %s217
      %s232 = sphi 0, %s218
      %s236 = sphi 0, %s236
      %s238 = sphi 0, %s236
      %s239 = sphi 0, %s238
      %s253 = sphi 0, %s239
      %s257 = sphi 0, %s257
      %s259 = sphi 0, %s257
      %s260 = sphi 0, %s259
      %s274 = sphi 0, %s260
      %s278 = sphi 0, %s278
      %s280 = sphi 0, %s278
      %s281 = sphi 0, %s280
      %s295 = sphi 0, %s281
      %s299 = sphi 0, %s299
      %s301 = sphi 0, %s299
      %s302 = sphi 0, %s301
      %s316 = sphi 0, %s302
      %s322 = sphi 0, %s324
      %s325 = sphi 0, %s322
      %s326 = sphi 0, %s325
      %s342 = sphi 0, %s326
    $region4: #{tpu_custom_call.1} parent=1 // loop_header_branch
      %27 = sbr.rel (%p25) target = $region8
    $region5: #{tpu_custom_call.1} parent=1 // loop_body
      %s29 = ssub.s32 %s24, 1
      %s30 = ssub.s32 %s24, 2
      %s31 = sadd.s32 %s24, 1
      %s32 = ssub.s32 %s24, %s31
      %p33 = scmp.eq.s32.totalorder %s32, 0
      %s35 = sadd.s32 %s34, 1
      %s36 = scalar_select %p33, %s34, %s35
      %p39 = pneg %p33
      %p40 = scmp.eq.s32.totalorder %s24, 1
      %p41 = por %p39, %p40
      %p42 = scmp.ne.s32.totalorder %s34, %s37
      %p43 = scmp.eq.s32.totalorder %s24, 0
      %p44 = por %p42, %p43
      %p45 = scmp.ne.s32.totalorder %s34, %s37
      %p46 = scmp.eq.s32.totalorder %s29, 1
      %p47 = por %p45, %p46
      %p48 = scmp.ne.s32.totalorder %s37, %s38
      %p49 = scmp.eq.s32.totalorder %s29, 0
      %p50 = por %p48, %p49
      %p51 = scmp.ne.s32.totalorder %s37, %s38
      %p52 = scmp.eq.s32.totalorder %s30, 1
      %p53 = por %p51, %p52
      %p55 = scmp.ne.s32.totalorder %s38, %s54
      %p56 = scmp.eq.s32.totalorder %s30, 0
      %p57 = por %p55, %p56
      %s58 = ssub.s32 %s24, %s31
      %p59 = scmp.eq.s32.totalorder %s58, 0
      %s61 = sadd.s32 %s60, 1
      %s62 = scalar_select %p59, %s60, %s61
      %p65 = pneg %p59
      %p66 = scmp.eq.s32.totalorder %s24, 1
      %p67 = por %p65, %p66
      %p68 = scmp.ne.s32.totalorder %s60, %s63
      %p69 = scmp.eq.s32.totalorder %s24, 0
      %p70 = por %p68, %p69
      %p71 = scmp.ne.s32.totalorder %s60, %s63
      %p72 = scmp.eq.s32.totalorder %s29, 1
      %p73 = por %p71, %p72
      %p74 = scmp.ne.s32.totalorder %s63, %s64
      %p75 = scmp.eq.s32.totalorder %s29, 0
      %p76 = por %p74, %p75
      %p77 = scmp.ne.s32.totalorder %s63, %s64
      %p78 = scmp.eq.s32.totalorder %s30, 1
      %p79 = por %p77, %p78
      %p81 = scmp.ne.s32.totalorder %s64, %s80
      %p82 = scmp.eq.s32.totalorder %s30, 0
      %p83 = por %p81, %p82
      %s84 = ssub.s32 %s24, %s31
      %p85 = scmp.eq.s32.totalorder %s84, 0
      %s87 = sadd.s32 %s86, 1
      %s88 = scalar_select %p85, %s86, %s87
      %p91 = pneg %p85
      %p92 = scmp.eq.s32.totalorder %s24, 1
      %p93 = por %p91, %p92
      %p94 = scmp.ne.s32.totalorder %s86, %s89
      %p95 = scmp.eq.s32.totalorder %s24, 0
      %p96 = por %p94, %p95
      %p97 = scmp.ne.s32.totalorder %s86, %s89
      %p98 = scmp.eq.s32.totalorder %s29, 1
      %p99 = por %p97, %p98
      %p100 = scmp.ne.s32.totalorder %s89, %s90
      %p101 = scmp.eq.s32.totalorder %s29, 0
      %p102 = por %p100, %p101
      %p103 = scmp.ne.s32.totalorder %s89, %s90
      %p104 = scmp.eq.s32.totalorder %s30, 1
      %p105 = por %p103, %p104
      %p107 = scmp.ne.s32.totalorder %s90, %s106
      %p108 = scmp.eq.s32.totalorder %s30, 0
      %p109 = por %p107, %p108
      %s111 = sadd.s32 %s110, 1
      %p114 = scmp.eq.s32.totalorder %s24, 1
      %p115 = scmp.ne.s32.totalorder %s110, %s112
      %p116 = scmp.eq.s32.totalorder %s24, 0
      %p117 = por %p115, %p116
      %p118 = scmp.ne.s32.totalorder %s110, %s112
      %p119 = scmp.eq.s32.totalorder %s29, 1
      %p120 = por %p118, %p119
      %p121 = scmp.ne.s32.totalorder %s112, %s113
      %p122 = scmp.eq.s32.totalorder %s29, 0
      %p123 = por %p121, %p122
      %p124 = scmp.ne.s32.totalorder %s112, %s113
      %p125 = scmp.eq.s32.totalorder %s30, 1
      %p126 = por %p124, %p125
      %p128 = scmp.ne.s32.totalorder %s113, %s127
      %p129 = scmp.eq.s32.totalorder %s30, 0
      %p130 = por %p128, %p129
      %s132 = sadd.s32 %s131, 1
      %p135 = scmp.eq.s32.totalorder %s24, 1
      %p136 = scmp.ne.s32.totalorder %s131, %s133
      %p137 = scmp.eq.s32.totalorder %s24, 0
      %p138 = por %p136, %p137
      %p139 = scmp.ne.s32.totalorder %s131, %s133
      %p140 = scmp.eq.s32.totalorder %s29, 1
      %p141 = por %p139, %p140
      %p142 = scmp.ne.s32.totalorder %s133, %s134
      %p143 = scmp.eq.s32.totalorder %s29, 0
      %p144 = por %p142, %p143
      %p145 = scmp.ne.s32.totalorder %s133, %s134
      %p146 = scmp.eq.s32.totalorder %s30, 1
      %p147 = por %p145, %p146
      %p149 = scmp.ne.s32.totalorder %s134, %s148
      %p150 = scmp.eq.s32.totalorder %s30, 0
      %p151 = por %p149, %p150
      %s153 = sadd.s32 %s152, 1
      %p156 = scmp.eq.s32.totalorder %s24, 1
      %p157 = scmp.ne.s32.totalorder %s152, %s154
      %p158 = scmp.eq.s32.totalorder %s24, 0
      %p159 = por %p157, %p158
      %p160 = scmp.ne.s32.totalorder %s152, %s154
      %p161 = scmp.eq.s32.totalorder %s29, 1
      %p162 = por %p160, %p161
      %p163 = scmp.ne.s32.totalorder %s154, %s155
      %p164 = scmp.eq.s32.totalorder %s29, 0
      %p165 = por %p163, %p164
      %p166 = scmp.ne.s32.totalorder %s154, %s155
      %p167 = scmp.eq.s32.totalorder %s30, 1
      %p168 = por %p166, %p167
      %p170 = scmp.ne.s32.totalorder %s155, %s169
      %p171 = scmp.eq.s32.totalorder %s30, 0
      %p172 = por %p170, %p171
      %s174 = sadd.s32 %s173, 1
      %p177 = scmp.eq.s32.totalorder %s24, 1
      %p178 = scmp.ne.s32.totalorder %s173, %s175
      %p179 = scmp.eq.s32.totalorder %s24, 0
      %p180 = por %p178, %p179
      %p181 = scmp.ne.s32.totalorder %s173, %s175
      %p182 = scmp.eq.s32.totalorder %s29, 1
      %p183 = por %p181, %p182
      %p184 = scmp.ne.s32.totalorder %s175, %s176
      %p185 = scmp.eq.s32.totalorder %s29, 0
      %p186 = por %p184, %p185
      %p187 = scmp.ne.s32.totalorder %s175, %s176
      %p188 = scmp.eq.s32.totalorder %s30, 1
      %p189 = por %p187, %p188
      %p191 = scmp.ne.s32.totalorder %s176, %s190
      %p192 = scmp.eq.s32.totalorder %s30, 0
      %p193 = por %p191, %p192
      %s195 = sadd.s32 %s194, 1
      %p198 = scmp.eq.s32.totalorder %s24, 1
      %p199 = scmp.ne.s32.totalorder %s194, %s196
      %p200 = scmp.eq.s32.totalorder %s24, 0
      %p201 = por %p199, %p200
      %p202 = scmp.ne.s32.totalorder %s194, %s196
      %p203 = scmp.eq.s32.totalorder %s29, 1
      %p204 = por %p202, %p203
      %p205 = scmp.ne.s32.totalorder %s196, %s197
      %p206 = scmp.eq.s32.totalorder %s29, 0
      %p207 = por %p205, %p206
      %p208 = scmp.ne.s32.totalorder %s196, %s197
      %p209 = scmp.eq.s32.totalorder %s30, 1
      %p210 = por %p208, %p209
      %p212 = scmp.ne.s32.totalorder %s197, %s211
      %p213 = scmp.eq.s32.totalorder %s30, 0
      %p214 = por %p212, %p213
      %s216 = sadd.s32 %s215, 1
      %p219 = scmp.eq.s32.totalorder %s24, 1
      %p220 = scmp.ne.s32.totalorder %s215, %s217
      %p221 = scmp.eq.s32.totalorder %s24, 0
      %p222 = por %p220, %p221
      %p223 = scmp.ne.s32.totalorder %s215, %s217
      %p224 = scmp.eq.s32.totalorder %s29, 1
      %p225 = por %p223, %p224
      %p226 = scmp.ne.s32.totalorder %s217, %s218
      %p227 = scmp.eq.s32.totalorder %s29, 0
      %p228 = por %p226, %p227
      %p229 = scmp.ne.s32.totalorder %s217, %s218
      %p230 = scmp.eq.s32.totalorder %s30, 1
      %p231 = por %p229, %p230
      %p233 = scmp.ne.s32.totalorder %s218, %s232
      %p234 = scmp.eq.s32.totalorder %s30, 0
      %p235 = por %p233, %p234
      %s237 = sadd.s32 %s236, 1
      %p240 = scmp.eq.s32.totalorder %s24, 1
      %p241 = scmp.ne.s32.totalorder %s236, %s238
      %p242 = scmp.eq.s32.totalorder %s24, 0
      %p243 = por %p241, %p242
      %p244 = scmp.ne.s32.totalorder %s236, %s238
      %p245 = scmp.eq.s32.totalorder %s29, 1
      %p246 = por %p244, %p245
      %p247 = scmp.ne.s32.totalorder %s238, %s239
      %p248 = scmp.eq.s32.totalorder %s29, 0
      %p249 = por %p247, %p248
      %p250 = scmp.ne.s32.totalorder %s238, %s239
      %p251 = scmp.eq.s32.totalorder %s30, 1
      %p252 = por %p250, %p251
      %p254 = scmp.ne.s32.totalorder %s239, %s253
      %p255 = scmp.eq.s32.totalorder %s30, 0
      %p256 = por %p254, %p255
      %s258 = sadd.s32 %s257, 1
      %p261 = scmp.eq.s32.totalorder %s24, 1
      %p262 = scmp.ne.s32.totalorder %s257, %s259
      %p263 = scmp.eq.s32.totalorder %s24, 0
      %p264 = por %p262, %p263
      %p265 = scmp.ne.s32.totalorder %s257, %s259
      %p266 = scmp.eq.s32.totalorder %s29, 1
      %p267 = por %p265, %p266
      %p268 = scmp.ne.s32.totalorder %s259, %s260
      %p269 = scmp.eq.s32.totalorder %s29, 0
      %p270 = por %p268, %p269
      %p271 = scmp.ne.s32.totalorder %s259, %s260
      %p272 = scmp.eq.s32.totalorder %s30, 1
      %p273 = por %p271, %p272
      %p275 = scmp.ne.s32.totalorder %s260, %s274
      %p276 = scmp.eq.s32.totalorder %s30, 0
      %p277 = por %p275, %p276
      %s279 = sadd.s32 %s278, 1
      %p282 = scmp.eq.s32.totalorder %s24, 1
      %p283 = scmp.ne.s32.totalorder %s278, %s280
      %p284 = scmp.eq.s32.totalorder %s24, 0
      %p285 = por %p283, %p284
      %p286 = scmp.ne.s32.totalorder %s278, %s280
      %p287 = scmp.eq.s32.totalorder %s29, 1
      %p288 = por %p286, %p287
      %p289 = scmp.ne.s32.totalorder %s280, %s281
      %p290 = scmp.eq.s32.totalorder %s29, 0
      %p291 = por %p289, %p290
      %p292 = scmp.ne.s32.totalorder %s280, %s281
      %p293 = scmp.eq.s32.totalorder %s30, 1
      %p294 = por %p292, %p293
      %p296 = scmp.ne.s32.totalorder %s281, %s295
      %p297 = scmp.eq.s32.totalorder %s30, 0
      %p298 = por %p296, %p297
      %s300 = sadd.s32 %s299, 1
      %p303 = scmp.eq.s32.totalorder %s24, 1
      %p304 = scmp.ne.s32.totalorder %s299, %s301
      %p305 = scmp.eq.s32.totalorder %s24, 0
      %p306 = por %p304, %p305
      %p307 = scmp.ne.s32.totalorder %s299, %s301
      %p308 = scmp.eq.s32.totalorder %s29, 1
      %p309 = por %p307, %p308
      %p310 = scmp.ne.s32.totalorder %s301, %s302
      %p311 = scmp.eq.s32.totalorder %s29, 0
      %p312 = por %p310, %p311
      %p313 = scmp.ne.s32.totalorder %s301, %s302
      %p314 = scmp.eq.s32.totalorder %s30, 1
      %p315 = por %p313, %p314
      %p317 = scmp.ne.s32.totalorder %s302, %s316
      %p318 = scmp.eq.s32.totalorder %s30, 0
      %p319 = por %p317, %p318
      %s320 = ssub.s32 %s24, %s31
      %p321 = scmp.eq.s32.totalorder %s320, 0
      %s323 = sadd.s32 %s322, 1
      %s324 = scalar_select %p321, %s322, %s323
      %p327 = pneg %p321
      %p328 = scmp.eq.s32.totalorder %s24, 1
      %p329 = por %p327, %p328
      %p330 = scmp.ne.s32.totalorder %s322, %s325
      %p331 = scmp.eq.s32.totalorder %s24, 0
      %p332 = por %p330, %p331
      %p333 = scmp.ne.s32.totalorder %s322, %s325
      %p334 = scmp.eq.s32.totalorder %s29, 1
      %p335 = por %p333, %p334
      %p336 = scmp.ne.s32.totalorder %s325, %s326
      %p337 = scmp.eq.s32.totalorder %s29, 0
      %p338 = por %p336, %p337
      %p339 = scmp.ne.s32.totalorder %s325, %s326
      %p340 = scmp.eq.s32.totalorder %s30, 1
      %p341 = por %p339, %p340
      %p343 = scmp.ne.s32.totalorder %s326, %s342
      %p344 = scmp.eq.s32.totalorder %s30, 0
      %p345 = por %p343, %p344
      %p346 = scmp.le.s32.totalorder 1, %s24
      %p347 = scmp.lt.s32.totalorder %s24, 3
      %p348 = pnand %p346, %p347
      %p349 = pneg %p348
      // Predicated region
      $region9: #{tpu_custom_call.1} parent=5 // pred_check
        _
      $region10: #{tpu_custom_call.1} parent=5 // pred_check_branch
        %351 = sbr.rel (%p348) target = $region12
      $region11: #{tpu_custom_call.1} parent=5 // pred_region
        %s352 = ssub.s32 %s24, 1
        // Predicated region
        $region13: #{tpu_custom_call.1} parent=11 // pred_check
          %p353 = pneg %p123
        $region14: #{tpu_custom_call.1} parent=11 // pred_check_branch
          %355 = sbr.rel (%p353) target = $region16
        $region15: #{tpu_custom_call.1} parent=11 // pred_region
          _
        $region16: #{tpu_custom_call.1} parent=11 // pred_fallthru
          _
        // Predicated region
        $region17: #{tpu_custom_call.1} parent=11 // pred_check
          %p356 = pneg %p144
        $region18: #{tpu_custom_call.1} parent=11 // pred_check_branch
          %358 = sbr.rel (%p356) target = $region20
        $region19: #{tpu_custom_call.1} parent=11 // pred_region
          _
        $region20: #{tpu_custom_call.1} parent=11 // pred_fallthru
          _
        // Predicated region
        $region21: #{tpu_custom_call.1} parent=11 // pred_check
          %p359 = pneg %p165
        $region22: #{tpu_custom_call.1} parent=11 // pred_check_branch
          %361 = sbr.rel (%p359) target = $region24
        $region23: #{tpu_custom_call.1} parent=11 // pred_region
          _
        $region24: #{tpu_custom_call.1} parent=11 // pred_fallthru
          _
        // Predicated region
        $region25: #{tpu_custom_call.1} parent=11 // pred_check
          %p362 = pneg %p186
        $region26: #{tpu_custom_call.1} parent=11 // pred_check_branch
          %364 = sbr.rel (%p362) target = $region28
        $region27: #{tpu_custom_call.1} parent=11 // pred_region
          _
        $region28: #{tpu_custom_call.1} parent=11 // pred_fallthru
          _
        // Predicated region
        $region29: #{tpu_custom_call.1} parent=11 // pred_check
          %p365 = pneg %p207
        $region30: #{tpu_custom_call.1} parent=11 // pred_check_branch
          %367 = sbr.rel (%p365) target = $region32
        $region31: #{tpu_custom_call.1} parent=11 // pred_region
          %s369 = ssub.s32 3072, 3072
          %370 = vsyncadd [#allocation3], %s369
          %s371 = sshll.u32 [#allocation2], 4
          %s372 = int_to_ptr.vmem [resolvable:$true] %s371
          %377 = dma.hbm_to_vmem [thread:$0]  %s7, 3072, %s372, [#allocation3], 192, 192, 12
        $region32: #{tpu_custom_call.1} parent=11 // pred_fallthru
          _
        // Predicated region
        $region33: #{tpu_custom_call.1} parent=11 // pred_check
          %p378 = pneg %p228
        $region34: #{tpu_custom_call.1} parent=11 // pred_check_branch
          %380 = sbr.rel (%p378) target = $region36
        $region35: #{tpu_custom_call.1} parent=11 // pred_region
          _
        $region36: #{tpu_custom_call.1} parent=11 // pred_fallthru
          _
        // Predicated region
        $region37: #{tpu_custom_call.1} parent=11 // pred_check
          %p381 = pneg %p249
        $region38: #{tpu_custom_call.1} parent=11 // pred_check_branch
          %383 = sbr.rel (%p381) target = $region40
        $region39: #{tpu_custom_call.1} parent=11 // pred_region
          _
        $region40: #{tpu_custom_call.1} parent=11 // pred_fallthru
          _
        // Predicated region
        $region41: #{tpu_custom_call.1} parent=11 // pred_check
          %p384 = pneg %p270
        $region42: #{tpu_custom_call.1} parent=11 // pred_check_branch
          %386 = sbr.rel (%p384) target = $region44
        $region43: #{tpu_custom_call.1} parent=11 // pred_region
          _
        $region44: #{tpu_custom_call.1} parent=11 // pred_fallthru
          _
        // Predicated region
        $region45: #{tpu_custom_call.1} parent=11 // pred_check
          %p387 = pneg %p291
        $region46: #{tpu_custom_call.1} parent=11 // pred_check_branch
          %389 = sbr.rel (%p387) target = $region48
        $region47: #{tpu_custom_call.1} parent=11 // pred_region
          _
        $region48: #{tpu_custom_call.1} parent=11 // pred_fallthru
          _
        // Predicated region
        $region49: #{tpu_custom_call.1} parent=11 // pred_check
          %p390 = pneg %p312
        $region50: #{tpu_custom_call.1} parent=11 // pred_check_branch
          %392 = sbr.rel (%p390) target = $region52
        $region51: #{tpu_custom_call.1} parent=11 // pred_region
          %s394 = ssub.s32 2048, 2048
          %395 = vsyncadd [#allocation6], %s394
          %s396 = sshll.u32 [#allocation5], 4
          %s397 = int_to_ptr.vmem [resolvable:$true] %s396
          %402 = dma.hbm_to_vmem [thread:$0]  %s12, 2048, %s397, [#allocation6], 128, 128, 8
        $region52: #{tpu_custom_call.1} parent=11 // pred_fallthru
          _
      $region12: #{tpu_custom_call.1} parent=5 // pred_fallthru
        _
      %p403 = scmp.lt.s32.totalorder %s24, 2
      // Predicated region
      $region53: #{tpu_custom_call.1} parent=5 // pred_check
        %p404 = pneg %p403
      $region54: #{tpu_custom_call.1} parent=5 // pred_check_branch
        %406 = sbr.rel (%p404) target = $region56
      $region55: #{tpu_custom_call.1} parent=5 // pred_region
        // Predicated region
        $region57: #{tpu_custom_call.1} parent=55 // pred_check
          %p407 = pneg %p44
        $region58: #{tpu_custom_call.1} parent=55 // pred_check_branch
          %409 = sbr.rel (%p407) target = $region60
        $region59: #{tpu_custom_call.1} parent=55 // pred_region
          %p410 = scmp.lt.s32.totalorder %s24, 1
          %s411 = scalar_select %p410, %s24, 1
          %s412 = smul.addr %s411, 2
          %s413 = smul.addr %s412, 4
          %s414 = scalar_lea.vmem %s0, %s413
        $region60: #{tpu_custom_call.1} parent=55 // pred_fallthru
          _
        // Predicated region
        $region61: #{tpu_custom_call.1} parent=55 // pred_check
          %p415 = pneg %p70
        $region62: #{tpu_custom_call.1} parent=55 // pred_check_branch
          %417 = sbr.rel (%p415) target = $region64
        $region63: #{tpu_custom_call.1} parent=55 // pred_region
          %p418 = scmp.lt.s32.totalorder %s24, 1
          %s419 = scalar_select %p418, %s24, 1
          %s420 = scalar_lea.vmem %s1, %s419
        $region64: #{tpu_custom_call.1} parent=55 // pred_fallthru
          _
        // Predicated region
        $region65: #{tpu_custom_call.1} parent=55 // pred_check
          %p421 = pneg %p96
        $region66: #{tpu_custom_call.1} parent=55 // pred_check_branch
          %423 = sbr.rel (%p421) target = $region68
        $region67: #{tpu_custom_call.1} parent=55 // pred_region
          %p424 = scmp.lt.s32.totalorder %s24, 1
          %s425 = scalar_select %p424, %s24, 1
          %s426 = scalar_lea.vmem %s2, %s425
        $region68: #{tpu_custom_call.1} parent=55 // pred_fallthru
          _
      $region56: #{tpu_custom_call.1} parent=5 // pred_fallthru
        _
      %p427 = scmp.le.s32.totalorder 1, %s24
      %p428 = scmp.lt.s32.totalorder %s24, 3
      %p429 = pnand %p427, %p428
      %p430 = pneg %p429
      // Predicated region
      $region69: #{tpu_custom_call.1} parent=5 // pred_check
        _
      $region70: #{tpu_custom_call.1} parent=5 // pred_check_branch
        %432 = sbr.rel (%p429) target = $region72
      $region71: #{tpu_custom_call.1} parent=5 // pred_region
        %s433 = ssub.s32 %s24, 1
        // Predicated region
        $region73: #{tpu_custom_call.1} parent=71 // pred_check
          %p434 = pneg %p207
        $region74: #{tpu_custom_call.1} parent=71 // pred_check_branch
          %436 = sbr.rel (%p434) target = $region76
        $region75: #{tpu_custom_call.1} parent=71 // pred_region
          %437 = dma.done [#allocation3], 3072
        $region76: #{tpu_custom_call.1} parent=71 // pred_fallthru
          _
        // Predicated region
        $region77: #{tpu_custom_call.1} parent=71 // pred_check
          %p438 = pneg %p312
        $region78: #{tpu_custom_call.1} parent=71 // pred_check_branch
          %440 = sbr.rel (%p438) target = $region80
        $region79: #{tpu_custom_call.1} parent=71 // pred_region
          %441 = dma.done [#allocation6], 2048
        $region80: #{tpu_custom_call.1} parent=71 // pred_fallthru
          _
        %p442 = scmp.lt.s32.totalorder %s29, 1
        %s443 = scalar_select %p442, %s29, 1
        %s444 = smul.addr %s443, 2
        %s445 = smul.addr %s444, 4
        %s446 = scalar_lea.vmem %s0, %s445
        %p447 = pneg %p50
        %p448 = pneg %p47
        %p449 = scmp.lt.s32.totalorder %s29, 1
        %s450 = scalar_select %p449, %s29, 1
        %s451 = scalar_lea.vmem %s1, %s450
        %p452 = pneg %p76
        %p453 = pneg %p73
        %p454 = scmp.lt.s32.totalorder %s29, 1
        %s455 = scalar_select %p454, %s29, 1
        %s456 = scalar_lea.vmem %s2, %s455
        %p457 = pneg %p102
        %p458 = pneg %p99
        %p459 = pneg %p123
        %p460 = pneg %p120
        %p461 = pneg %p144
        %p462 = pneg %p141
        %p463 = pneg %p165
        %p464 = pneg %p162
        %p465 = pneg %p186
        %p466 = pneg %p183
        %p467 = pneg %p207
        %p468 = pneg %p204
        %p469 = pneg %p228
        %p470 = pneg %p225
        %p471 = pneg %p249
        %p472 = pneg %p246
        %p473 = pneg %p270
        %p474 = pneg %p267
        %p475 = pneg %p291
        %p476 = pneg %p288
        %p477 = pneg %p312
        %p478 = pneg %p309
        %p479 = pneg %p338
        %p480 = pneg %p335
        %s481 = sand.u32 %s325, 1
        %s482 = scalar_lea.sflag [#allocation4], %s481
        %s483 = sand.u32 %s325, 1
        %s484 = smul.addr %s483, 8
        %s485 = scalar_lea.vmem [#allocation7], %s484
        %p486 = scmp.lt.s32.totalorder %s29, 1
        %s487 = scalar_select %p486, %s29, 1
        %s488 = smul.addr %s487, 2
        %s489 = smul.addr %s488, 4
        %s490 = scalar_lea.vmem %s0, %s489
        %p491 = scmp.lt.s32.totalorder %s29, 1
        %s492 = scalar_select %p491, %s29, 1
        %s493 = scalar_lea.vmem %s1, %s492
        %p494 = scmp.lt.s32.totalorder %s29, 1
        %s495 = scalar_select %p494, %s29, 1
        %s496 = scalar_lea.vmem %s2, %s495
        %v498 = vld [vmem:[%s490] sm:$0xf]
        %v499 = vld [vmem:[%s490 + $0x4] sm:$0xf]
        %v500 = vlaneseq
        %v501 = vshrl.u32 %v500, 7
        %v502 = vadd.s32 %v501, 8
        %vm503 = vcmp.eq.s32.totalorder %v501, 0
        %vm504 = vcmp.eq.s32.totalorder %v502, 0
        %vm505 = vcmp.eq.s32.totalorder %v501, 15
        %vm506 = vcmp.eq.s32.totalorder %v502, 15
        %v507 = vld [vmem:[%s3] sm:$0xff]
        %v508 = vld [vmem:[%s3 + $0x8] sm:$0xff]
        %v511 = vunpack.c.l.b16 %v498
        %v512 = vunpack.c.l.b16 %v499
        %v513 = vpack.c.b16 %v512, %v511
        %v516 = vunpack.c.l.b16 %v507
        %v517 = vunpack.c.h.b16 %v507
        %v518 = vunpack.c.l.b16 %v508
        %v519 = vunpack.c.h.b16 %v508
        %v520 = vpack.c.b16 %v516, %v516
        %v521 = vpack.c.b16 %v517, %v517
        %v522 = vpack.c.b16 %v518, %v518
        %v523 = vpack.c.b16 %v519, %v519
        %vm524 = vcmask 64512
        %v526 = vsel %vm524, %v513, 0
        %vm528 = vcmask 1043456
        %v530 = vsel %vm528, %v520, 0
        %v533 = vsel %vm528, %v521, 0
        %v536 = vsel %vm528, %v522, 0
        %v539 = vsel %vm528, %v523, 0
        %541 = vmatprep.subr.bf16.mxu0 %v533
        %542 = vmatpush1.bf16.msra.mxu0 %v530
        %543 = vmatprep.subr.bf16.mxu0 0
        %544 = vmatpush1.bf16.msra.mxu0 0
        %545 = vmatprep.subr.bf16.mxu0 0
        %546 = vmatpush1.bf16.msra.mxu0 0
        %547 = vmatprep.subr.bf16.mxu0 0
        %548 = vmatpush1.bf16.msra.mxu0 0
        %549 = vmatprep.subr.bf16.mxu0 0
        %550 = vmatpush1.bf16.msra.mxu0 0
        %551 = vmatprep.subr.bf16.mxu0 0
        %552 = vmatpush1.bf16.msra.mxu0 0
        %553 = vmatprep.subr.bf16.mxu0 0
        %554 = vmatpush1.bf16.msra.mxu0 0
        %555 = vmatprep.subr.bf16.mxu0 0
        %556 = vmatpush1.bf16.msra.mxu0 0
        %557 = vmatprep.subr.bf16.mxu0 0
        %558 = vmatpush1.bf16.msra.mxu0 0
        %559 = vmatprep.subr.bf16.mxu0 0
        %560 = vmatpush1.bf16.msra.mxu0 0
        %561 = vmatprep.subr.bf16.mxu0 0
        %562 = vmatpush1.bf16.msra.mxu0 0
        %563 = vmatprep.subr.bf16.mxu0 0
        %564 = vmatpush1.bf16.msra.mxu0 0
        %565 = vmatprep.subr.bf16.mxu0 0
        %566 = vmatpush1.bf16.msra.mxu0 0
        %567 = vmatprep.subr.bf16.mxu0 0
        %568 = vmatpush1.bf16.msra.mxu0 0
        %569 = vmatprep.subr.bf16.mxu0 0
        %570 = vmatpush1.bf16.msra.mxu0 0
        %571 = vmatprep.subr.bf16.mxu0 0
        %572 = vmatpush1.bf16.msra.mxu0 0
        %573 = vmatprep.mubr.bf16.mxu0 0
        %574 = vmatmul.mubr.bf16.gmra.mrb[0].mxu0 %v526
        %v575 = vpop.f32.mrb[0].mxu0
        %v576 = vadd.f32 0.0, %v575
        %v577 = vpop.f32.mrb[0].mxu0
        %v578 = vadd.f32 0.0, %v577
        %v579 = vpop.f32.mrb[0].mxu0
        %v580 = vadd.f32 0.0, %v579
        %v581 = vpop.f32.mrb[0].mxu0
        %v582 = vadd.f32 0.0, %v581
        %583 = vdwg.mxu0
        %584 = vmatprep.subr.bf16.mxu0 %v539
        %585 = vmatpush1.bf16.msra.mxu0 %v536
        %586 = vmatprep.subr.bf16.mxu0 0
        %587 = vmatpush1.bf16.msra.mxu0 0
        %588 = vmatprep.subr.bf16.mxu0 0
        %589 = vmatpush1.bf16.msra.mxu0 0
        %590 = vmatprep.subr.bf16.mxu0 0
        %591 = vmatpush1.bf16.msra.mxu0 0
        %592 = vmatprep.subr.bf16.mxu0 0
        %593 = vmatpush1.bf16.msra.mxu0 0
        %594 = vmatprep.subr.bf16.mxu0 0
        %595 = vmatpush1.bf16.msra.mxu0 0
        %596 = vmatprep.subr.bf16.mxu0 0
        %597 = vmatpush1.bf16.msra.mxu0 0
        %598 = vmatprep.subr.bf16.mxu0 0
        %599 = vmatpush1.bf16.msra.mxu0 0
        %600 = vmatprep.subr.bf16.mxu0 0
        %601 = vmatpush1.bf16.msra.mxu0 0
        %602 = vmatprep.subr.bf16.mxu0 0
        %603 = vmatpush1.bf16.msra.mxu0 0
        %604 = vmatprep.subr.bf16.mxu0 0
        %605 = vmatpush1.bf16.msra.mxu0 0
        %606 = vmatprep.subr.bf16.mxu0 0
        %607 = vmatpush1.bf16.msra.mxu0 0
        %608 = vmatprep.subr.bf16.mxu0 0
        %609 = vmatpush1.bf16.msra.mxu0 0
        %610 = vmatprep.subr.bf16.mxu0 0
        %611 = vmatpush1.bf16.msra.mxu0 0
        %612 = vmatprep.subr.bf16.mxu0 0
        %613 = vmatpush1.bf16.msra.mxu0 0
        %614 = vmatprep.subr.bf16.mxu0 0
        %615 = vmatpush1.bf16.msra.mxu0 0
        %616 = vmatprep.mubr.bf16.mxu0 0
        %617 = vmatmul.mubr.bf16.gmra.mrb[0].mxu0 %v526
        %v618 = vpop.f32.mrb[0].mxu0
        %v619 = vadd.f32 0.0, %v618
        %v620 = vpop.f32.mrb[0].mxu0
        %v621 = vadd.f32 0.0, %v620
        %v622 = vpop.f32.mrb[0].mxu0
        %v623 = vadd.f32 0.0, %v622
        %v624 = vpop.f32.mrb[0].mxu0
        %v625 = vadd.f32 0.0, %v624
        %626 = vdwg.mxu0
        %v627 = vld [vmem:[%s11] sm:$0x1]
        %v629 = vlaneseq
        %v630 = vshrl.u32 %v629, 7
        %v631 = vsub.s32 0, %v630
        %v632 = vrot.slane %v627, %v631
        %v634 = vadd.f32 %v621, %v632
        %v635 = vadd.f32 %v625, %v632
        %v636 = vld [vmem:[%s4] sm:$0x1]
        %v637 = vrot.slane %v576, 7
        %v638 = vrot.slane %v580, 7
        %vm639 = vcmp.lt.s32.totalorder %v501, 1
        %v640 = vsel %vm639, %v637, %v638
        %v641 = vsel %vm639, %v638, %v637
        %v642 = vsel %vm503, 1, 0
        %v643 = vsel %vm504, 1, 0
        %vm644 = vcmp.eq.s32.totalorder %v642, 1
        %vm645 = vcmp.eq.s32.totalorder %v643, 1
        %v646 = vsel %vm644, 0.0, %v641
        %v647 = vsel %vm645, 0.0, %v640
        %v648 = vrot.slane %v619, 1
        %v649 = vrot.slane %v623, 1
        %vm650 = vcmp.lt.s32.totalorder %v501, 7
        %v651 = vsel %vm650, %v648, %v649
        %v652 = vsel %vm650, %v649, %v648
        %v653 = vsel %vm505, 1, 0
        %v654 = vsel %vm506, 1, 0
        %vm655 = vcmp.eq.s32.totalorder %v653, 1
        %vm656 = vcmp.eq.s32.totalorder %v654, 1
        %v657 = vsel %vm655, 0.0, %v651
        %v658 = vsel %vm656, 0.0, %v652
        %v659 = vadd.f32 %v646, %v578
        %v660 = vadd.f32 %v647, %v582
        %v661 = vadd.f32 %v659, %v657
        %v662 = vadd.f32 %v660, %v658
        %v664 = vlaneseq
        %v665 = vshrl.u32 %v664, 7
        %v666 = vsub.s32 0, %v665
        %v667 = vrot.slane %v636, %v666
        %v669 = vadd.f32 %v661, %v667
        %v670 = vadd.f32 %v662, %v667
        %v671 = vld [vmem:[%s5] sm:$0x1]
        %v672 = vld [vmem:[%s6] sm:$0x1]
        %v673 = vadd.f32 %v669, %v670
        %v674 = vrot.slane %v673, 4
        %v675 = vadd.f32 %v673, %v674
        %v676 = vrot.slane %v675, 2
        %v677 = vadd.f32 %v675, %v676
        %v678 = vrot.slane %v677, 1
        %v679 = vadd.f32 %v677, %v678
        %v680 = vmul.f32 %v669, %v669
        %v681 = vmul.f32 %v670, %v670
        %v682 = vadd.f32 %v680, %v681
        %v683 = vrot.slane %v682, 4
        %v684 = vadd.f32 %v682, %v683
        %v685 = vrot.slane %v684, 2
        %v686 = vadd.f32 %v684, %v685
        %v687 = vrot.slane %v686, 1
        %v688 = vadd.f32 %v686, %v687
        %vm689 = vcmask 1040384
        %v690 = vsel %vm689, %v679, %v688
        %v691 = vld [vmem:[#allocation5] sm:$0xff]
        %v692 = vld [vmem:[#allocation5 + $0x8] sm:$0xff]
        %v693 = vld [vmem:[#allocation5 + $0x10] sm:$0xff]
        %v694 = vld [vmem:[#allocation5 + $0x18] sm:$0xff]
        %v695 = vld [vmem:[#allocation5 + $0x20] sm:$0xff]
        %v696 = vld [vmem:[#allocation5 + $0x28] sm:$0xff]
        %v697 = vld [vmem:[#allocation5 + $0x30] sm:$0xff]
        %v698 = vld [vmem:[#allocation5 + $0x38] sm:$0xff]
        %v699 = vld [vmem:[#allocation5 + $0x40] sm:$0xff]
        %v700 = vld [vmem:[#allocation5 + $0x48] sm:$0xff]
        %v701 = vld [vmem:[#allocation5 + $0x50] sm:$0xff]
        %v702 = vld [vmem:[#allocation5 + $0x58] sm:$0xff]
        %v703 = vld [vmem:[#allocation5 + $0x60] sm:$0xff]
        %v704 = vld [vmem:[#allocation5 + $0x68] sm:$0xff]
        %v705 = vld [vmem:[#allocation5 + $0x70] sm:$0xff]
        %v706 = vld [vmem:[#allocation5 + $0x78] sm:$0xff]
        %707 = vmatprep.subr.mxu0 0.0
        %708 = vmatpush1.msra.mxu0 %v691
        %709 = vmatprep.subr.mxu0 0.0
        %710 = vmatpush1.msra.mxu0 %v692
        %711 = vmatprep.subr.mxu0 0.0
        %712 = vmatpush1.msra.mxu0 %v693
        %713 = vmatprep.subr.mxu0 0.0
        %714 = vmatpush1.msra.mxu0 %v694
        %715 = vmatprep.subr.mxu0 0.0
        %716 = vmatpush1.msra.mxu0 %v695
        %717 = vmatprep.subr.mxu0 0.0
        %718 = vmatpush1.msra.mxu0 %v696
        %719 = vmatprep.subr.mxu0 0.0
        %720 = vmatpush1.msra.mxu0 %v697
        %721 = vmatprep.subr.mxu0 0.0
        %722 = vmatpush1.msra.mxu0 %v698
        %723 = vmatprep.subr.mxu0 0.0
        %724 = vmatpush1.msra.mxu0 %v699
        %725 = vmatprep.subr.mxu0 0.0
        %726 = vmatpush1.msra.mxu0 %v700
        %727 = vmatprep.subr.mxu0 0.0
        %728 = vmatpush1.msra.mxu0 %v701
        %729 = vmatprep.subr.mxu0 0.0
        %730 = vmatpush1.msra.mxu0 %v702
        %731 = vmatprep.subr.mxu0 0.0
        %732 = vmatpush1.msra.mxu0 %v703
        %733 = vmatprep.subr.mxu0 0.0
        %734 = vmatpush1.msra.mxu0 %v704
        %735 = vmatprep.subr.mxu0 0.0
        %736 = vmatpush1.msra.mxu0 %v705
        %737 = vmatprep.subr.mxu0 0.0
        %738 = vmatpush1.msra.mxu0 %v706
        %739 = vmatprep.subr.mxu0 0.0
        %740 = vmatpush1.msra.mxu0 0.0
        %741 = vmatprep.subr.mxu0 0.0
        %742 = vmatpush1.msra.mxu0 0.0
        %743 = vmatprep.subr.mxu0 0.0
        %744 = vmatpush1.msra.mxu0 0.0
        %745 = vmatprep.subr.mxu0 0.0
        %746 = vmatpush1.msra.mxu0 0.0
        %747 = vmatprep.subr.mxu0 0.0
        %748 = vmatpush1.msra.mxu0 0.0
        %749 = vmatprep.subr.mxu0 0.0
        %750 = vmatpush1.msra.mxu0 0.0
        %751 = vmatprep.subr.mxu0 0.0
        %752 = vmatpush1.msra.mxu0 0.0
        %753 = vmatprep.subr.mxu0 0.0
        %754 = vmatpush1.msra.mxu0 0.0
        %755 = vmatprep.subr.mxu0 0.0
        %756 = vmatpush1.msra.mxu0 0.0
        %757 = vmatprep.subr.mxu0 0.0
        %758 = vmatpush1.msra.mxu0 0.0
        %759 = vmatprep.subr.mxu0 0.0
        %760 = vmatpush1.msra.mxu0 0.0
        %761 = vmatprep.subr.mxu0 0.0
        %762 = vmatpush1.msra.mxu0 0.0
        %763 = vmatprep.subr.mxu0 0.0
        %764 = vmatpush1.msra.mxu0 0.0
        %765 = vmatprep.subr.mxu0 0.0
        %766 = vmatpush1.msra.mxu0 0.0
        %767 = vmatprep.subr.mxu0 0.0
        %768 = vmatpush1.msra.mxu0 0.0
        %769 = vmatprep.subr.mxu0 0.0
        %770 = vmatpush1.msra.mxu0 0.0
        %771 = vmatprep.mubr.f32.mxu0 0.0
        %772 = vmatmul.mubr.f32.gmra.mrb[0].mxu0 %v690
        %v773 = vpop.f32.mrb[0].mxu0
        %v774 = vadd.f32 0.0, %v773
        %v775 = vpop.f32.mrb[0].mxu0
        %776 = vdwg.mxu0
        %v777 = vmul.f32 %v774, %v774
        %v779 = vrot.slane %v777, 7
        %v781 = vsub.f32 %v774, %v779
        %v782 = vlaneseq
        %v783 = vshrl.u32 %v782, 7
        %v784 = vsub.s32 0, %v783
        %v785 = vrot.slane %v774, %v784
        %v786 = vsub.f32 %v669, %v785
        %v787 = vsub.f32 %v670, %v785
        %v788 = vadd.f32 %v781, 1e-05
        %v789 = vrsqrt.pop %v788
        %v790 = vlaneseq
        %v791 = vshrl.u32 %v790, 7
        %v792 = vsub.s32 1, %v791
        %v793 = vrot.slane %v789, %v792
        %v794 = vmul.f32 %v786, %v793
        %v795 = vmul.f32 %v787, %v793
        %v797 = vlaneseq
        %v798 = vshrl.u32 %v797, 7
        %v799 = vsub.s32 0, %v798
        %v800 = vrot.slane %v671, %v799
        %v802 = vmul.f32 %v794, %v800
        %v803 = vmul.f32 %v795, %v800
        %v805 = vlaneseq
        %v806 = vshrl.u32 %v805, 7
        %v807 = vsub.s32 0, %v806
        %v808 = vrot.slane %v672, %v807
        %v810 = vadd.f32 %v802, %v808
        %v811 = vadd.f32 %v803, %v808
        %v812 = vld [vmem:[%s493] sm:$0x1]
        %v814 = vlaneseq
        %v815 = vshrl.u32 %v814, 7
        %v816 = vsub.s32 0, %v815
        %v817 = vrot.slane %v812, %v816
        %v819 = vmul.f32 %v810, %v817
        %v820 = vmul.f32 %v811, %v817
        %v821 = vld [vmem:[%s496] sm:$0x1]
        %v823 = vlaneseq
        %v824 = vshrl.u32 %v823, 7
        %v825 = vsub.s32 0, %v824
        %v826 = vrot.slane %v821, %v825
        %v828 = vadd.f32 %v819, %v826
        %v829 = vadd.f32 %v820, %v826
        %v830 = vxor.u32 %v828, 2147483648
        %v831 = vxor.u32 %v829, 2147483648
        %v832 = vmul.f32 %v830, 1.442695
        %v833 = vpow.pop %v832
        %v834 = vmul.f32 %v831, 1.442695
        %v835 = vpow.pop %v834
        %v836 = vadd.f32 %v833, 1.0
        %v837 = vadd.f32 %v835, 1.0
        %v838 = vrcp.pop %v836
        %v839 = vmul.f32 1.0, %v838
        %v840 = vrcp.pop %v837
        %v841 = vmul.f32 1.0, %v840
        %v842 = vmul.f32 %v828, %v839
        %v843 = vmul.f32 %v829, %v841
        %v844 = vpack.c.bf16 %v843, %v842
        %v845 = vld [vmem:[#allocation2] sm:$0xff]
        %v846 = vld [vmem:[#allocation2 + $0x8] sm:$0xf]
        %v847 = vld [vmem:[#allocation2 + $0xc] sm:$0xff]
        %v848 = vld [vmem:[#allocation2 + $0x14] sm:$0xf]
        %v849 = vld [vmem:[#allocation2 + $0x18] sm:$0xff]
        %v850 = vld [vmem:[#allocation2 + $0x20] sm:$0xf]
        %v851 = vld [vmem:[#allocation2 + $0x24] sm:$0xff]
        %v852 = vld [vmem:[#allocation2 + $0x2c] sm:$0xf]
        %v853 = vld [vmem:[#allocation2 + $0x30] sm:$0xff]
        %v854 = vld [vmem:[#allocation2 + $0x38] sm:$0xf]
        %v855 = vld [vmem:[#allocation2 + $0x3c] sm:$0xff]
        %v856 = vld [vmem:[#allocation2 + $0x44] sm:$0xf]
        %v857 = vld [vmem:[#allocation2 + $0x48] sm:$0xff]
        %v858 = vld [vmem:[#allocation2 + $0x50] sm:$0xf]
        %v859 = vld [vmem:[#allocation2 + $0x54] sm:$0xff]
        %v860 = vld [vmem:[#allocation2 + $0x5c] sm:$0xf]
        %v861 = vld [vmem:[#allocation2 + $0x60] sm:$0xff]
        %v862 = vld [vmem:[#allocation2 + $0x68] sm:$0xf]
        %v863 = vld [vmem:[#allocation2 + $0x6c] sm:$0xff]
        %v864 = vld [vmem:[#allocation2 + $0x74] sm:$0xf]
        %v865 = vld [vmem:[#allocation2 + $0x78] sm:$0xff]
        %v866 = vld [vmem:[#allocation2 + $0x80] sm:$0xf]
        %v867 = vld [vmem:[#allocation2 + $0x84] sm:$0xff]
        %v868 = vld [vmem:[#allocation2 + $0x8c] sm:$0xf]
        %v869 = vld [vmem:[#allocation2 + $0x90] sm:$0xff]
        %v870 = vld [vmem:[#allocation2 + $0x98] sm:$0xf]
        %v871 = vld [vmem:[#allocation2 + $0x9c] sm:$0xff]
        %v872 = vld [vmem:[#allocation2 + $0xa4] sm:$0xf]
        %v873 = vld [vmem:[#allocation2 + $0xa8] sm:$0xff]
        %v874 = vld [vmem:[#allocation2 + $0xb0] sm:$0xf]
        %v875 = vld [vmem:[#allocation2 + $0xb4] sm:$0xff]
        %v876 = vld [vmem:[#allocation2 + $0xbc] sm:$0xf]
        %v909 = vunpack.c.l.b16 %v845
        %v910 = vunpack.c.h.b16 %v845
        %v911 = vunpack.c.l.b16 %v846
        %v912 = vunpack.c.l.b16 %v847
        %v913 = vunpack.c.h.b16 %v847
        %v914 = vunpack.c.l.b16 %v848
        %v915 = vunpack.c.l.b16 %v849
        %v916 = vunpack.c.h.b16 %v849
        %v917 = vunpack.c.l.b16 %v850
        %v918 = vunpack.c.l.b16 %v851
        %v919 = vunpack.c.h.b16 %v851
        %v920 = vunpack.c.l.b16 %v852
        %v921 = vunpack.c.l.b16 %v853
        %v922 = vunpack.c.h.b16 %v853
        %v923 = vunpack.c.l.b16 %v854
        %v924 = vunpack.c.l.b16 %v855
        %v925 = vunpack.c.h.b16 %v855
        %v926 = vunpack.c.l.b16 %v856
        %v927 = vunpack.c.l.b16 %v857
        %v928 = vunpack.c.h.b16 %v857
        %v929 = vunpack.c.l.b16 %v858
        %v930 = vunpack.c.l.b16 %v859
        %v931 = vunpack.c.h.b16 %v859
        %v932 = vunpack.c.l.b16 %v860
        %v933 = vunpack.c.l.b16 %v861
        %v934 = vunpack.c.h.b16 %v861
        %v935 = vunpack.c.l.b16 %v862
        %v936 = vunpack.c.l.b16 %v863
        %v937 = vunpack.c.h.b16 %v863
        %v938 = vunpack.c.l.b16 %v864
        %v939 = vunpack.c.l.b16 %v865
        %v940 = vunpack.c.h.b16 %v865
        %v941 = vunpack.c.l.b16 %v866
        %v942 = vunpack.c.l.b16 %v867
        %v943 = vunpack.c.h.b16 %v867
        %v944 = vunpack.c.l.b16 %v868
        %v945 = vunpack.c.l.b16 %v869
        %v946 = vunpack.c.h.b16 %v869
        %v947 = vunpack.c.l.b16 %v870
        %v948 = vunpack.c.l.b16 %v871
        %v949 = vunpack.c.h.b16 %v871
        %v950 = vunpack.c.l.b16 %v872
        %v951 = vunpack.c.l.b16 %v873
        %v952 = vunpack.c.h.b16 %v873
        %v953 = vunpack.c.l.b16 %v874
        %v954 = vunpack.c.l.b16 %v875
        %v955 = vunpack.c.h.b16 %v875
        %v956 = vunpack.c.l.b16 %v876
        %v957 = vpack.c.b16 %v912, %v909
        %v958 = vpack.c.b16 %v913, %v910
        %v959 = vpack.c.b16 %v914, %v911
        %v960 = vpack.c.b16 %v918, %v915
        %v961 = vpack.c.b16 %v919, %v916
        %v962 = vpack.c.b16 %v920, %v917
        %v963 = vpack.c.b16 %v924, %v921
        %v964 = vpack.c.b16 %v925, %v922
        %v965 = vpack.c.b16 %v926, %v923
        %v966 = vpack.c.b16 %v930, %v927
        %v967 = vpack.c.b16 %v931, %v928
        %v968 = vpack.c.b16 %v932, %v929
        %v969 = vpack.c.b16 %v936, %v933
        %v970 = vpack.c.b16 %v937, %v934
        %v971 = vpack.c.b16 %v938, %v935
        %v972 = vpack.c.b16 %v942, %v939
        %v973 = vpack.c.b16 %v943, %v940
        %v974 = vpack.c.b16 %v944, %v941
        %v975 = vpack.c.b16 %v948, %v945
        %v976 = vpack.c.b16 %v949, %v946
        %v977 = vpack.c.b16 %v950, %v947
        %v978 = vpack.c.b16 %v954, %v951
        %v979 = vpack.c.b16 %v955, %v952
        %v980 = vpack.c.b16 %v956, %v953
        %1005 = vmatprep.subr.bf16.mxu0 %v958
        %1006 = vmatpush1.bf16.msra.mxu0 %v957
        %1007 = vmatprep.subr.bf16.mxu0 %v961
        %1008 = vmatpush1.bf16.msra.mxu0 %v960
        %1009 = vmatprep.subr.bf16.mxu0 %v964
        %1010 = vmatpush1.bf16.msra.mxu0 %v963
        %1011 = vmatprep.subr.bf16.mxu0 %v967
        %1012 = vmatpush1.bf16.msra.mxu0 %v966
        %1013 = vmatprep.subr.bf16.mxu0 %v970
        %1014 = vmatpush1.bf16.msra.mxu0 %v969
        %1015 = vmatprep.subr.bf16.mxu0 %v973
        %1016 = vmatpush1.bf16.msra.mxu0 %v972
        %1017 = vmatprep.subr.bf16.mxu0 %v976
        %1018 = vmatpush1.bf16.msra.mxu0 %v975
        %1019 = vmatprep.subr.bf16.mxu0 %v979
        %1020 = vmatpush1.bf16.msra.mxu0 %v978
        %1021 = vmatprep.subr.bf16.mxu0 0
        %1022 = vmatpush1.bf16.msra.mxu0 0
        %1023 = vmatprep.subr.bf16.mxu0 0
        %1024 = vmatpush1.bf16.msra.mxu0 0
        %1025 = vmatprep.subr.bf16.mxu0 0
        %1026 = vmatpush1.bf16.msra.mxu0 0
        %1027 = vmatprep.subr.bf16.mxu0 0
        %1028 = vmatpush1.bf16.msra.mxu0 0
        %1029 = vmatprep.subr.bf16.mxu0 0
        %1030 = vmatpush1.bf16.msra.mxu0 0
        %1031 = vmatprep.subr.bf16.mxu0 0
        %1032 = vmatpush1.bf16.msra.mxu0 0
        %1033 = vmatprep.subr.bf16.mxu0 0
        %1034 = vmatpush1.bf16.msra.mxu0 0
        %1035 = vmatprep.subr.bf16.mxu0 0
        %1036 = vmatpush1.bf16.msra.mxu0 0
        %1037 = vmatprep.mubr.bf16.mxu0 0
        %1038 = vmatmul.mubr.bf16.gmra.mrb[0].mxu0 %v844
        %v1039 = vpop.f32.mrb[0].mxu0
        %v1040 = vadd.f32 0.0, %v1039
        %v1041 = vpop.f32.mrb[0].mxu0
        %v1042 = vadd.f32 0.0, %v1041
        %v1043 = vpop.f32.mrb[0].mxu0
        %v1044 = vadd.f32 0.0, %v1043
        %v1045 = vpop.f32.mrb[0].mxu0
        %v1046 = vadd.f32 0.0, %v1045
        %1047 = vdwg.mxu0
        %1048 = vmatprep.subr.bf16.mxu0 0
        %1049 = vmatpush1.bf16.msra.mxu0 %v959
        %1050 = vmatprep.subr.bf16.mxu0 0
        %1051 = vmatpush1.bf16.msra.mxu0 %v962
        %1052 = vmatprep.subr.bf16.mxu0 0
        %1053 = vmatpush1.bf16.msra.mxu0 %v965
        %1054 = vmatprep.subr.bf16.mxu0 0
        %1055 = vmatpush1.bf16.msra.mxu0 %v968
        %1056 = vmatprep.subr.bf16.mxu0 0
        %1057 = vmatpush1.bf16.msra.mxu0 %v971
        %1058 = vmatprep.subr.bf16.mxu0 0
        %1059 = vmatpush1.bf16.msra.mxu0 %v974
        %1060 = vmatprep.subr.bf16.mxu0 0
        %1061 = vmatpush1.bf16.msra.mxu0 %v977
        %1062 = vmatprep.subr.bf16.mxu0 0
        %1063 = vmatpush1.bf16.msra.mxu0 %v980
        %1064 = vmatprep.subr.bf16.mxu0 0
        %1065 = vmatpush1.bf16.msra.mxu0 0
        %1066 = vmatprep.subr.bf16.mxu0 0
        %1067 = vmatpush1.bf16.msra.mxu0 0
        %1068 = vmatprep.subr.bf16.mxu0 0
        %1069 = vmatpush1.bf16.msra.mxu0 0
        %1070 = vmatprep.subr.bf16.mxu0 0
        %1071 = vmatpush1.bf16.msra.mxu0 0
        %1072 = vmatprep.subr.bf16.mxu0 0
        %1073 = vmatpush1.bf16.msra.mxu0 0
        %1074 = vmatprep.subr.bf16.mxu0 0
        %1075 = vmatpush1.bf16.msra.mxu0 0
        %1076 = vmatprep.subr.bf16.mxu0 0
        %1077 = vmatpush1.bf16.msra.mxu0 0
        %1078 = vmatprep.subr.bf16.mxu0 0
        %1079 = vmatpush1.bf16.msra.mxu0 0
        %1080 = vmatprep.mubr.bf16.mxu0 0
        %1081 = vmatmul.mubr.bf16.gmra.mrb[0].mxu0 %v844
        %v1082 = vpop.f32.mrb[0].mxu0
        %v1083 = vadd.f32 0.0, %v1082
        %v1084 = vpop.f32.mrb[0].mxu0
        %v1085 = vpop.f32.mrb[0].mxu0
        %v1086 = vadd.f32 0.0, %v1085
        %v1087 = vpop.f32.mrb[0].mxu0
        %1088 = vdwg.mxu0
        %v1089 = vld [vmem:[%s8] sm:$0x1]
        %v1090 = vrot.slane %v1040, 7
        %v1091 = vrot.slane %v1044, 7
        %v1092 = vsel %vm639, %v1090, %v1091
        %v1093 = vsel %vm639, %v1091, %v1090
        %v1094 = vsel %vm644, 0.0, %v1093
        %v1095 = vsel %vm645, 0.0, %v1092
        %v1096 = vrot.slane %v1083, 1
        %v1097 = vrot.slane %v1086, 1
        %v1098 = vsel %vm650, %v1096, %v1097
        %v1099 = vsel %vm650, %v1097, %v1096
        %v1100 = vsel %vm655, 0.0, %v1098
        %v1101 = vsel %vm656, 0.0, %v1099
        %v1102 = vadd.f32 %v1094, %v1042
        %v1103 = vadd.f32 %v1095, %v1046
        %v1104 = vadd.f32 %v1102, %v1100
        %v1105 = vadd.f32 %v1103, %v1101
        %v1107 = vlaneseq
        %v1108 = vshrl.u32 %v1107, 7
        %v1109 = vsub.s32 0, %v1108
        %v1110 = vrot.slane %v1089, %v1109
        %v1112 = vadd.f32 %v1104, %v1110
        %v1113 = vadd.f32 %v1105, %v1110
        %v1114 = vld [vmem:[%s9] sm:$0x1]
        %v1115 = vld [vmem:[%s10] sm:$0x1]
        %v1116 = vadd.f32 %v1112, %v1113
        %v1117 = vrot.slane %v1116, 4
        %v1118 = vadd.f32 %v1116, %v1117
        %v1119 = vrot.slane %v1118, 2
        %v1120 = vadd.f32 %v1118, %v1119
        %v1121 = vrot.slane %v1120, 1
        %v1122 = vadd.f32 %v1120, %v1121
        %v1123 = vmul.f32 %v1112, %v1112
        %v1124 = vmul.f32 %v1113, %v1113
        %v1125 = vadd.f32 %v1123, %v1124
        %v1126 = vrot.slane %v1125, 4
        %v1127 = vadd.f32 %v1125, %v1126
        %v1128 = vrot.slane %v1127, 2
        %v1129 = vadd.f32 %v1127, %v1128
        %v1130 = vrot.slane %v1129, 1
        %v1131 = vadd.f32 %v1129, %v1130
        %v1132 = vsel %vm689, %v1122, %v1131
        %1133 = vmatprep.subr.mxu0 0.0
        %1134 = vmatpush1.msra.mxu0 %v691
        %1135 = vmatprep.subr.mxu0 0.0
        %1136 = vmatpush1.msra.mxu0 %v692
        %1137 = vmatprep.subr.mxu0 0.0
        %1138 = vmatpush1.msra.mxu0 %v693
        %1139 = vmatprep.subr.mxu0 0.0
        %1140 = vmatpush1.msra.mxu0 %v694
        %1141 = vmatprep.subr.mxu0 0.0
        %1142 = vmatpush1.msra.mxu0 %v695
        %1143 = vmatprep.subr.mxu0 0.0
        %1144 = vmatpush1.msra.mxu0 %v696
        %1145 = vmatprep.subr.mxu0 0.0
        %1146 = vmatpush1.msra.mxu0 %v697
        %1147 = vmatprep.subr.mxu0 0.0
        %1148 = vmatpush1.msra.mxu0 %v698
        %1149 = vmatprep.subr.mxu0 0.0
        %1150 = vmatpush1.msra.mxu0 %v699
        %1151 = vmatprep.subr.mxu0 0.0
        %1152 = vmatpush1.msra.mxu0 %v700
        %1153 = vmatprep.subr.mxu0 0.0
        %1154 = vmatpush1.msra.mxu0 %v701
        %1155 = vmatprep.subr.mxu0 0.0
        %1156 = vmatpush1.msra.mxu0 %v702
        %1157 = vmatprep.subr.mxu0 0.0
        %1158 = vmatpush1.msra.mxu0 %v703
        %1159 = vmatprep.subr.mxu0 0.0
        %1160 = vmatpush1.msra.mxu0 %v704
        %1161 = vmatprep.subr.mxu0 0.0
        %1162 = vmatpush1.msra.mxu0 %v705
        %1163 = vmatprep.subr.mxu0 0.0
        %1164 = vmatpush1.msra.mxu0 %v706
        %1165 = vmatprep.subr.mxu0 0.0
        %1166 = vmatpush1.msra.mxu0 0.0
        %1167 = vmatprep.subr.mxu0 0.0
        %1168 = vmatpush1.msra.mxu0 0.0
        %1169 = vmatprep.subr.mxu0 0.0
        %1170 = vmatpush1.msra.mxu0 0.0
        %1171 = vmatprep.subr.mxu0 0.0
        %1172 = vmatpush1.msra.mxu0 0.0
        %1173 = vmatprep.subr.mxu0 0.0
        %1174 = vmatpush1.msra.mxu0 0.0
        %1175 = vmatprep.subr.mxu0 0.0
        %1176 = vmatpush1.msra.mxu0 0.0
        %1177 = vmatprep.subr.mxu0 0.0
        %1178 = vmatpush1.msra.mxu0 0.0
        %1179 = vmatprep.subr.mxu0 0.0
        %1180 = vmatpush1.msra.mxu0 0.0
        %1181 = vmatprep.subr.mxu0 0.0
        %1182 = vmatpush1.msra.mxu0 0.0
        %1183 = vmatprep.subr.mxu0 0.0
        %1184 = vmatpush1.msra.mxu0 0.0
        %1185 = vmatprep.subr.mxu0 0.0
        %1186 = vmatpush1.msra.mxu0 0.0
        %1187 = vmatprep.subr.mxu0 0.0
        %1188 = vmatpush1.msra.mxu0 0.0
        %1189 = vmatprep.subr.mxu0 0.0
        %1190 = vmatpush1.msra.mxu0 0.0
        %1191 = vmatprep.subr.mxu0 0.0
        %1192 = vmatpush1.msra.mxu0 0.0
        %1193 = vmatprep.subr.mxu0 0.0
        %1194 = vmatpush1.msra.mxu0 0.0
        %1195 = vmatprep.subr.mxu0 0.0
        %1196 = vmatpush1.msra.mxu0 0.0
        %1197 = vmatprep.mubr.f32.mxu0 0.0
        %1198 = vmatmul.mubr.f32.gmra.mrb[0].mxu0 %v1132
        %v1199 = vpop.f32.mrb[0].mxu0
        %v1200 = vadd.f32 0.0, %v1199
        %v1201 = vpop.f32.mrb[0].mxu0
        %1202 = vdwg.mxu0
        %v1203 = vmul.f32 %v1200, %v1200
        %v1205 = vrot.slane %v1203, 7
        %v1207 = vsub.f32 %v1200, %v1205
        %v1208 = vlaneseq
        %v1209 = vshrl.u32 %v1208, 7
        %v1210 = vsub.s32 0, %v1209
        %v1211 = vrot.slane %v1200, %v1210
        %v1212 = vsub.f32 %v1112, %v1211
        %v1213 = vsub.f32 %v1113, %v1211
        %v1214 = vadd.f32 %v1207, 1e-05
        %v1215 = vrsqrt.pop %v1214
        %v1216 = vlaneseq
        %v1217 = vshrl.u32 %v1216, 7
        %v1218 = vsub.s32 1, %v1217
        %v1219 = vrot.slane %v1215, %v1218
        %v1220 = vmul.f32 %v1212, %v1219
        %v1221 = vmul.f32 %v1213, %v1219
        %v1223 = vlaneseq
        %v1224 = vshrl.u32 %v1223, 7
        %v1225 = vsub.s32 0, %v1224
        %v1226 = vrot.slane %v1114, %v1225
        %v1228 = vmul.f32 %v1220, %v1226
        %v1229 = vmul.f32 %v1221, %v1226
        %v1231 = vlaneseq
        %v1232 = vshrl.u32 %v1231, 7
        %v1233 = vsub.s32 0, %v1232
        %v1234 = vrot.slane %v1115, %v1233
        %v1236 = vadd.f32 %v1228, %v1234
        %v1237 = vadd.f32 %v1229, %v1234
        %v1238 = vxor.u32 %v1236, 2147483648
        %v1239 = vxor.u32 %v1237, 2147483648
        %v1240 = vmul.f32 %v1238, 1.442695
        %v1241 = vpow.pop %v1240
        %v1242 = vmul.f32 %v1239, 1.442695
        %v1243 = vpow.pop %v1242
        %v1244 = vadd.f32 %v1241, 1.0
        %v1245 = vadd.f32 %v1243, 1.0
        %v1246 = vrcp.pop %v1244
        %v1247 = vmul.f32 1.0, %v1246
        %v1248 = vrcp.pop %v1245
        %v1249 = vmul.f32 1.0, %v1248
        %v1250 = vmul.f32 %v1236, %v1247
        %v1251 = vmul.f32 %v1237, %v1249
        %v1252 = vadd.f32 %v1250, %v634
        %v1253 = vadd.f32 %v1251, %v635
        %v1254 = vpack.c.bf16 %v1253, %v1252
        %v1256 = vunpack.c.l.b16 %v1254
        %v1257 = vunpack.c.h.b16 %v1254
        %v1258 = vpack.c.b16 %v1256, %v1256
        %v1259 = vpack.c.b16 %v1257, %v1257
        %1262 = vst [vmem:[%s485] sm:$0xf] %v1258
        %1263 = vst [vmem:[%s485 + $0x4] sm:$0xf] %v1259
        %s1264 = sand.u32 %s325, 1
        %s1265 = scalar_lea.sflag [#allocation4], %s1264
        %s1266 = sand.u32 %s325, 1
        %s1267 = smul.addr %s1266, 8
        %s1268 = scalar_lea.vmem [#allocation7], %s1267
        // Predicated region
        $region81: #{tpu_custom_call.1} parent=71 // pred_check
          %p1269 = pneg %p335
        $region82: #{tpu_custom_call.1} parent=71 // pred_check_branch
          %1271 = sbr.rel (%p1269) target = $region84
        $region83: #{tpu_custom_call.1} parent=71 // pred_region
          %s1273 = ssub.s32 128, 128
          %1274 = vsyncadd %s1265, %s1273
          %s1275 = smul.addr %s29, 2
          %s1276 = smul.addr %s1275, 64
          %s1277 = scalar_lea.hbm %s13, %s1276
          %s1278 = sshll.u32 %s1268, 4
          %s1279 = int_to_ptr.vmem [resolvable:$true] %s1278
          %1284 = dma.vmem_to_hbm [thread:$0]  %s1279, 128, %s1277, %s1265, 64, 64, 4
        $region84: #{tpu_custom_call.1} parent=71 // pred_fallthru
          _
      $region72: #{tpu_custom_call.1} parent=5 // pred_fallthru
        _
      %p1285 = scmp.le.s32.totalorder 2, %s24
      // Predicated region
      $region85: #{tpu_custom_call.1} parent=5 // pred_check
        %p1286 = pneg %p1285
      $region86: #{tpu_custom_call.1} parent=5 // pred_check_branch
        %1288 = sbr.rel (%p1286) target = $region88
      $region87: #{tpu_custom_call.1} parent=5 // pred_region
        %s1289 = ssub.s32 %s24, 2
        // Predicated region
        $region89: #{tpu_custom_call.1} parent=87 // pred_check
          %p1290 = pneg %p341
        $region90: #{tpu_custom_call.1} parent=87 // pred_check_branch
          %1292 = sbr.rel (%p1290) target = $region92
        $region91: #{tpu_custom_call.1} parent=87 // pred_region
          %s1293 = sand.u32 %s326, 1
          %s1294 = scalar_lea.sflag [#allocation4], %s1293
          %s1295 = sand.u32 %s326, 1
          %s1296 = smul.addr %s1295, 8
          %s1297 = scalar_lea.vmem [#allocation7], %s1296
          %1298 = dma.done %s1294, 128
        $region92: #{tpu_custom_call.1} parent=87 // pred_fallthru
          _
      $region88: #{tpu_custom_call.1} parent=5 // pred_fallthru
        _
    $region6: #{tpu_custom_call.1} parent=1 // loop_footer
      %s28 = sadd.s32 1, %s24
    $region7: #{tpu_custom_call.1} parent=1 // loop_footer_branch
      %23 = sbr.rel target = $region3
    $region8: #{tpu_custom_call.1} parent=1 // loop_exit
      _
    %1299 = vsyncpa [#allocation3], 1
    %s1300 = scalar_lea.sflag [#allocation3], 1
    %1301 = vsyncpa %s1300, 1
    %1302 = vsyncpa [#allocation6], 1
    %1303 = vsyncpa [#allocation4], 1
    %s1304 = scalar_lea.sflag [#allocation4], 1
    %1305 = vsyncpa %s1304, 1

</llo_original>
